<compile_context>
chip_gen: v6e
topology: v6e:2x2x1
jax: 0.10.0
libtpu: 0.0.40
codegen_flags: <defaults>
</compile_context>

<pallas_src>
import functools

import jax
import jax.numpy as jnp
import numpy as np
from jax import lax
from jax.experimental import pallas as pl
from jax.experimental.pallas import tpu as pltpu

NEG = -1e30          # "minus infinity" sentinel for masked node slots
NUM_LAYERS = 3


# --------------------------------------------------------------------------
# Kernel
# --------------------------------------------------------------------------
def subgraph_kernel(x_ref, cnt_ref, w0_ref, wstk_ref, ln_ref, bf_ref, out_ref,
                    *, h_real):
    Ct, P, _ = x_ref.shape          # clusters per tile, padded nodes per cluster
    Hp = out_ref.shape[1]           # lane-dense hidden (real H zero-padded)
    NP = Ct * P
    inv_h = 1.0 / float(h_real)     # LN stats over real lanes only (pad lanes are 0)

    # Validity mask from per-cluster counts (valid slots packed from rank 0).
    cnt = cnt_ref[...]                                          # [Ct,1] int32
    node_id = lax.broadcasted_iota(jnp.int32, (Ct, P, 1), 1)
    neg = jnp.where(node_id < cnt[:, None, :], 0.0, NEG).astype(jnp.float32)

    def seg_max(v3):
        # per-cluster max over the padded node axis; masked slots carry -1e30
        return jnp.max(v3 + neg, axis=1)                        # [Ct, Hp]

    def ln_relu(h, l):
        # LayerNorm(eps=1e-5) with fused stats over the real H lanes, then ReLU.
        # gamma/beta pad lanes are 0, so pad lanes come out exactly 0.
        b = ln_ref[l, 0].reshape(1, 1, Hp)
        g = ln_ref[l, 1].reshape(1, 1, Hp)
        be = ln_ref[l, 2].reshape(1, 1, Hp)
        h = h + b
        mu = jnp.sum(h, axis=-1, keepdims=True) * inv_h
        var = jnp.sum(h * h, axis=-1, keepdims=True) * inv_h - mu * mu
        h = (h - mu) * lax.rsqrt(var + 1e-5)
        return jnp.maximum(h * g + be, 0.0)

    def node_matmul(a3, w):
        # [Ct,P,K] bf16 @ [K,Hp] bf16 -> [Ct,P,Hp] f32 on the MXU.
        # P % 8 == 0 and last dim unchanged -> reshapes are no-op relayouts.
        r = jnp.dot(a3.reshape(NP, a3.shape[-1]), w,
                    preferred_element_type=jnp.float32)
        return r.reshape(Ct, P, Hp)

    # ---- layer 0: Linear(F_in -> H) -> LN -> ReLU, then per-cluster max ----
    h = ln_relu(node_matmul(x_ref[...], w0_ref[...]), 0)        # [Ct,P,Hp] f32
    agg = seg_max(h)                                            # [Ct,Hp]   f32
    xh = h.astype(jnp.bfloat16)                                 # resident act in bf16

    # ---- layers 1..2: cat([x, agg[cluster]]) @ W == x@W_top + agg@W_bot ----
    for l in (1, 2):
        wt = wstk_ref[2 * (l - 1)]                              # [Hp,Hp] bf16
        wb = wstk_ref[2 * (l - 1) + 1]
        hx = node_matmul(xh, wt)                                # [Ct,P,Hp]
        ha = jnp.dot(agg.astype(jnp.bfloat16), wb,
                     preferred_element_type=jnp.float32)        # [Ct,Hp]
        h = ln_relu(hx + ha[:, None, :], l)
        agg = seg_max(h)
        xh = h.astype(jnp.bfloat16)

    # ---- final Linear(2H -> H), per-cluster max, L2 normalize --------------
    hx = node_matmul(xh, wstk_ref[4])
    ha = jnp.dot(agg.astype(jnp.bfloat16), wstk_ref[5],
                 preferred_element_type=jnp.float32)
    hf = hx + ha[:, None, :] + bf_ref[...]                      # [Ct,P,Hp]
    aggf = seg_max(hf)                                          # [Ct,Hp]

    # F.normalize(p=2, dim=1): x * rsqrt(max(||x||^2, 1e-24))
    ss = jnp.sum(aggf * aggf, axis=1, keepdims=True)
    out_ref[...] = aggf * lax.rsqrt(jnp.maximum(ss, 1e-24))


# --------------------------------------------------------------------------
# Wrapper: padded per-cluster layout + packed (lane-padded) params
# --------------------------------------------------------------------------
def _build_padded(x, cluster, num_clusters, pad_clusters, pad_nodes):
    """Pack nodes into [C_pad, P, F] (bf16) + per-cluster valid counts [C_pad,1]."""
    N, F = x.shape
    counts = jnp.zeros((pad_clusters,), jnp.int32).at[cluster].add(1)
    offsets = jnp.cumsum(counts) - counts                        # exclusive cumsum
    order = jnp.argsort(cluster)                                 # O(N log N)
    cl_sorted = cluster[order]
    rank = jnp.arange(N, dtype=jnp.int32) - offsets[cl_sorted]   # rank within cluster
    dest = cl_sorted * pad_nodes + rank
    xp = jnp.zeros((pad_clusters * pad_nodes, F), jnp.float32).at[dest].set(x[order])
    xp = xp.reshape(pad_clusters, pad_nodes, F).astype(jnp.bfloat16)
    return xp, counts.reshape(pad_clusters, 1)


def _pack_params(params, hidden, hidden_pad):
    H, Hp = hidden, hidden_pad

    def pad_hh(w):                                               # [H,H] -> [Hp,Hp]
        return jnp.zeros((Hp, Hp), jnp.float32).at[:H, :H].set(w)

    def pad_vec(v):                                              # [H] -> [Hp]
        return jnp.zeros((Hp,), jnp.float32).at[:H].set(v)

    w1, w2, wf = params["w1"], params["w2"], params["wf"]
    wstk = jnp.stack([pad_hh(w1[:H]), pad_hh(w1[H:]),
                      pad_hh(w2[:H]), pad_hh(w2[H:]),
                      pad_hh(wf[:H]), pad_hh(wf[H:])]).astype(jnp.bfloat16)  # [6,Hp,Hp]
    ln = jnp.stack([jnp.stack([pad_vec(params[f"b{i}"]),
                               pad_vec(params[f"g{i}"]),
                               pad_vec(params[f"be{i}"])]) for i in range(NUM_LAYERS)])
    ln = ln.reshape(NUM_LAYERS, 3, 1, Hp).astype(jnp.float32)    # [3,3,1,Hp]
    w0 = jnp.zeros((params["w0"].shape[0], Hp), jnp.float32).at[:, :H].set(
        params["w0"]).astype(jnp.bfloat16)                       # [Fin,Hp]
    bf = pad_vec(params["bf"]).reshape(1, 1, Hp).astype(jnp.float32)
    return w0, wstk, ln, bf


def subgraph_forward(x, cluster, params, num_clusters, pad_nodes, c_tile=256):
    H = params["wf"].shape[1]
    Hp = max(128, ((H + 127) // 128) * 128)          # lane-dense hidden
    Fin = x.shape[1]
    P = pad_nodes

    # --- cluster-tile policy ------------------------------------------------
    # multiple of 8; capped by a rough per-tile VMEM estimate (input dbl-buffer
    # + ~4 live [P,Hp] activation slabs) against ~20 MiB (headroom on v7x's
    # 64 MiB); shrunk so the grid has >= 2 steps when C allows (megacore).
    per_cluster = P * 128 * 2 * 2 + 4 * P * Hp * 4
    budget = 20 * 1024 * 1024
    ct = min(int(c_tile), max(8, (budget // per_cluster) // 8 * 8))
    half = ((-(-num_clusters // 2)) + 7) // 8 * 8    # ceil(C/2) rounded up to 8
    ct = max(8, min(((ct + 7) // 8) * 8, half))
    C_pad = -(-num_clusters // ct) * ct

    xp, counts = _build_padded(x, cluster, num_clusters, C_pad, P)
    w0, wstk, ln, bf = _pack_params(params, H, Hp)

    out = pl.pallas_call(
        functools.partial(subgraph_kernel, h_real=H),
        out_shape=jax.ShapeDtypeStruct((C_pad, Hp), jnp.float32),
        grid=(C_pad // ct,),
        in_specs=[
            pl.BlockSpec((ct, P, Fin), lambda i: (i, 0, 0)),     # packed nodes
            pl.BlockSpec((ct, 1), lambda i: (i, 0)),             # valid counts
            pl.BlockSpec(w0.shape, lambda i: (0, 0)),            # w0 (resident)
            pl.BlockSpec(wstk.shape, lambda i: (0, 0, 0)),       # split cat-weights
            pl.BlockSpec(ln.shape, lambda i: (0, 0, 0, 0)),      # LN params
            pl.BlockSpec(bf.shape, lambda i: (0, 0, 0)),         # final bias
        ],
        out_specs=pl.BlockSpec((ct, Hp), lambda i: (i, 0)),
        compiler_params=pltpu.CompilerParams(
            dimension_semantics=("parallel",),
            vmem_limit_bytes=40 * 1024 * 1024,
        ),
    )(xp, counts, w0, wstk, ln, bf)
    return out[:num_clusters, :H]


# --------------------------------------------------------------------------
# Pure-JAX reference with identical math (same bf16 matmul rounding)
# --------------------------------------------------------------------------
def reference_forward(x, cluster, params, num_clusters):
    H = params["wf"].shape[1]
    bf16 = jnp.bfloat16

    def ln_relu(h, b, g, be):
        h = h + b[None, :]
        mu = jnp.mean(h, -1, keepdims=True)
        var = jnp.mean(h * h, -1, keepdims=True) - mu * mu
        h = (h - mu) * lax.rsqrt(var + 1e-5)
        return jnp.maximum(h * g[None, :] + be[None, :], 0.0)

    xh = ln_relu(jnp.dot(x.astype(bf16), params["w0"].astype(bf16),
                         preferred_element_type=jnp.float32),
                 params["b0"], params["g0"], params["be0"])
    agg = jax.ops.segment_max(xh, cluster, num_segments=num_clusters)
    for l in (1, 2):
        w = params[f"w{l}"]
        wt, wb = w[:H].astype(bf16), w[H:].astype(bf16)
        hx = jnp.dot(xh.astype(bf16), wt, preferred_element_type=jnp.float32)
        ha = jnp.dot(agg.astype(bf16), wb, preferred_element_type=jnp.float32)
        xh = ln_relu(hx + ha[cluster],
                     params[f"b{l}"], params[f"g{l}"], params[f"be{l}"])
        agg = jax.ops.segment_max(xh, cluster, num_segments=num_clusters)
    wf = params["wf"]
    wt, wb = wf[:H].astype(bf16), wf[H:].astype(bf16)
    hx = jnp.dot(xh.astype(bf16), wt, preferred_element_type=jnp.float32)
    ha = jnp.dot(agg.astype(bf16), wb, preferred_element_type=jnp.float32)
    hf = hx + ha[cluster] + params["bf"][None, :]
    aggf = jax.ops.segment_max(hf, cluster, num_segments=num_clusters)
    ss = jnp.sum(aggf * aggf, axis=1, keepdims=True)
    return aggf * lax.rsqrt(jnp.maximum(ss, 1e-24))


# --------------------------------------------------------------------------
# Params
# --------------------------------------------------------------------------
def init_params(key, input_size, hidden):
    ks = jax.random.split(key, NUM_LAYERS + 2)
    p = {}
    in_sz = input_size
    for i in range(NUM_LAYERS):
        k1, k2, k3, k4 = jax.random.split(ks[i], 4)
        p[f"w{i}"] = 0.1 * jax.random.normal(k1, (in_sz, hidden), jnp.float32)
        p[f"b{i}"] = 0.01 * jax.random.normal(k2, (hidden,), jnp.float32)
        p[f"g{i}"] = 1.0 + 0.1 * jax.random.normal(k3, (hidden,), jnp.float32)
        p[f"be{i}"] = 0.05 * jax.random.normal(k4, (hidden,), jnp.float32)
        in_sz = hidden * 2
    kf1, kf2 = jax.random.split(ks[NUM_LAYERS], 2)
    p["wf"] = 0.1 * jax.random.normal(kf1, (hidden * 2, hidden), jnp.float32)
    p["bf"] = 0.01 * jax.random.normal(kf2, (hidden,), jnp.float32)
    return p


if __name__ == "__main__":
    key = jax.random.PRNGKey(0)
    HIDDEN = 64          # module default hidden_size
    F_IN = 8             # per-vector input features
    C = 16               # polylines (clusters)
    P = 16               # padded nodes per polyline (sublane-aligned)

    # variable-length polylines, shuffled node order (exercises the mask +
    # sort-based packing paths)
    sizes = [16, 12, 8, 16, 10, 16, 16, 9, 16, 16, 11, 16, 16, 14, 13, 16]
    cluster_np = np.concatenate(
        [np.full(s, c, np.int32) for c, s in enumerate(sizes)])
    N = int(cluster_np.shape[0])

    kx, kp, ks = jax.random.split(key, 3)
    perm = jax.random.permutation(ks, N)
    cluster = jnp.asarray(cluster_np)[perm]
    x = jax.random.normal(kx, (N, F_IN), jnp.float32)
    params = init_params(kp, F_IN, HIDDEN)

    out = subgraph_forward(x, cluster, params, C, pad_nodes=P)
    out = jax.block_until_ready(out)

    ref = reference_forward(x, cluster, params, C)
    assert out.shape == (C, HIDDEN)
    assert np.allclose(np.asarray(out), np.asarray(ref), atol=2e-3, rtol=2e-3)
    print("KERNEL_OK")
</pallas_src>

<mosaic_0001>
module attributes {stable_mosaic.version = 11 : i64} {
  func.func @subgraph_kernel(%arg0: i32, %arg1: memref<8x16x8xbf16, #tpu.memory_space<vmem>>, %arg2: memref<8x1xi32, #tpu.memory_space<vmem>>, %arg3: memref<8x128xbf16, #tpu.memory_space<vmem>>, %arg4: memref<6x128x128xbf16, #tpu.memory_space<vmem>>, %arg5: memref<3x3x1x128xf32, #tpu.memory_space<vmem>>, %arg6: memref<1x1x128xf32, #tpu.memory_space<vmem>>, %arg7: memref<8x128xf32, #tpu.memory_space<vmem>>) attributes {dimension_semantics = [#tpu.dimension_semantics<parallel>], iteration_bounds = array<i64: 2>, scalar_prefetch = 0 : i64, scratch_operands = 0 : i64, tpu.core_type = #tpu.core_type<tc>, window_params = [{transform_indices = @transform_0, window_bounds = array<i64: 8, 16, 8>}, {transform_indices = @transform_1, window_bounds = array<i64: 8, 1>}, {pipeline_mode = #tpu.pipeline_mode<synchronous>, transform_indices = @transform_2, window_bounds = array<i64: 8, 128>}, {pipeline_mode = #tpu.pipeline_mode<synchronous>, transform_indices = @transform_3, window_bounds = array<i64: 6, 128, 128>}, {pipeline_mode = #tpu.pipeline_mode<synchronous>, transform_indices = @transform_4, window_bounds = array<i64: 3, 3, 1, 128>}, {pipeline_mode = #tpu.pipeline_mode<synchronous>, transform_indices = @transform_5, window_bounds = array<i64: 1, 1, 128>}, {transform_indices = @transform_6, window_bounds = array<i64: 8, 128>}]} {
    %c0 = arith.constant 0 : index
    %c0_0 = arith.constant 0 : index
    %0 = vector.load %arg2[%c0, %c0_0] : memref<8x1xi32, #tpu.memory_space<vmem>>, vector<8x1xi32>
    %1 = tpu.iota {dimensions = array<i32: 1>} : vector<8x16x1xi32>
    %2 = vector.shape_cast %0 : vector<8x1xi32> to vector<8x1x1xi32>
    %3 = vector.broadcast %2 : vector<8x1x1xi32> to vector<8x16x1xi32>
    %4 = arith.cmpi slt, %1, %3 : vector<8x16x1xi32>
    %cst = arith.constant 0.000000e+00 : f32
    %cst_1 = arith.constant -1.000000e+30 : f32
    %5 = vector.broadcast %cst : f32 to vector<8x16x1xf32>
    %6 = vector.broadcast %cst_1 : f32 to vector<8x16x1xf32>
    %7 = arith.select %4, %5, %6 : vector<8x16x1xi1>, vector<8x16x1xf32>
    %c0_2 = arith.constant 0 : index
    %c0_3 = arith.constant 0 : index
    %c0_4 = arith.constant 0 : index
    %8 = vector.load %arg1[%c0_2, %c0_3, %c0_4] : memref<8x16x8xbf16, #tpu.memory_space<vmem>>, vector<8x16x8xbf16>
    %c0_5 = arith.constant 0 : index
    %c0_6 = arith.constant 0 : index
    %9 = vector.load %arg3[%c0_5, %c0_6] : memref<8x128xbf16, #tpu.memory_space<vmem>>, vector<8x128xbf16>
    %10 = vector.shape_cast %8 : vector<8x16x8xbf16> to vector<128x8xbf16>
    %cst_7 = arith.constant dense<0.000000e+00> : vector<128x128xf32>
    %11 = tpu.matmul %10, %9, %cst_7 {dimension_numbers = #tpu.dot_dimension_numbers<[1], [0], [0], [1], [0, 0, 1, 1], [], []>} : vector<128x8xbf16>, vector<8x128xbf16>, vector<128x128xf32> -> vector<128x128xf32>
    %12 = vector.shape_cast %11 : vector<128x128xf32> to vector<8x16x128xf32>
    %c0_8 = arith.constant 0 : index
    %c0_9 = arith.constant 0 : index
    %c0_10 = arith.constant 0 : index
    %c0_11 = arith.constant 0 : index
    %13 = vector.load %arg5[%c0_8, %c0_9, %c0_10, %c0_11] : memref<3x3x1x128xf32, #tpu.memory_space<vmem>>, vector<1x1x1x128xf32>
    %14 = vector.shape_cast %13 : vector<1x1x1x128xf32> to vector<1x128xf32>
    %15 = vector.shape_cast %14 : vector<1x128xf32> to vector<1x1x128xf32>
    %c0_12 = arith.constant 0 : index
    %c1 = arith.constant 1 : index
    %c0_13 = arith.constant 0 : index
    %c0_14 = arith.constant 0 : index
    %16 = vector.load %arg5[%c0_12, %c1, %c0_13, %c0_14] : memref<3x3x1x128xf32, #tpu.memory_space<vmem>>, vector<1x1x1x128xf32>
    %17 = vector.shape_cast %16 : vector<1x1x1x128xf32> to vector<1x128xf32>
    %18 = vector.shape_cast %17 : vector<1x128xf32> to vector<1x1x128xf32>
    %c0_15 = arith.constant 0 : index
    %c2 = arith.constant 2 : index
    %c0_16 = arith.constant 0 : index
    %c0_17 = arith.constant 0 : index
    %19 = vector.load %arg5[%c0_15, %c2, %c0_16, %c0_17] : memref<3x3x1x128xf32, #tpu.memory_space<vmem>>, vector<1x1x1x128xf32>
    %20 = vector.shape_cast %19 : vector<1x1x1x128xf32> to vector<1x128xf32>
    %21 = vector.shape_cast %20 : vector<1x128xf32> to vector<1x1x128xf32>
    %22 = vector.broadcast %15 : vector<1x1x128xf32> to vector<8x16x128xf32>
    %23 = arith.addf %12, %22 : vector<8x16x128xf32>
    %cst_18 = arith.constant dense<0.000000e+00> : vector<8x16xf32>
    %24 = vector.multi_reduction <add>, %23, %cst_18 [2] : vector<8x16x128xf32> to vector<8x16xf32>
    %25 = vector.shape_cast %24 : vector<8x16xf32> to vector<8x16x1xf32>
    %cst_19 = arith.constant 1.562500e-02 : f32
    %26 = vector.broadcast %cst_19 : f32 to vector<8x16x1xf32>
    %27 = arith.mulf %25, %26 : vector<8x16x1xf32>
    %28 = arith.mulf %23, %23 : vector<8x16x128xf32>
    %cst_20 = arith.constant dense<0.000000e+00> : vector<8x16xf32>
    %29 = vector.multi_reduction <add>, %28, %cst_20 [2] : vector<8x16x128xf32> to vector<8x16xf32>
    %30 = vector.shape_cast %29 : vector<8x16xf32> to vector<8x16x1xf32>
    %cst_21 = arith.constant 1.562500e-02 : f32
    %31 = vector.broadcast %cst_21 : f32 to vector<8x16x1xf32>
    %32 = arith.mulf %30, %31 : vector<8x16x1xf32>
    %33 = arith.mulf %27, %27 : vector<8x16x1xf32>
    %34 = arith.subf %32, %33 : vector<8x16x1xf32>
    %35 = vector.broadcast %27 : vector<8x16x1xf32> to vector<8x16x128xf32>
    %36 = arith.subf %23, %35 : vector<8x16x128xf32>
    %cst_22 = arith.constant 9.99999974E-6 : f32
    %37 = vector.broadcast %cst_22 : f32 to vector<8x16x1xf32>
    %38 = arith.addf %34, %37 : vector<8x16x1xf32>
    %39 = math.rsqrt %38 : vector<8x16x1xf32>
    %40 = vector.broadcast %39 : vector<8x16x1xf32> to vector<8x16x128xf32>
    %41 = arith.mulf %36, %40 : vector<8x16x128xf32>
    %42 = vector.broadcast %18 : vector<1x1x128xf32> to vector<8x16x128xf32>
    %43 = arith.mulf %41, %42 : vector<8x16x128xf32>
    %44 = vector.broadcast %21 : vector<1x1x128xf32> to vector<8x16x128xf32>
    %45 = arith.addf %43, %44 : vector<8x16x128xf32>
    %cst_23 = arith.constant 0.000000e+00 : f32
    %46 = vector.broadcast %cst_23 : f32 to vector<8x16x128xf32>
    %47 = arith.maximumf %45, %46 : vector<8x16x128xf32>
    %48 = vector.broadcast %7 : vector<8x16x1xf32> to vector<8x16x128xf32>
    %49 = arith.addf %47, %48 : vector<8x16x128xf32>
    %cst_24 = arith.constant dense<0xFF800000> : vector<8x128xf32>
    %50 = vector.multi_reduction <maximumf>, %49, %cst_24 [1] : vector<8x16x128xf32> to vector<8x128xf32>
    %51 = arith.truncf %47 : vector<8x16x128xf32> to vector<8x16x128xbf16>
    %c0_25 = arith.constant 0 : index
    %c0_26 = arith.constant 0 : index
    %c0_27 = arith.constant 0 : index
    %52 = vector.load %arg4[%c0_25, %c0_26, %c0_27] : memref<6x128x128xbf16, #tpu.memory_space<vmem>>, vector<1x128x128xbf16>
    %53 = vector.shape_cast %52 : vector<1x128x128xbf16> to vector<128x128xbf16>
    %c1_28 = arith.constant 1 : index
    %c0_29 = arith.constant 0 : index
    %c0_30 = arith.constant 0 : index
    %54 = vector.load %arg4[%c1_28, %c0_29, %c0_30] : memref<6x128x128xbf16, #tpu.memory_space<vmem>>, vector<1x128x128xbf16>
    %55 = vector.shape_cast %54 : vector<1x128x128xbf16> to vector<128x128xbf16>
    %56 = vector.shape_cast %51 : vector<8x16x128xbf16> to vector<128x128xbf16>
    %cst_31 = arith.constant dense<0.000000e+00> : vector<128x128xf32>
    %57 = tpu.matmul %56, %53, %cst_31 {dimension_numbers = #tpu.dot_dimension_numbers<[1], [0], [0], [1], [0, 0, 1, 1], [], []>} : vector<128x128xbf16>, vector<128x128xbf16>, vector<128x128xf32> -> vector<128x128xf32>
    %58 = vector.shape_cast %57 : vector<128x128xf32> to vector<8x16x128xf32>
    %59 = arith.truncf %50 : vector<8x128xf32> to vector<8x128xbf16>
    %cst_32 = arith.constant dense<0.000000e+00> : vector<8x128xf32>
    %60 = tpu.matmul %59, %55, %cst_32 {dimension_numbers = #tpu.dot_dimension_numbers<[1], [0], [0], [1], [0, 0, 1, 1], [], []>} : vector<8x128xbf16>, vector<128x128xbf16>, vector<8x128xf32> -> vector<8x128xf32>
    %61 = vector.shape_cast %60 : vector<8x128xf32> to vector<8x1x128xf32>
    %62 = vector.broadcast %61 : vector<8x1x128xf32> to vector<8x16x128xf32>
    %63 = arith.addf %58, %62 : vector<8x16x128xf32>
    %c1_33 = arith.constant 1 : index
    %c0_34 = arith.constant 0 : index
    %c0_35 = arith.constant 0 : index
    %c0_36 = arith.constant 0 : index
    %64 = vector.load %arg5[%c1_33, %c0_34, %c0_35, %c0_36] : memref<3x3x1x128xf32, #tpu.memory_space<vmem>>, vector<1x1x1x128xf32>
    %65 = vector.shape_cast %64 : vector<1x1x1x128xf32> to vector<1x128xf32>
    %66 = vector.shape_cast %65 : vector<1x128xf32> to vector<1x1x128xf32>
    %c1_37 = arith.constant 1 : index
    %c1_38 = arith.constant 1 : index
    %c0_39 = arith.constant 0 : index
    %c0_40 = arith.constant 0 : index
    %67 = vector.load %arg5[%c1_37, %c1_38, %c0_39, %c0_40] : memref<3x3x1x128xf32, #tpu.memory_space<vmem>>, vector<1x1x1x128xf32>
    %68 = vector.shape_cast %67 : vector<1x1x1x128xf32> to vector<1x128xf32>
    %69 = vector.shape_cast %68 : vector<1x128xf32> to vector<1x1x128xf32>
    %c1_41 = arith.constant 1 : index
    %c2_42 = arith.constant 2 : index
    %c0_43 = arith.constant 0 : index
    %c0_44 = arith.constant 0 : index
    %70 = vector.load %arg5[%c1_41, %c2_42, %c0_43, %c0_44] : memref<3x3x1x128xf32, #tpu.memory_space<vmem>>, vector<1x1x1x128xf32>
    %71 = vector.shape_cast %70 : vector<1x1x1x128xf32> to vector<1x128xf32>
    %72 = vector.shape_cast %71 : vector<1x128xf32> to vector<1x1x128xf32>
    %73 = vector.broadcast %66 : vector<1x1x128xf32> to vector<8x16x128xf32>
    %74 = arith.addf %63, %73 : vector<8x16x128xf32>
    %cst_45 = arith.constant dense<0.000000e+00> : vector<8x16xf32>
    %75 = vector.multi_reduction <add>, %74, %cst_45 [2] : vector<8x16x128xf32> to vector<8x16xf32>
    %76 = vector.shape_cast %75 : vector<8x16xf32> to vector<8x16x1xf32>
    %cst_46 = arith.constant 1.562500e-02 : f32
    %77 = vector.broadcast %cst_46 : f32 to vector<8x16x1xf32>
    %78 = arith.mulf %76, %77 : vector<8x16x1xf32>
    %79 = arith.mulf %74, %74 : vector<8x16x128xf32>
    %cst_47 = arith.constant dense<0.000000e+00> : vector<8x16xf32>
    %80 = vector.multi_reduction <add>, %79, %cst_47 [2] : vector<8x16x128xf32> to vector<8x16xf32>
    %81 = vector.shape_cast %80 : vector<8x16xf32> to vector<8x16x1xf32>
    %cst_48 = arith.constant 1.562500e-02 : f32
    %82 = vector.broadcast %cst_48 : f32 to vector<8x16x1xf32>
    %83 = arith.mulf %81, %82 : vector<8x16x1xf32>
    %84 = arith.mulf %78, %78 : vector<8x16x1xf32>
    %85 = arith.subf %83, %84 : vector<8x16x1xf32>
    %86 = vector.broadcast %78 : vector<8x16x1xf32> to vector<8x16x128xf32>
    %87 = arith.subf %74, %86 : vector<8x16x128xf32>
    %cst_49 = arith.constant 9.99999974E-6 : f32
    %88 = vector.broadcast %cst_49 : f32 to vector<8x16x1xf32>
    %89 = arith.addf %85, %88 : vector<8x16x1xf32>
    %90 = math.rsqrt %89 : vector<8x16x1xf32>
    %91 = vector.broadcast %90 : vector<8x16x1xf32> to vector<8x16x128xf32>
    %92 = arith.mulf %87, %91 : vector<8x16x128xf32>
    %93 = vector.broadcast %69 : vector<1x1x128xf32> to vector<8x16x128xf32>
    %94 = arith.mulf %92, %93 : vector<8x16x128xf32>
    %95 = vector.broadcast %72 : vector<1x1x128xf32> to vector<8x16x128xf32>
    %96 = arith.addf %94, %95 : vector<8x16x128xf32>
    %cst_50 = arith.constant 0.000000e+00 : f32
    %97 = vector.broadcast %cst_50 : f32 to vector<8x16x128xf32>
    %98 = arith.maximumf %96, %97 : vector<8x16x128xf32>
    %99 = vector.broadcast %7 : vector<8x16x1xf32> to vector<8x16x128xf32>
    %100 = arith.addf %98, %99 : vector<8x16x128xf32>
    %cst_51 = arith.constant dense<0xFF800000> : vector<8x128xf32>
    %101 = vector.multi_reduction <maximumf>, %100, %cst_51 [1] : vector<8x16x128xf32> to vector<8x128xf32>
    %102 = arith.truncf %98 : vector<8x16x128xf32> to vector<8x16x128xbf16>
    %c2_52 = arith.constant 2 : index
    %c0_53 = arith.constant 0 : index
    %c0_54 = arith.constant 0 : index
    %103 = vector.load %arg4[%c2_52, %c0_53, %c0_54] : memref<6x128x128xbf16, #tpu.memory_space<vmem>>, vector<1x128x128xbf16>
    %104 = vector.shape_cast %103 : vector<1x128x128xbf16> to vector<128x128xbf16>
    %c3 = arith.constant 3 : index
    %c0_55 = arith.constant 0 : index
    %c0_56 = arith.constant 0 : index
    %105 = vector.load %arg4[%c3, %c0_55, %c0_56] : memref<6x128x128xbf16, #tpu.memory_space<vmem>>, vector<1x128x128xbf16>
    %106 = vector.shape_cast %105 : vector<1x128x128xbf16> to vector<128x128xbf16>
    %107 = vector.shape_cast %102 : vector<8x16x128xbf16> to vector<128x128xbf16>
    %cst_57 = arith.constant dense<0.000000e+00> : vector<128x128xf32>
    %108 = tpu.matmul %107, %104, %cst_57 {dimension_numbers = #tpu.dot_dimension_numbers<[1], [0], [0], [1], [0, 0, 1, 1], [], []>} : vector<128x128xbf16>, vector<128x128xbf16>, vector<128x128xf32> -> vector<128x128xf32>
    %109 = vector.shape_cast %108 : vector<128x128xf32> to vector<8x16x128xf32>
    %110 = arith.truncf %101 : vector<8x128xf32> to vector<8x128xbf16>
    %cst_58 = arith.constant dense<0.000000e+00> : vector<8x128xf32>
    %111 = tpu.matmul %110, %106, %cst_58 {dimension_numbers = #tpu.dot_dimension_numbers<[1], [0], [0], [1], [0, 0, 1, 1], [], []>} : vector<8x128xbf16>, vector<128x128xbf16>, vector<8x128xf32> -> vector<8x128xf32>
    %112 = vector.shape_cast %111 : vector<8x128xf32> to vector<8x1x128xf32>
    %113 = vector.broadcast %112 : vector<8x1x128xf32> to vector<8x16x128xf32>
    %114 = arith.addf %109, %113 : vector<8x16x128xf32>
    %c2_59 = arith.constant 2 : index
    %c0_60 = arith.constant 0 : index
    %c0_61 = arith.constant 0 : index
    %c0_62 = arith.constant 0 : index
    %115 = vector.load %arg5[%c2_59, %c0_60, %c0_61, %c0_62] : memref<3x3x1x128xf32, #tpu.memory_space<vmem>>, vector<1x1x1x128xf32>
    %116 = vector.shape_cast %115 : vector<1x1x1x128xf32> to vector<1x128xf32>
    %117 = vector.shape_cast %116 : vector<1x128xf32> to vector<1x1x128xf32>
    %c2_63 = arith.constant 2 : index
    %c1_64 = arith.constant 1 : index
    %c0_65 = arith.constant 0 : index
    %c0_66 = arith.constant 0 : index
    %118 = vector.load %arg5[%c2_63, %c1_64, %c0_65, %c0_66] : memref<3x3x1x128xf32, #tpu.memory_space<vmem>>, vector<1x1x1x128xf32>
    %119 = vector.shape_cast %118 : vector<1x1x1x128xf32> to vector<1x128xf32>
    %120 = vector.shape_cast %119 : vector<1x128xf32> to vector<1x1x128xf32>
    %c2_67 = arith.constant 2 : index
    %c2_68 = arith.constant 2 : index
    %c0_69 = arith.constant 0 : index
    %c0_70 = arith.constant 0 : index
    %121 = vector.load %arg5[%c2_67, %c2_68, %c0_69, %c0_70] : memref<3x3x1x128xf32, #tpu.memory_space<vmem>>, vector<1x1x1x128xf32>
    %122 = vector.shape_cast %121 : vector<1x1x1x128xf32> to vector<1x128xf32>
    %123 = vector.shape_cast %122 : vector<1x128xf32> to vector<1x1x128xf32>
    %124 = vector.broadcast %117 : vector<1x1x128xf32> to vector<8x16x128xf32>
    %125 = arith.addf %114, %124 : vector<8x16x128xf32>
    %cst_71 = arith.constant dense<0.000000e+00> : vector<8x16xf32>
    %126 = vector.multi_reduction <add>, %125, %cst_71 [2] : vector<8x16x128xf32> to vector<8x16xf32>
    %127 = vector.shape_cast %126 : vector<8x16xf32> to vector<8x16x1xf32>
    %cst_72 = arith.constant 1.562500e-02 : f32
    %128 = vector.broadcast %cst_72 : f32 to vector<8x16x1xf32>
    %129 = arith.mulf %127, %128 : vector<8x16x1xf32>
    %130 = arith.mulf %125, %125 : vector<8x16x128xf32>
    %cst_73 = arith.constant dense<0.000000e+00> : vector<8x16xf32>
    %131 = vector.multi_reduction <add>, %130, %cst_73 [2] : vector<8x16x128xf32> to vector<8x16xf32>
    %132 = vector.shape_cast %131 : vector<8x16xf32> to vector<8x16x1xf32>
    %cst_74 = arith.constant 1.562500e-02 : f32
    %133 = vector.broadcast %cst_74 : f32 to vector<8x16x1xf32>
    %134 = arith.mulf %132, %133 : vector<8x16x1xf32>
    %135 = arith.mulf %129, %129 : vector<8x16x1xf32>
    %136 = arith.subf %134, %135 : vector<8x16x1xf32>
    %137 = vector.broadcast %129 : vector<8x16x1xf32> to vector<8x16x128xf32>
    %138 = arith.subf %125, %137 : vector<8x16x128xf32>
    %cst_75 = arith.constant 9.99999974E-6 : f32
    %139 = vector.broadcast %cst_75 : f32 to vector<8x16x1xf32>
    %140 = arith.addf %136, %139 : vector<8x16x1xf32>
    %141 = math.rsqrt %140 : vector<8x16x1xf32>
    %142 = vector.broadcast %141 : vector<8x16x1xf32> to vector<8x16x128xf32>
    %143 = arith.mulf %138, %142 : vector<8x16x128xf32>
    %144 = vector.broadcast %120 : vector<1x1x128xf32> to vector<8x16x128xf32>
    %145 = arith.mulf %143, %144 : vector<8x16x128xf32>
    %146 = vector.broadcast %123 : vector<1x1x128xf32> to vector<8x16x128xf32>
    %147 = arith.addf %145, %146 : vector<8x16x128xf32>
    %cst_76 = arith.constant 0.000000e+00 : f32
    %148 = vector.broadcast %cst_76 : f32 to vector<8x16x128xf32>
    %149 = arith.maximumf %147, %148 : vector<8x16x128xf32>
    %150 = vector.broadcast %7 : vector<8x16x1xf32> to vector<8x16x128xf32>
    %151 = arith.addf %149, %150 : vector<8x16x128xf32>
    %cst_77 = arith.constant dense<0xFF800000> : vector<8x128xf32>
    %152 = vector.multi_reduction <maximumf>, %151, %cst_77 [1] : vector<8x16x128xf32> to vector<8x128xf32>
    %153 = arith.truncf %149 : vector<8x16x128xf32> to vector<8x16x128xbf16>
    %c4 = arith.constant 4 : index
    %c0_78 = arith.constant 0 : index
    %c0_79 = arith.constant 0 : index
    %154 = vector.load %arg4[%c4, %c0_78, %c0_79] : memref<6x128x128xbf16, #tpu.memory_space<vmem>>, vector<1x128x128xbf16>
    %155 = vector.shape_cast %154 : vector<1x128x128xbf16> to vector<128x128xbf16>
    %156 = vector.shape_cast %153 : vector<8x16x128xbf16> to vector<128x128xbf16>
    %cst_80 = arith.constant dense<0.000000e+00> : vector<128x128xf32>
    %157 = tpu.matmul %156, %155, %cst_80 {dimension_numbers = #tpu.dot_dimension_numbers<[1], [0], [0], [1], [0, 0, 1, 1], [], []>} : vector<128x128xbf16>, vector<128x128xbf16>, vector<128x128xf32> -> vector<128x128xf32>
    %158 = vector.shape_cast %157 : vector<128x128xf32> to vector<8x16x128xf32>
    %159 = arith.truncf %152 : vector<8x128xf32> to vector<8x128xbf16>
    %c5 = arith.constant 5 : index
    %c0_81 = arith.constant 0 : index
    %c0_82 = arith.constant 0 : index
    %160 = vector.load %arg4[%c5, %c0_81, %c0_82] : memref<6x128x128xbf16, #tpu.memory_space<vmem>>, vector<1x128x128xbf16>
    %161 = vector.shape_cast %160 : vector<1x128x128xbf16> to vector<128x128xbf16>
    %cst_83 = arith.constant dense<0.000000e+00> : vector<8x128xf32>
    %162 = tpu.matmul %159, %161, %cst_83 {dimension_numbers = #tpu.dot_dimension_numbers<[1], [0], [0], [1], [0, 0, 1, 1], [], []>} : vector<8x128xbf16>, vector<128x128xbf16>, vector<8x128xf32> -> vector<8x128xf32>
    %163 = vector.shape_cast %162 : vector<8x128xf32> to vector<8x1x128xf32>
    %164 = vector.broadcast %163 : vector<8x1x128xf32> to vector<8x16x128xf32>
    %165 = arith.addf %158, %164 : vector<8x16x128xf32>
    %c0_84 = arith.constant 0 : index
    %c0_85 = arith.constant 0 : index
    %c0_86 = arith.constant 0 : index
    %166 = vector.load %arg6[%c0_84, %c0_85, %c0_86] : memref<1x1x128xf32, #tpu.memory_space<vmem>>, vector<1x1x128xf32>
    %167 = vector.broadcast %166 : vector<1x1x128xf32> to vector<8x16x128xf32>
    %168 = arith.addf %165, %167 : vector<8x16x128xf32>
    %169 = vector.broadcast %7 : vector<8x16x1xf32> to vector<8x16x128xf32>
    %170 = arith.addf %168, %169 : vector<8x16x128xf32>
    %cst_87 = arith.constant dense<0xFF800000> : vector<8x128xf32>
    %171 = vector.multi_reduction <maximumf>, %170, %cst_87 [1] : vector<8x16x128xf32> to vector<8x128xf32>
    %172 = arith.mulf %171, %171 : vector<8x128xf32>
    %cst_88 = arith.constant dense<0.000000e+00> : vector<8xf32>
    %173 = vector.multi_reduction <add>, %172, %cst_88 [1] : vector<8x128xf32> to vector<8xf32>
    %174 = vector.shape_cast %173 : vector<8xf32> to vector<8x1xf32>
    %cst_89 = arith.constant 1.000000e-24 : f32
    %175 = vector.broadcast %cst_89 : f32 to vector<8x1xf32>
    %176 = arith.maximumf %174, %175 : vector<8x1xf32>
    %177 = math.rsqrt %176 : vector<8x1xf32>
    %178 = vector.broadcast %177 : vector<8x1xf32> to vector<8x128xf32>
    %179 = arith.mulf %171, %178 : vector<8x128xf32>
    %c0_90 = arith.constant 0 : index
    %c0_91 = arith.constant 0 : index
    %180 = vector.load %arg7[%c0_90, %c0_91] : memref<8x128xf32, #tpu.memory_space<vmem>>, vector<8x128xf32>
    tpu.vector_store %arg7[%c0_90, %c0_91], %179 {strides = array<i32>} : memref<8x128xf32, #tpu.memory_space<vmem>>, vector<8x128xf32>,
    return
  }
  func.func @transform_0(%arg0: i32) -> (i32, i32, i32) {
    %c0_i32 = arith.constant 0 : i32
    %c0_i32_0 = arith.constant 0 : i32
    %c0_i32_1 = arith.constant 0 : i32
    return %arg0, %c0_i32, %c0_i32_0 : i32, i32, i32
  }
  func.func @transform_1(%arg0: i32) -> (i32, i32) {
    %c0_i32 = arith.constant 0 : i32
    %c0_i32_0 = arith.constant 0 : i32
    return %arg0, %c0_i32 : i32, i32
  }
  func.func @transform_2(%arg0: i32) -> (i32, i32) {
    %c0_i32 = arith.constant 0 : i32
    %c0_i32_0 = arith.constant 0 : i32
    %c0_i32_1 = arith.constant 0 : i32
    return %c0_i32, %c0_i32_0 : i32, i32
  }
  func.func @transform_3(%arg0: i32) -> (i32, i32, i32) {
    %c0_i32 = arith.constant 0 : i32
    %c0_i32_0 = arith.constant 0 : i32
    %c0_i32_1 = arith.constant 0 : i32
    %c0_i32_2 = arith.constant 0 : i32
    return %c0_i32, %c0_i32_0, %c0_i32_1 : i32, i32, i32
  }
  func.func @transform_4(%arg0: i32) -> (i32, i32, i32, i32) {
    %c0_i32 = arith.constant 0 : i32
    %c0_i32_0 = arith.constant 0 : i32
    %c0_i32_1 = arith.constant 0 : i32
    %c0_i32_2 = arith.constant 0 : i32
    %c0_i32_3 = arith.constant 0 : i32
    return %c0_i32, %c0_i32_0, %c0_i32_1, %c0_i32_2 : i32, i32, i32, i32
  }
  func.func @transform_5(%arg0: i32) -> (i32, i32, i32) {
    %c0_i32 = arith.constant 0 : i32
    %c0_i32_0 = arith.constant 0 : i32
    %c0_i32_1 = arith.constant 0 : i32
    %c0_i32_2 = arith.constant 0 : i32
    return %c0_i32, %c0_i32_0, %c0_i32_1 : i32, i32, i32
  }
  func.func @transform_6(%arg0: i32) -> (i32, i32) {
    %c0_i32 = arith.constant 0 : i32
    %c0_i32_0 = arith.constant 0 : i32
    return %arg0, %c0_i32 : i32, i32
  }
}

</mosaic_0001>

<llo_original>
// kernel: tpu_custom_call.1
$region0: #{tpu_custom_call.1}
  #allocation0 [shape = 'u32[]', space=smem, size = 0x4, offset = 0x4, fixed_abs, tag = 'smem constant byte address 0x4 - core index']
  #allocation1 [shape = 'u32[144,128]{1,0:T(1,128)}', space=vmem, size = 0x12000, scoped, tag = 'internal scratch']
  %s0 = inlined_call_operand.vmem [shape: bf16[16,16,8], index: 0, kind: input, shape index: {}]
  %s1 = inlined_call_operand.vmem [shape: s32[16,1], index: 1, kind: input, shape index: {}]
  %s2 = inlined_call_operand.vmem [shape: bf16[8,128], index: 2, kind: input, shape index: {}]
  %s3 = inlined_call_operand.hbm [shape: bf16[6,128,128], index: 3, kind: input, shape index: {}]
  %s4 = inlined_call_operand.vmem [shape: f32[3,3,1,128], index: 4, kind: input, shape index: {}]
  %s5 = inlined_call_operand.vmem [shape: f32[1,1,128], index: 5, kind: input, shape index: {}]
  %s6 = inlined_call_operand.hbm [shape: f32[16,128], index: 6, kind: output, shape index: {}]
  %s7 = sld [smem:[#allocation0]]
  $region61: #{tpu_custom_call.1} parent=0
    _
  %s9 = ssub.s32 1, %s7
  %s10 = scalar_select 0, %s9, %s7
  $region1: #{tpu_custom_call.1} parent=0
    #allocation2 [shape = 'u8[196608]{0}', space=vmem, size = 0x30000, scoped, tag = 'input window, operand 3, single buffered']
    #allocation3 [shape = 's32[2]{0}', space=sflag, size = 0x8, scoped, tag = 'scoped memory for tpu_custom_call.1']
    #allocation4 [shape = 's32[2]{0}', space=sflag, size = 0x8, scoped, tag = 'scoped memory for tpu_custom_call.1']
    #allocation5 [shape = 'u8[8192]{0}', space=vmem, size = 0x2000, scoped, tag = 'output window, operand 0']
    %11 = vsyncpa [#allocation3], 0
    %12 = vsyncpa [#allocation4], 0
    %s13 = scalar_lea.sflag [#allocation4], 1
    %14 = vsyncpa %s13, 0
    loop: start=0, step=1, limit=4
    $region2: #{tpu_custom_call.1} parent=1 // loop_pre_header
      _
    $region3: #{tpu_custom_call.1} parent=1 // loop_header
      %s16 = sphi 0, %s20
      %p17 = scmp.ge.s32.totalorder %s16, 4
      %s26 = sphi 0, %s28
      %s29 = sphi 0, %s26
      %s30 = sphi 0, %s29
      %s46 = sphi 0, %s30
      %s52 = sphi 0, %s54
      %s55 = sphi 0, %s52
      %s56 = sphi 0, %s55
      %s72 = sphi 0, %s56
      %s76 = sphi 0, %s76
      %s78 = sphi 0, %s76
      %s79 = sphi 0, %s78
      %s93 = sphi 0, %s79
      %s97 = sphi 0, %s97
      %s99 = sphi 0, %s97
      %s100 = sphi 0, %s99
      %s114 = sphi 0, %s100
      %s118 = sphi 0, %s118
      %s120 = sphi 0, %s118
      %s121 = sphi 0, %s120
      %s135 = sphi 0, %s121
      %s139 = sphi 0, %s139
      %s141 = sphi 0, %s139
      %s142 = sphi 0, %s141
      %s156 = sphi 0, %s142
      %s162 = sphi 0, %s164
      %s165 = sphi 0, %s162
      %s166 = sphi 0, %s165
      %s182 = sphi 0, %s166
    $region4: #{tpu_custom_call.1} parent=1 // loop_header_branch
      %19 = sbr.rel (%p17) target = $region8
    $region5: #{tpu_custom_call.1} parent=1 // loop_body
      %s21 = ssub.s32 %s16, 1
      %s22 = ssub.s32 %s16, 2
      %s23 = sadd.s32 %s16, 1
      %s24 = ssub.s32 %s16, %s23
      %p25 = scmp.eq.s32.totalorder %s24, 0
      %s27 = sadd.s32 %s26, 1
      %s28 = scalar_select %p25, %s26, %s27
      %p31 = pneg %p25
      %p32 = scmp.eq.s32.totalorder %s16, 1
      %p33 = por %p31, %p32
      %p34 = scmp.ne.s32.totalorder %s26, %s29
      %p35 = scmp.eq.s32.totalorder %s16, 0
      %p36 = por %p34, %p35
      %p37 = scmp.ne.s32.totalorder %s26, %s29
      %p38 = scmp.eq.s32.totalorder %s21, 1
      %p39 = por %p37, %p38
      %p40 = scmp.ne.s32.totalorder %s29, %s30
      %p41 = scmp.eq.s32.totalorder %s21, 0
      %p42 = por %p40, %p41
      %p43 = scmp.ne.s32.totalorder %s29, %s30
      %p44 = scmp.eq.s32.totalorder %s22, 1
      %p45 = por %p43, %p44
      %p47 = scmp.ne.s32.totalorder %s30, %s46
      %p48 = scmp.eq.s32.totalorder %s22, 0
      %p49 = por %p47, %p48
      %s50 = ssub.s32 %s16, %s23
      %p51 = scmp.eq.s32.totalorder %s50, 0
      %s53 = sadd.s32 %s52, 1
      %s54 = scalar_select %p51, %s52, %s53
      %p57 = pneg %p51
      %p58 = scmp.eq.s32.totalorder %s16, 1
      %p59 = por %p57, %p58
      %p60 = scmp.ne.s32.totalorder %s52, %s55
      %p61 = scmp.eq.s32.totalorder %s16, 0
      %p62 = por %p60, %p61
      %p63 = scmp.ne.s32.totalorder %s52, %s55
      %p64 = scmp.eq.s32.totalorder %s21, 1
      %p65 = por %p63, %p64
      %p66 = scmp.ne.s32.totalorder %s55, %s56
      %p67 = scmp.eq.s32.totalorder %s21, 0
      %p68 = por %p66, %p67
      %p69 = scmp.ne.s32.totalorder %s55, %s56
      %p70 = scmp.eq.s32.totalorder %s22, 1
      %p71 = por %p69, %p70
      %p73 = scmp.ne.s32.totalorder %s56, %s72
      %p74 = scmp.eq.s32.totalorder %s22, 0
      %p75 = por %p73, %p74
      %s77 = sadd.s32 %s76, 1
      %p80 = scmp.eq.s32.totalorder %s16, 1
      %p81 = scmp.ne.s32.totalorder %s76, %s78
      %p82 = scmp.eq.s32.totalorder %s16, 0
      %p83 = por %p81, %p82
      %p84 = scmp.ne.s32.totalorder %s76, %s78
      %p85 = scmp.eq.s32.totalorder %s21, 1
      %p86 = por %p84, %p85
      %p87 = scmp.ne.s32.totalorder %s78, %s79
      %p88 = scmp.eq.s32.totalorder %s21, 0
      %p89 = por %p87, %p88
      %p90 = scmp.ne.s32.totalorder %s78, %s79
      %p91 = scmp.eq.s32.totalorder %s22, 1
      %p92 = por %p90, %p91
      %p94 = scmp.ne.s32.totalorder %s79, %s93
      %p95 = scmp.eq.s32.totalorder %s22, 0
      %p96 = por %p94, %p95
      %s98 = sadd.s32 %s97, 1
      %p101 = scmp.eq.s32.totalorder %s16, 1
      %p102 = scmp.ne.s32.totalorder %s97, %s99
      %p103 = scmp.eq.s32.totalorder %s16, 0
      %p104 = por %p102, %p103
      %p105 = scmp.ne.s32.totalorder %s97, %s99
      %p106 = scmp.eq.s32.totalorder %s21, 1
      %p107 = por %p105, %p106
      %p108 = scmp.ne.s32.totalorder %s99, %s100
      %p109 = scmp.eq.s32.totalorder %s21, 0
      %p110 = por %p108, %p109
      %p111 = scmp.ne.s32.totalorder %s99, %s100
      %p112 = scmp.eq.s32.totalorder %s22, 1
      %p113 = por %p111, %p112
      %p115 = scmp.ne.s32.totalorder %s100, %s114
      %p116 = scmp.eq.s32.totalorder %s22, 0
      %p117 = por %p115, %p116
      %s119 = sadd.s32 %s118, 1
      %p122 = scmp.eq.s32.totalorder %s16, 1
      %p123 = scmp.ne.s32.totalorder %s118, %s120
      %p124 = scmp.eq.s32.totalorder %s16, 0
      %p125 = por %p123, %p124
      %p126 = scmp.ne.s32.totalorder %s118, %s120
      %p127 = scmp.eq.s32.totalorder %s21, 1
      %p128 = por %p126, %p127
      %p129 = scmp.ne.s32.totalorder %s120, %s121
      %p130 = scmp.eq.s32.totalorder %s21, 0
      %p131 = por %p129, %p130
      %p132 = scmp.ne.s32.totalorder %s120, %s121
      %p133 = scmp.eq.s32.totalorder %s22, 1
      %p134 = por %p132, %p133
      %p136 = scmp.ne.s32.totalorder %s121, %s135
      %p137 = scmp.eq.s32.totalorder %s22, 0
      %p138 = por %p136, %p137
      %s140 = sadd.s32 %s139, 1
      %p143 = scmp.eq.s32.totalorder %s16, 1
      %p144 = scmp.ne.s32.totalorder %s139, %s141
      %p145 = scmp.eq.s32.totalorder %s16, 0
      %p146 = por %p144, %p145
      %p147 = scmp.ne.s32.totalorder %s139, %s141
      %p148 = scmp.eq.s32.totalorder %s21, 1
      %p149 = por %p147, %p148
      %p150 = scmp.ne.s32.totalorder %s141, %s142
      %p151 = scmp.eq.s32.totalorder %s21, 0
      %p152 = por %p150, %p151
      %p153 = scmp.ne.s32.totalorder %s141, %s142
      %p154 = scmp.eq.s32.totalorder %s22, 1
      %p155 = por %p153, %p154
      %p157 = scmp.ne.s32.totalorder %s142, %s156
      %p158 = scmp.eq.s32.totalorder %s22, 0
      %p159 = por %p157, %p158
      %s160 = ssub.s32 %s16, %s23
      %p161 = scmp.eq.s32.totalorder %s160, 0
      %s163 = sadd.s32 %s162, 1
      %s164 = scalar_select %p161, %s162, %s163
      %p167 = pneg %p161
      %p168 = scmp.eq.s32.totalorder %s16, 1
      %p169 = por %p167, %p168
      %p170 = scmp.ne.s32.totalorder %s162, %s165
      %p171 = scmp.eq.s32.totalorder %s16, 0
      %p172 = por %p170, %p171
      %p173 = scmp.ne.s32.totalorder %s162, %s165
      %p174 = scmp.eq.s32.totalorder %s21, 1
      %p175 = por %p173, %p174
      %p176 = scmp.ne.s32.totalorder %s165, %s166
      %p177 = scmp.eq.s32.totalorder %s21, 0
      %p178 = por %p176, %p177
      %p179 = scmp.ne.s32.totalorder %s165, %s166
      %p180 = scmp.eq.s32.totalorder %s22, 1
      %p181 = por %p179, %p180
      %p183 = scmp.ne.s32.totalorder %s166, %s182
      %p184 = scmp.eq.s32.totalorder %s22, 0
      %p185 = por %p183, %p184
      %p186 = scmp.le.s32.totalorder 1, %s16
      %p187 = scmp.lt.s32.totalorder %s16, 3
      %p188 = pnand %p186, %p187
      %p189 = pneg %p188
      // Predicated region
      $region9: #{tpu_custom_call.1} parent=5 // pred_check
        _
      $region10: #{tpu_custom_call.1} parent=5 // pred_check_branch
        %191 = sbr.rel (%p188) target = $region12
      $region11: #{tpu_custom_call.1} parent=5 // pred_region
        %s192 = ssub.s32 %s16, 1
        // Predicated region
        $region13: #{tpu_custom_call.1} parent=11 // pred_check
          %p193 = pneg %p89
        $region14: #{tpu_custom_call.1} parent=11 // pred_check_branch
          %195 = sbr.rel (%p193) target = $region16
        $region15: #{tpu_custom_call.1} parent=11 // pred_region
          _
        $region16: #{tpu_custom_call.1} parent=11 // pred_fallthru
          _
        // Predicated region
        $region17: #{tpu_custom_call.1} parent=11 // pred_check
          %p196 = pneg %p110
        $region18: #{tpu_custom_call.1} parent=11 // pred_check_branch
          %198 = sbr.rel (%p196) target = $region20
        $region19: #{tpu_custom_call.1} parent=11 // pred_region
          %s200 = ssub.s32 6144, 6144
          %201 = vsyncadd [#allocation3], %s200
          %s202 = sshll.u32 [#allocation2], 4
          %s203 = int_to_ptr.vmem [resolvable:$true] %s202
          %208 = dma.hbm_to_vmem [thread:$0]  %s3, 6144, %s203, [#allocation3], 64, 64, 4
        $region20: #{tpu_custom_call.1} parent=11 // pred_fallthru
          _
        // Predicated region
        $region21: #{tpu_custom_call.1} parent=11 // pred_check
          %p209 = pneg %p131
        $region22: #{tpu_custom_call.1} parent=11 // pred_check_branch
          %211 = sbr.rel (%p209) target = $region24
        $region23: #{tpu_custom_call.1} parent=11 // pred_region
          _
        $region24: #{tpu_custom_call.1} parent=11 // pred_fallthru
          _
        // Predicated region
        $region25: #{tpu_custom_call.1} parent=11 // pred_check
          %p212 = pneg %p152
        $region26: #{tpu_custom_call.1} parent=11 // pred_check_branch
          %214 = sbr.rel (%p212) target = $region28
        $region27: #{tpu_custom_call.1} parent=11 // pred_region
          _
        $region28: #{tpu_custom_call.1} parent=11 // pred_fallthru
          _
      $region12: #{tpu_custom_call.1} parent=5 // pred_fallthru
        _
      %p215 = scmp.lt.s32.totalorder %s16, 2
      // Predicated region
      $region29: #{tpu_custom_call.1} parent=5 // pred_check
        %p216 = pneg %p215
      $region30: #{tpu_custom_call.1} parent=5 // pred_check_branch
        %218 = sbr.rel (%p216) target = $region32
      $region31: #{tpu_custom_call.1} parent=5 // pred_region
        // Predicated region
        $region33: #{tpu_custom_call.1} parent=31 // pred_check
          %p219 = pneg %p36
        $region34: #{tpu_custom_call.1} parent=31 // pred_check_branch
          %221 = sbr.rel (%p219) target = $region36
        $region35: #{tpu_custom_call.1} parent=31 // pred_region
          %s222 = smul.u32 8, %s16
          %p223 = scmp.lt.s32.totalorder %s222, 15
          %s224 = scalar_select %p223, %s222, 15
          %s225 = smul.addr %s224, 2
          %s226 = smul.addr %s225, 4
          %s227 = scalar_lea.vmem %s0, %s226
          %s228 = smul.u32 8, %s16
        $region36: #{tpu_custom_call.1} parent=31 // pred_fallthru
          _
        // Predicated region
        $region37: #{tpu_custom_call.1} parent=31 // pred_check
          %p229 = pneg %p62
        $region38: #{tpu_custom_call.1} parent=31 // pred_check_branch
          %231 = sbr.rel (%p229) target = $region40
        $region39: #{tpu_custom_call.1} parent=31 // pred_region
          %p232 = scmp.lt.s32.totalorder %s16, 1
          %s233 = scalar_select %p232, %s16, 1
          %s234 = smul.addr %s233, 8
          %s235 = scalar_lea.vmem %s1, %s234
        $region40: #{tpu_custom_call.1} parent=31 // pred_fallthru
          _
      $region32: #{tpu_custom_call.1} parent=5 // pred_fallthru
        _
      %p236 = scmp.le.s32.totalorder 1, %s16
      %p237 = scmp.lt.s32.totalorder %s16, 3
      %p238 = pnand %p236, %p237
      %p239 = pneg %p238
      // Predicated region
      $region41: #{tpu_custom_call.1} parent=5 // pred_check
        _
      $region42: #{tpu_custom_call.1} parent=5 // pred_check_branch
        %241 = sbr.rel (%p238) target = $region44
      $region43: #{tpu_custom_call.1} parent=5 // pred_region
        %s242 = ssub.s32 %s16, 1
        // Predicated region
        $region45: #{tpu_custom_call.1} parent=43 // pred_check
          %p243 = pneg %p110
        $region46: #{tpu_custom_call.1} parent=43 // pred_check_branch
          %245 = sbr.rel (%p243) target = $region48
        $region47: #{tpu_custom_call.1} parent=43 // pred_region
          %246 = dma.done [#allocation3], 6144
        $region48: #{tpu_custom_call.1} parent=43 // pred_fallthru
          _
        %s247 = smul.u32 8, %s21
        %p248 = scmp.lt.s32.totalorder %s247, 15
        %s249 = scalar_select %p248, %s247, 15
        %s250 = smul.addr %s249, 2
        %s251 = smul.addr %s250, 4
        %s252 = scalar_lea.vmem %s0, %s251
        %p253 = pneg %p42
        %p254 = pneg %p39
        %p255 = scmp.lt.s32.totalorder %s21, 1
        %s256 = scalar_select %p255, %s21, 1
        %s257 = smul.addr %s256, 8
        %s258 = scalar_lea.vmem %s1, %s257
        %p259 = pneg %p68
        %p260 = pneg %p65
        %p261 = pneg %p89
        %p262 = pneg %p86
        %p263 = pneg %p110
        %p264 = pneg %p107
        %p265 = pneg %p131
        %p266 = pneg %p128
        %p267 = pneg %p152
        %p268 = pneg %p149
        %p269 = pneg %p178
        %p270 = pneg %p175
        %s271 = sand.u32 %s165, 1
        %s272 = scalar_lea.sflag [#allocation4], %s271
        %s273 = sand.u32 %s165, 1
        %s274 = smul.addr %s273, 8
        %s275 = scalar_lea.vmem [#allocation5], %s274
        %s276 = smul.u32 8, %s21
        %p277 = scmp.lt.s32.totalorder %s276, 15
        %s278 = scalar_select %p277, %s276, 15
        %s279 = smul.addr %s278, 2
        %s280 = smul.addr %s279, 4
        %s281 = scalar_lea.vmem %s0, %s280
        %s282 = smul.u32 8, %s21
        %p283 = scmp.lt.s32.totalorder %s21, 1
        %s284 = scalar_select %p283, %s21, 1
        %s285 = smul.addr %s284, 8
        %s286 = scalar_lea.vmem %s1, %s285
        %v288 = vld [vmem:[%s286] sm:$0xff]
        %v289 = vlaneseq
        %v290 = vshrl.u32 %v289, 7
        %v291 = vadd.s32 %v290, 8
        %v292 = vcombine.high %v288, %v288
        %v294 = vunpack.c.l.s4 1966171168
        %v295 = vunpack.c.0.s8 %v294
        %v296 = vlaneseq
        %v297 = vshrl.u32 %v296, 7
        %v298 = vsub.s32 %v295, %v297
        %v299 = vrot.slane %v288, %v298
        %v301 = vunpack.c.l.s4 1966171168
        %v302 = vunpack.c.0.s8 %v301
        %v303 = vlaneseq
        %v304 = vshrl.u32 %v303, 7
        %v305 = vsub.s32 %v302, %v304
        %v306 = vrot.slane %v292, %v305
        %v307 = vcombine.high %v299, %v299
        %v308 = vcombine.high %v306, %v306
        %v310 = vunpack.c.l.s4 1966171168
        %v311 = vunpack.c.0.s8 %v310
        %v312 = vlaneseq
        %v313 = vshrl.u32 %v312, 7
        %v314 = vsub.s32 %v311, %v313
        %v315 = vrot.slane %v299, %v314
        %v317 = vunpack.c.l.s4 1966171168
        %v318 = vunpack.c.0.s8 %v317
        %v319 = vlaneseq
        %v320 = vshrl.u32 %v319, 7
        %v321 = vsub.s32 %v318, %v320
        %v322 = vrot.slane %v306, %v321
        %v324 = vunpack.c.l.s4 1966171168
        %v325 = vunpack.c.0.s8 %v324
        %v326 = vlaneseq
        %v327 = vshrl.u32 %v326, 7
        %v328 = vsub.s32 %v325, %v327
        %v329 = vrot.slane %v307, %v328
        %v331 = vunpack.c.l.s4 1966171168
        %v332 = vunpack.c.0.s8 %v331
        %v333 = vlaneseq
        %v334 = vshrl.u32 %v333, 7
        %v335 = vsub.s32 %v332, %v334
        %v336 = vrot.slane %v308, %v335
        %v337 = vcombine.high %v315, %v315
        %v338 = vcombine.high %v322, %v322
        %v339 = vcombine.high %v329, %v329
        %v340 = vcombine.high %v336, %v336
        %v341 = vlaneseq
        %v342 = vshrl.u32 %v341, 7
        %v343 = vsub.s32 0, %v342
        %v344 = vrot.slane %v315, %v343
        %v345 = vlaneseq
        %v346 = vshrl.u32 %v345, 7
        %v347 = vsub.s32 0, %v346
        %v348 = vrot.slane %v329, %v347
        %v349 = vlaneseq
        %v350 = vshrl.u32 %v349, 7
        %v351 = vsub.s32 0, %v350
        %v352 = vrot.slane %v337, %v351
        %v353 = vlaneseq
        %v354 = vshrl.u32 %v353, 7
        %v355 = vsub.s32 0, %v354
        %v356 = vrot.slane %v339, %v355
        %v357 = vlaneseq
        %v358 = vshrl.u32 %v357, 7
        %v359 = vsub.s32 0, %v358
        %v360 = vrot.slane %v322, %v359
        %v361 = vlaneseq
        %v362 = vshrl.u32 %v361, 7
        %v363 = vsub.s32 0, %v362
        %v364 = vrot.slane %v336, %v363
        %v365 = vlaneseq
        %v366 = vshrl.u32 %v365, 7
        %v367 = vsub.s32 0, %v366
        %v368 = vrot.slane %v338, %v367
        %v369 = vlaneseq
        %v370 = vshrl.u32 %v369, 7
        %v371 = vsub.s32 0, %v370
        %v372 = vrot.slane %v340, %v371
        %vm373 = vcmp.lt.s32.totalorder %v290, %v344
        %vm374 = vcmp.lt.s32.totalorder %v291, %v344
        %vm375 = vcmp.lt.s32.totalorder %v290, %v348
        %vm376 = vcmp.lt.s32.totalorder %v291, %v348
        %vm377 = vcmp.lt.s32.totalorder %v290, %v352
        %vm378 = vcmp.lt.s32.totalorder %v291, %v352
        %vm379 = vcmp.lt.s32.totalorder %v290, %v356
        %vm380 = vcmp.lt.s32.totalorder %v291, %v356
        %vm381 = vcmp.lt.s32.totalorder %v290, %v360
        %vm382 = vcmp.lt.s32.totalorder %v291, %v360
        %vm383 = vcmp.lt.s32.totalorder %v290, %v364
        %vm384 = vcmp.lt.s32.totalorder %v291, %v364
        %vm385 = vcmp.lt.s32.totalorder %v290, %v368
        %vm386 = vcmp.lt.s32.totalorder %v291, %v368
        %vm387 = vcmp.lt.s32.totalorder %v290, %v372
        %vm388 = vcmp.lt.s32.totalorder %v291, %v372
        %v389 = vsel %vm373, 0.0, -1e+30
        %v390 = vsel %vm374, 0.0, -1e+30
        %v391 = vsel %vm375, 0.0, -1e+30
        %v392 = vsel %vm376, 0.0, -1e+30
        %v393 = vsel %vm377, 0.0, -1e+30
        %v394 = vsel %vm378, 0.0, -1e+30
        %v395 = vsel %vm379, 0.0, -1e+30
        %v396 = vsel %vm380, 0.0, -1e+30
        %v397 = vsel %vm381, 0.0, -1e+30
        %v398 = vsel %vm382, 0.0, -1e+30
        %v399 = vsel %vm383, 0.0, -1e+30
        %v400 = vsel %vm384, 0.0, -1e+30
        %v401 = vsel %vm385, 0.0, -1e+30
        %v402 = vsel %vm386, 0.0, -1e+30
        %v403 = vsel %vm387, 0.0, -1e+30
        %v404 = vsel %vm388, 0.0, -1e+30
        %v405 = vld [vmem:[%s281] sm:$0xf]
        %v406 = vld [vmem:[%s281 + $0x4] sm:$0xf]
        %v407 = vld [vmem:[%s281 + $0x8] sm:$0xf]
        %v408 = vld [vmem:[%s281 + $0xc] sm:$0xf]
        %v409 = vld [vmem:[%s281 + $0x10] sm:$0xf]
        %v410 = vld [vmem:[%s281 + $0x14] sm:$0xf]
        %v411 = vld [vmem:[%s281 + $0x18] sm:$0xf]
        %v412 = vld [vmem:[%s281 + $0x1c] sm:$0xf]
        %v413 = vld [vmem:[%s281 + $0x20] sm:$0xf]
        %v414 = vld [vmem:[%s281 + $0x24] sm:$0xf]
        %v415 = vld [vmem:[%s281 + $0x28] sm:$0xf]
        %v416 = vld [vmem:[%s281 + $0x2c] sm:$0xf]
        %v417 = vld [vmem:[%s281 + $0x30] sm:$0xf]
        %v418 = vld [vmem:[%s281 + $0x34] sm:$0xf]
        %v419 = vld [vmem:[%s281 + $0x38] sm:$0xf]
        %v420 = vld [vmem:[%s281 + $0x3c] sm:$0xf]
        %v421 = vld [vmem:[%s2] sm:$0xf]
        %v438 = vunpack.c.l.b16 %v405
        %v439 = vunpack.c.l.b16 %v406
        %v440 = vunpack.c.l.b16 %v407
        %v441 = vunpack.c.l.b16 %v408
        %v442 = vunpack.c.l.b16 %v409
        %v443 = vunpack.c.l.b16 %v410
        %v444 = vunpack.c.l.b16 %v411
        %v445 = vunpack.c.l.b16 %v412
        %v446 = vunpack.c.l.b16 %v413
        %v447 = vunpack.c.l.b16 %v414
        %v448 = vunpack.c.l.b16 %v415
        %v449 = vunpack.c.l.b16 %v416
        %v450 = vunpack.c.l.b16 %v417
        %v451 = vunpack.c.l.b16 %v418
        %v452 = vunpack.c.l.b16 %v419
        %v453 = vunpack.c.l.b16 %v420
        %v454 = vpack.c.b16 %v439, %v438
        %v455 = vpack.c.b16 %v441, %v440
        %v456 = vpack.c.b16 %v443, %v442
        %v457 = vpack.c.b16 %v445, %v444
        %v458 = vpack.c.b16 %v447, %v446
        %v459 = vpack.c.b16 %v449, %v448
        %v460 = vpack.c.b16 %v451, %v450
        %v461 = vpack.c.b16 %v453, %v452
        %vm462 = vcmask 64512
        %v464 = vsel %vm462, %v454, 0
        %v467 = vsel %vm462, %v455, 0
        %v470 = vsel %vm462, %v456, 0
        %v473 = vsel %vm462, %v457, 0
        %v476 = vsel %vm462, %v458, 0
        %v479 = vsel %vm462, %v459, 0
        %v482 = vsel %vm462, %v460, 0
        %v485 = vsel %vm462, %v461, 0
        %vm487 = vcmask 1043456
        %v489 = vsel %vm487, %v421, 0
        %491 = vmatprep.subr.bf16.mxu0 0
        %492 = vmatpush1.bf16.msra.mxu0 0
        %493 = vmatprep.subr.bf16.mxu0 0
        %494 = vmatpush1.bf16.msra.mxu0 0
        %495 = vmatprep.subr.bf16.mxu0 0
        %496 = vmatpush1.bf16.msra.mxu0 0
        %497 = vmatprep.subr.bf16.mxu0 0
        %498 = vmatpush1.bf16.msra.mxu0 0
        %499 = vmatprep.subr.bf16.mxu0 0
        %500 = vmatpush1.bf16.msra.mxu0 0
        %501 = vmatprep.subr.bf16.mxu0 0
        %502 = vmatpush1.bf16.msra.mxu0 0
        %503 = vmatprep.subr.bf16.mxu0 0
        %504 = vmatpush1.bf16.msra.mxu0 0
        %505 = vmatprep.subr.bf16.mxu0 0
        %506 = vmatpush1.bf16.msra.mxu0 %v489
        %507 = vmatprep.subr.bf16.mxu0 0
        %508 = vmatpush2.bf16.msra.mxu0 0
        %509 = vmatprep.subr.bf16.mxu0 0
        %510 = vmatpush2.bf16.msra.mxu0 0
        %511 = vmatprep.subr.bf16.mxu0 0
        %512 = vmatpush2.bf16.msra.mxu0 0
        %513 = vmatprep.subr.bf16.mxu0 0
        %514 = vmatpush2.bf16.msra.mxu0 0
        %515 = vmatprep.subr.bf16.mxu0 0
        %516 = vmatpush2.bf16.msra.mxu0 0
        %517 = vmatprep.subr.bf16.mxu0 0
        %518 = vmatpush2.bf16.msra.mxu0 0
        %519 = vmatprep.subr.bf16.mxu0 0
        %520 = vmatpush2.bf16.msra.mxu0 0
        %521 = vmatprep.subr.bf16.mxu0 0
        %522 = vmatpush2.bf16.msra.mxu0 0
        %523 = vmatprep.mubr.bf16.mxu0 0
        %524 = vmatmul.mubr.bf16.gmra.mxu0 %v464
        %v525 = vpop.f32.mrf.mxu0
        %v526 = vadd.f32 0.0, %v525
        %v527 = vpop.f32.mrf.mxu0
        %v528 = vpop.f32.mrf.mxu0
        %v529 = vadd.f32 0.0, %v528
        %v530 = vpop.f32.mrf.mxu0
        %531 = vmatprep.mubr.bf16.mxu0 0
        %532 = vmatmul.mubr.bf16.gmra.mxu0 %v467
        %v533 = vpop.f32.mrf.mxu0
        %v534 = vadd.f32 0.0, %v533
        %v535 = vpop.f32.mrf.mxu0
        %v536 = vpop.f32.mrf.mxu0
        %v537 = vadd.f32 0.0, %v536
        %v538 = vpop.f32.mrf.mxu0
        %539 = vmatprep.mubr.bf16.mxu0 0
        %540 = vmatmul.mubr.bf16.gmra.mxu0 %v470
        %v541 = vpop.f32.mrf.mxu0
        %v542 = vadd.f32 0.0, %v541
        %v543 = vpop.f32.mrf.mxu0
        %v544 = vpop.f32.mrf.mxu0
        %v545 = vadd.f32 0.0, %v544
        %v546 = vpop.f32.mrf.mxu0
        %547 = vmatprep.mubr.bf16.mxu0 0
        %548 = vmatmul.mubr.bf16.gmra.mxu0 %v473
        %v549 = vpop.f32.mrf.mxu0
        %v550 = vadd.f32 0.0, %v549
        %v551 = vpop.f32.mrf.mxu0
        %v552 = vpop.f32.mrf.mxu0
        %v553 = vadd.f32 0.0, %v552
        %v554 = vpop.f32.mrf.mxu0
        %555 = vmatprep.mubr.bf16.mxu0 0
        %556 = vmatmul.mubr.bf16.gmra.mxu0 %v476
        %v557 = vpop.f32.mrf.mxu0
        %v558 = vadd.f32 0.0, %v557
        %v559 = vpop.f32.mrf.mxu0
        %v560 = vpop.f32.mrf.mxu0
        %v561 = vadd.f32 0.0, %v560
        %v562 = vpop.f32.mrf.mxu0
        %563 = vmatprep.mubr.bf16.mxu0 0
        %564 = vmatmul.mubr.bf16.gmra.mxu0 %v479
        %v565 = vpop.f32.mrf.mxu0
        %v566 = vadd.f32 0.0, %v565
        %v567 = vpop.f32.mrf.mxu0
        %v568 = vpop.f32.mrf.mxu0
        %v569 = vadd.f32 0.0, %v568
        %v570 = vpop.f32.mrf.mxu0
        %571 = vmatprep.mubr.bf16.mxu0 0
        %572 = vmatmul.mubr.bf16.gmra.mxu0 %v482
        %v573 = vpop.f32.mrf.mxu0
        %v574 = vadd.f32 0.0, %v573
        %v575 = vpop.f32.mrf.mxu0
        %v576 = vpop.f32.mrf.mxu0
        %v577 = vadd.f32 0.0, %v576
        %v578 = vpop.f32.mrf.mxu0
        %579 = vmatprep.mubr.bf16.mxu0 0
        %580 = vmatmul.mubr.bf16.gmra.mxu0 %v485
        %v581 = vpop.f32.mrf.mxu0
        %v582 = vadd.f32 0.0, %v581
        %v583 = vpop.f32.mrf.mxu0
        %v584 = vpop.f32.mrf.mxu0
        %v585 = vadd.f32 0.0, %v584
        %v586 = vpop.f32.mrf.mxu0
        %587 = vdwg.mxu0
        %v588 = vld [vmem:[%s4] sm:$0x1]
        %s589 = scalar_lea.vmem %s4, 1
        %v590 = vld [vmem:[%s589] sm:$0x1]
        %s591 = scalar_lea.vmem %s4, 2
        %v592 = vld [vmem:[%s591] sm:$0x1]
        %v594 = vlaneseq
        %v595 = vshrl.u32 %v594, 7
        %v596 = vsub.s32 0, %v595
        %v597 = vrot.slane %v588, %v596
        %v599 = vadd.f32 %v526, %v597
        %v600 = vadd.f32 %v529, %v597
        %v601 = vadd.f32 %v534, %v597
        %v602 = vadd.f32 %v537, %v597
        %v603 = vadd.f32 %v542, %v597
        %v604 = vadd.f32 %v545, %v597
        %v605 = vadd.f32 %v550, %v597
        %v606 = vadd.f32 %v553, %v597
        %v607 = vadd.f32 %v558, %v597
        %v608 = vadd.f32 %v561, %v597
        %v609 = vadd.f32 %v566, %v597
        %v610 = vadd.f32 %v569, %v597
        %v611 = vadd.f32 %v574, %v597
        %v612 = vadd.f32 %v577, %v597
        %v613 = vadd.f32 %v582, %v597
        %v614 = vadd.f32 %v585, %v597
        %615 = vadd.xlane.f32.xlu0 %v599
        %v616 = vpop.xlane.xlu0 %615
        %617 = vadd.xlane.f32.xlu0 %v600
        %v618 = vpop.xlane.xlu0 %617
        %619 = vadd.xlane.f32.xlu0 %v601
        %v620 = vpop.xlane.xlu0 %619
        %621 = vadd.xlane.f32.xlu0 %v602
        %v622 = vpop.xlane.xlu0 %621
        %623 = vadd.xlane.f32.xlu0 %v603
        %v624 = vpop.xlane.xlu0 %623
        %625 = vadd.xlane.f32.xlu0 %v604
        %v626 = vpop.xlane.xlu0 %625
        %627 = vadd.xlane.f32.xlu0 %v605
        %v628 = vpop.xlane.xlu0 %627
        %629 = vadd.xlane.f32.xlu0 %v606
        %v630 = vpop.xlane.xlu0 %629
        %631 = vadd.xlane.f32.xlu0 %v607
        %v632 = vpop.xlane.xlu0 %631
        %633 = vadd.xlane.f32.xlu0 %v608
        %v634 = vpop.xlane.xlu0 %633
        %635 = vadd.xlane.f32.xlu0 %v609
        %v636 = vpop.xlane.xlu0 %635
        %637 = vadd.xlane.f32.xlu0 %v610
        %v638 = vpop.xlane.xlu0 %637
        %639 = vadd.xlane.f32.xlu0 %v611
        %v640 = vpop.xlane.xlu0 %639
        %641 = vadd.xlane.f32.xlu0 %v612
        %v642 = vpop.xlane.xlu0 %641
        %643 = vadd.xlane.f32.xlu0 %v613
        %v644 = vpop.xlane.xlu0 %643
        %645 = vadd.xlane.f32.xlu0 %v614
        %v646 = vpop.xlane.xlu0 %645
        %v647 = vmul.f32 %v616, 0.015625
        %v648 = vmul.f32 %v618, 0.015625
        %v649 = vmul.f32 %v620, 0.015625
        %v650 = vmul.f32 %v622, 0.015625
        %v651 = vmul.f32 %v624, 0.015625
        %v652 = vmul.f32 %v626, 0.015625
        %v653 = vmul.f32 %v628, 0.015625
        %v654 = vmul.f32 %v630, 0.015625
        %v655 = vmul.f32 %v632, 0.015625
        %v656 = vmul.f32 %v634, 0.015625
        %v657 = vmul.f32 %v636, 0.015625
        %v658 = vmul.f32 %v638, 0.015625
        %v659 = vmul.f32 %v640, 0.015625
        %v660 = vmul.f32 %v642, 0.015625
        %v661 = vmul.f32 %v644, 0.015625
        %v662 = vmul.f32 %v646, 0.015625
        %v663 = vmul.f32 %v599, %v599
        %v664 = vmul.f32 %v600, %v600
        %v665 = vmul.f32 %v601, %v601
        %v666 = vmul.f32 %v602, %v602
        %v667 = vmul.f32 %v603, %v603
        %v668 = vmul.f32 %v604, %v604
        %v669 = vmul.f32 %v605, %v605
        %v670 = vmul.f32 %v606, %v606
        %v671 = vmul.f32 %v607, %v607
        %v672 = vmul.f32 %v608, %v608
        %v673 = vmul.f32 %v609, %v609
        %v674 = vmul.f32 %v610, %v610
        %v675 = vmul.f32 %v611, %v611
        %v676 = vmul.f32 %v612, %v612
        %v677 = vmul.f32 %v613, %v613
        %v678 = vmul.f32 %v614, %v614
        %679 = vadd.xlane.f32.xlu0 %v663
        %v680 = vpop.xlane.xlu0 %679
        %681 = vadd.xlane.f32.xlu0 %v664
        %v682 = vpop.xlane.xlu0 %681
        %683 = vadd.xlane.f32.xlu0 %v665
        %v684 = vpop.xlane.xlu0 %683
        %685 = vadd.xlane.f32.xlu0 %v666
        %v686 = vpop.xlane.xlu0 %685
        %687 = vadd.xlane.f32.xlu0 %v667
        %v688 = vpop.xlane.xlu0 %687
        %689 = vadd.xlane.f32.xlu0 %v668
        %v690 = vpop.xlane.xlu0 %689
        %691 = vadd.xlane.f32.xlu0 %v669
        %v692 = vpop.xlane.xlu0 %691
        %693 = vadd.xlane.f32.xlu0 %v670
        %v694 = vpop.xlane.xlu0 %693
        %695 = vadd.xlane.f32.xlu0 %v671
        %v696 = vpop.xlane.xlu0 %695
        %697 = vadd.xlane.f32.xlu0 %v672
        %v698 = vpop.xlane.xlu0 %697
        %699 = vadd.xlane.f32.xlu0 %v673
        %v700 = vpop.xlane.xlu0 %699
        %701 = vadd.xlane.f32.xlu0 %v674
        %v702 = vpop.xlane.xlu0 %701
        %703 = vadd.xlane.f32.xlu0 %v675
        %v704 = vpop.xlane.xlu0 %703
        %705 = vadd.xlane.f32.xlu0 %v676
        %v706 = vpop.xlane.xlu0 %705
        %707 = vadd.xlane.f32.xlu0 %v677
        %v708 = vpop.xlane.xlu0 %707
        %709 = vadd.xlane.f32.xlu0 %v678
        %v710 = vpop.xlane.xlu0 %709
        %v711 = vmul.f32 %v680, 0.015625
        %v712 = vmul.f32 %v682, 0.015625
        %v713 = vmul.f32 %v684, 0.015625
        %v714 = vmul.f32 %v686, 0.015625
        %v715 = vmul.f32 %v688, 0.015625
        %v716 = vmul.f32 %v690, 0.015625
        %v717 = vmul.f32 %v692, 0.015625
        %v718 = vmul.f32 %v694, 0.015625
        %v719 = vmul.f32 %v696, 0.015625
        %v720 = vmul.f32 %v698, 0.015625
        %v721 = vmul.f32 %v700, 0.015625
        %v722 = vmul.f32 %v702, 0.015625
        %v723 = vmul.f32 %v704, 0.015625
        %v724 = vmul.f32 %v706, 0.015625
        %v725 = vmul.f32 %v708, 0.015625
        %v726 = vmul.f32 %v710, 0.015625
        %v727 = vmul.f32 %v647, %v647
        %v728 = vmul.f32 %v648, %v648
        %v729 = vmul.f32 %v649, %v649
        %v730 = vmul.f32 %v650, %v650
        %v731 = vmul.f32 %v651, %v651
        %v732 = vmul.f32 %v652, %v652
        %v733 = vmul.f32 %v653, %v653
        %v734 = vmul.f32 %v654, %v654
        %v735 = vmul.f32 %v655, %v655
        %v736 = vmul.f32 %v656, %v656
        %v737 = vmul.f32 %v657, %v657
        %v738 = vmul.f32 %v658, %v658
        %v739 = vmul.f32 %v659, %v659
        %v740 = vmul.f32 %v660, %v660
        %v741 = vmul.f32 %v661, %v661
        %v742 = vmul.f32 %v662, %v662
        %v743 = vsub.f32 %v711, %v727
        %v744 = vsub.f32 %v712, %v728
        %v745 = vsub.f32 %v713, %v729
        %v746 = vsub.f32 %v714, %v730
        %v747 = vsub.f32 %v715, %v731
        %v748 = vsub.f32 %v716, %v732
        %v749 = vsub.f32 %v717, %v733
        %v750 = vsub.f32 %v718, %v734
        %v751 = vsub.f32 %v719, %v735
        %v752 = vsub.f32 %v720, %v736
        %v753 = vsub.f32 %v721, %v737
        %v754 = vsub.f32 %v722, %v738
        %v755 = vsub.f32 %v723, %v739
        %v756 = vsub.f32 %v724, %v740
        %v757 = vsub.f32 %v725, %v741
        %v758 = vsub.f32 %v726, %v742
        %v759 = vsub.f32 %v599, %v647
        %v760 = vsub.f32 %v600, %v648
        %v761 = vsub.f32 %v601, %v649
        %v762 = vsub.f32 %v602, %v650
        %v763 = vsub.f32 %v603, %v651
        %v764 = vsub.f32 %v604, %v652
        %v765 = vsub.f32 %v605, %v653
        %v766 = vsub.f32 %v606, %v654
        %v767 = vsub.f32 %v607, %v655
        %v768 = vsub.f32 %v608, %v656
        %v769 = vsub.f32 %v609, %v657
        %v770 = vsub.f32 %v610, %v658
        %v771 = vsub.f32 %v611, %v659
        %v772 = vsub.f32 %v612, %v660
        %v773 = vsub.f32 %v613, %v661
        %v774 = vsub.f32 %v614, %v662
        %v775 = vadd.f32 %v743, 1e-05
        %v776 = vadd.f32 %v744, 1e-05
        %v777 = vadd.f32 %v745, 1e-05
        %v778 = vadd.f32 %v746, 1e-05
        %v779 = vadd.f32 %v747, 1e-05
        %v780 = vadd.f32 %v748, 1e-05
        %v781 = vadd.f32 %v749, 1e-05
        %v782 = vadd.f32 %v750, 1e-05
        %v783 = vadd.f32 %v751, 1e-05
        %v784 = vadd.f32 %v752, 1e-05
        %v785 = vadd.f32 %v753, 1e-05
        %v786 = vadd.f32 %v754, 1e-05
        %v787 = vadd.f32 %v755, 1e-05
        %v788 = vadd.f32 %v756, 1e-05
        %v789 = vadd.f32 %v757, 1e-05
        %v790 = vadd.f32 %v758, 1e-05
        %v791 = vrsqrt.pop %v775
        %v792 = vrsqrt.pop %v776
        %v793 = vrsqrt.pop %v777
        %v794 = vrsqrt.pop %v778
        %v795 = vrsqrt.pop %v779
        %v796 = vrsqrt.pop %v780
        %v797 = vrsqrt.pop %v781
        %v798 = vrsqrt.pop %v782
        %v799 = vrsqrt.pop %v783
        %v800 = vrsqrt.pop %v784
        %v801 = vrsqrt.pop %v785
        %v802 = vrsqrt.pop %v786
        %v803 = vrsqrt.pop %v787
        %v804 = vrsqrt.pop %v788
        %v805 = vrsqrt.pop %v789
        %v806 = vrsqrt.pop %v790
        %v807 = vmul.f32 %v759, %v791
        %v808 = vmul.f32 %v760, %v792
        %v809 = vmul.f32 %v761, %v793
        %v810 = vmul.f32 %v762, %v794
        %v811 = vmul.f32 %v763, %v795
        %v812 = vmul.f32 %v764, %v796
        %v813 = vmul.f32 %v765, %v797
        %v814 = vmul.f32 %v766, %v798
        %v815 = vmul.f32 %v767, %v799
        %v816 = vmul.f32 %v768, %v800
        %v817 = vmul.f32 %v769, %v801
        %v818 = vmul.f32 %v770, %v802
        %v819 = vmul.f32 %v771, %v803
        %v820 = vmul.f32 %v772, %v804
        %v821 = vmul.f32 %v773, %v805
        %v822 = vmul.f32 %v774, %v806
        %v824 = vlaneseq
        %v825 = vshrl.u32 %v824, 7
        %v826 = vsub.s32 0, %v825
        %v827 = vrot.slane %v590, %v826
        %v829 = vmul.f32 %v807, %v827
        %v830 = vmul.f32 %v808, %v827
        %v831 = vmul.f32 %v809, %v827
        %v832 = vmul.f32 %v810, %v827
        %v833 = vmul.f32 %v811, %v827
        %v834 = vmul.f32 %v812, %v827
        %v835 = vmul.f32 %v813, %v827
        %v836 = vmul.f32 %v814, %v827
        %v837 = vmul.f32 %v815, %v827
        %v838 = vmul.f32 %v816, %v827
        %v839 = vmul.f32 %v817, %v827
        %v840 = vmul.f32 %v818, %v827
        %v841 = vmul.f32 %v819, %v827
        %v842 = vmul.f32 %v820, %v827
        %v843 = vmul.f32 %v821, %v827
        %v844 = vmul.f32 %v822, %v827
        %v846 = vlaneseq
        %v847 = vshrl.u32 %v846, 7
        %v848 = vsub.s32 0, %v847
        %v849 = vrot.slane %v592, %v848
        %v851 = vadd.f32 %v829, %v849
        %v852 = vadd.f32 %v830, %v849
        %v853 = vadd.f32 %v831, %v849
        %v854 = vadd.f32 %v832, %v849
        %v855 = vadd.f32 %v833, %v849
        %v856 = vadd.f32 %v834, %v849
        %v857 = vadd.f32 %v835, %v849
        %v858 = vadd.f32 %v836, %v849
        %v859 = vadd.f32 %v837, %v849
        %v860 = vadd.f32 %v838, %v849
        %v861 = vadd.f32 %v839, %v849
        %v862 = vadd.f32 %v840, %v849
        %v863 = vadd.f32 %v841, %v849
        %v864 = vadd.f32 %v842, %v849
        %v865 = vadd.f32 %v843, %v849
        %v866 = vadd.f32 %v844, %v849
        %v867 = vmax.f32 %v851, 0.0
        %v868 = vmax.f32 %v852, 0.0
        %v869 = vmax.f32 %v853, 0.0
        %v870 = vmax.f32 %v854, 0.0
        %v871 = vmax.f32 %v855, 0.0
        %v872 = vmax.f32 %v856, 0.0
        %v873 = vmax.f32 %v857, 0.0
        %v874 = vmax.f32 %v858, 0.0
        %v875 = vmax.f32 %v859, 0.0
        %v876 = vmax.f32 %v860, 0.0
        %v877 = vmax.f32 %v861, 0.0
        %v878 = vmax.f32 %v862, 0.0
        %v879 = vmax.f32 %v863, 0.0
        %v880 = vmax.f32 %v864, 0.0
        %v881 = vmax.f32 %v865, 0.0
        %v882 = vmax.f32 %v866, 0.0
        %884 = vset.pattern.permute.xlu0 0
        %885 = vperm.xlu0 %884, %v389
        %v886 = vpop.permute.xlu0 %885
        %889 = vset.pattern.permute.xlu0 0
        %890 = vperm.xlu0 %889, %v390
        %v891 = vpop.permute.xlu0 %890
        %894 = vset.pattern.permute.xlu0 0
        %895 = vperm.xlu0 %894, %v391
        %v896 = vpop.permute.xlu0 %895
        %899 = vset.pattern.permute.xlu0 0
        %900 = vperm.xlu0 %899, %v392
        %v901 = vpop.permute.xlu0 %900
        %904 = vset.pattern.permute.xlu0 0
        %905 = vperm.xlu0 %904, %v393
        %v906 = vpop.permute.xlu0 %905
        %909 = vset.pattern.permute.xlu0 0
        %910 = vperm.xlu0 %909, %v394
        %v911 = vpop.permute.xlu0 %910
        %914 = vset.pattern.permute.xlu0 0
        %915 = vperm.xlu0 %914, %v395
        %v916 = vpop.permute.xlu0 %915
        %919 = vset.pattern.permute.xlu0 0
        %920 = vperm.xlu0 %919, %v396
        %v921 = vpop.permute.xlu0 %920
        %924 = vset.pattern.permute.xlu0 0
        %925 = vperm.xlu0 %924, %v397
        %v926 = vpop.permute.xlu0 %925
        %929 = vset.pattern.permute.xlu0 0
        %930 = vperm.xlu0 %929, %v398
        %v931 = vpop.permute.xlu0 %930
        %934 = vset.pattern.permute.xlu0 0
        %935 = vperm.xlu0 %934, %v399
        %v936 = vpop.permute.xlu0 %935
        %939 = vset.pattern.permute.xlu0 0
        %940 = vperm.xlu0 %939, %v400
        %v941 = vpop.permute.xlu0 %940
        %944 = vset.pattern.permute.xlu0 0
        %945 = vperm.xlu0 %944, %v401
        %v946 = vpop.permute.xlu0 %945
        %949 = vset.pattern.permute.xlu0 0
        %950 = vperm.xlu0 %949, %v402
        %v951 = vpop.permute.xlu0 %950
        %954 = vset.pattern.permute.xlu0 0
        %955 = vperm.xlu0 %954, %v403
        %v956 = vpop.permute.xlu0 %955
        %959 = vset.pattern.permute.xlu0 0
        %960 = vperm.xlu0 %959, %v404
        %v961 = vpop.permute.xlu0 %960
        %v963 = vadd.f32 %v867, %v886
        %v964 = vadd.f32 %v868, %v891
        %v965 = vadd.f32 %v869, %v896
        %v966 = vadd.f32 %v870, %v901
        %v967 = vadd.f32 %v871, %v906
        %v968 = vadd.f32 %v872, %v911
        %v969 = vadd.f32 %v873, %v916
        %v970 = vadd.f32 %v874, %v921
        %v971 = vadd.f32 %v875, %v926
        %v972 = vadd.f32 %v876, %v931
        %v973 = vadd.f32 %v877, %v936
        %v974 = vadd.f32 %v878, %v941
        %v975 = vadd.f32 %v879, %v946
        %v976 = vadd.f32 %v880, %v951
        %v977 = vadd.f32 %v881, %v956
        %v978 = vadd.f32 %v882, %v961
        %v979 = vmax.f32 %v963, %v964
        %v980 = vrot.slane %v979, 4
        %v981 = vmax.f32 %v979, %v980
        %v982 = vrot.slane %v981, 2
        %v983 = vmax.f32 %v981, %v982
        %v984 = vrot.slane %v983, 1
        %v985 = vmax.f32 %v983, %v984
        %v986 = vmax.f32 %v965, %v966
        %v987 = vrot.slane %v986, 4
        %v988 = vmax.f32 %v986, %v987
        %v989 = vrot.slane %v988, 2
        %v990 = vmax.f32 %v988, %v989
        %v991 = vrot.slane %v990, 1
        %v992 = vmax.f32 %v990, %v991
        %v993 = vmax.f32 %v967, %v968
        %v994 = vrot.slane %v993, 4
        %v995 = vmax.f32 %v993, %v994
        %v996 = vrot.slane %v995, 2
        %v997 = vmax.f32 %v995, %v996
        %v998 = vrot.slane %v997, 1
        %v999 = vmax.f32 %v997, %v998
        %v1000 = vmax.f32 %v969, %v970
        %v1001 = vrot.slane %v1000, 4
        %v1002 = vmax.f32 %v1000, %v1001
        %v1003 = vrot.slane %v1002, 2
        %v1004 = vmax.f32 %v1002, %v1003
        %v1005 = vrot.slane %v1004, 1
        %v1006 = vmax.f32 %v1004, %v1005
        %v1007 = vmax.f32 %v971, %v972
        %v1008 = vrot.slane %v1007, 4
        %v1009 = vmax.f32 %v1007, %v1008
        %v1010 = vrot.slane %v1009, 2
        %v1011 = vmax.f32 %v1009, %v1010
        %v1012 = vrot.slane %v1011, 1
        %v1013 = vmax.f32 %v1011, %v1012
        %v1014 = vmax.f32 %v973, %v974
        %v1015 = vrot.slane %v1014, 4
        %v1016 = vmax.f32 %v1014, %v1015
        %v1017 = vrot.slane %v1016, 2
        %v1018 = vmax.f32 %v1016, %v1017
        %v1019 = vrot.slane %v1018, 1
        %v1020 = vmax.f32 %v1018, %v1019
        %v1021 = vmax.f32 %v975, %v976
        %v1022 = vrot.slane %v1021, 4
        %v1023 = vmax.f32 %v1021, %v1022
        %v1024 = vrot.slane %v1023, 2
        %v1025 = vmax.f32 %v1023, %v1024
        %v1026 = vrot.slane %v1025, 1
        %v1027 = vmax.f32 %v1025, %v1026
        %v1028 = vmax.f32 %v977, %v978
        %v1029 = vrot.slane %v1028, 4
        %v1030 = vmax.f32 %v1028, %v1029
        %v1031 = vrot.slane %v1030, 2
        %v1032 = vmax.f32 %v1030, %v1031
        %v1033 = vrot.slane %v1032, 1
        %v1034 = vmax.f32 %v1032, %v1033
        %v1035 = vpack.c.bf16 %v868, %v867
        %v1036 = vpack.c.bf16 %v870, %v869
        %v1037 = vpack.c.bf16 %v872, %v871
        %v1038 = vpack.c.bf16 %v874, %v873
        %v1039 = vpack.c.bf16 %v876, %v875
        %v1040 = vpack.c.bf16 %v878, %v877
        %v1041 = vpack.c.bf16 %v880, %v879
        %v1042 = vpack.c.bf16 %v882, %v881
        %v1043 = vld [vmem:[#allocation2] sm:$0xf]
        %v1044 = vld [vmem:[#allocation2 + $0x4] sm:$0xf]
        %v1045 = vld [vmem:[#allocation2 + $0x8] sm:$0xf]
        %v1046 = vld [vmem:[#allocation2 + $0xc] sm:$0xf]
        %v1047 = vld [vmem:[#allocation2 + $0x10] sm:$0xf]
        %v1048 = vld [vmem:[#allocation2 + $0x14] sm:$0xf]
        %v1049 = vld [vmem:[#allocation2 + $0x18] sm:$0xf]
        %v1050 = vld [vmem:[#allocation2 + $0x1c] sm:$0xf]
        %v1051 = vld [vmem:[#allocation2 + $0x20] sm:$0xf]
        %v1052 = vld [vmem:[#allocation2 + $0x24] sm:$0xf]
        %v1053 = vld [vmem:[#allocation2 + $0x28] sm:$0xf]
        %v1054 = vld [vmem:[#allocation2 + $0x2c] sm:$0xf]
        %v1055 = vld [vmem:[#allocation2 + $0x30] sm:$0xf]
        %v1056 = vld [vmem:[#allocation2 + $0x34] sm:$0xf]
        %v1057 = vld [vmem:[#allocation2 + $0x38] sm:$0xf]
        %v1058 = vld [vmem:[#allocation2 + $0x3c] sm:$0xf]
        %s1059 = scalar_lea.vmem [#allocation2], 64
        %v1060 = vld [vmem:[%s1059] sm:$0xf]
        %v1061 = vld [vmem:[%s1059 + $0x4] sm:$0xf]
        %v1062 = vld [vmem:[%s1059 + $0x8] sm:$0xf]
        %v1063 = vld [vmem:[%s1059 + $0xc] sm:$0xf]
        %v1064 = vld [vmem:[%s1059 + $0x10] sm:$0xf]
        %v1065 = vld [vmem:[%s1059 + $0x14] sm:$0xf]
        %v1066 = vld [vmem:[%s1059 + $0x18] sm:$0xf]
        %v1067 = vld [vmem:[%s1059 + $0x1c] sm:$0xf]
        %v1068 = vld [vmem:[%s1059 + $0x20] sm:$0xf]
        %v1069 = vld [vmem:[%s1059 + $0x24] sm:$0xf]
        %v1070 = vld [vmem:[%s1059 + $0x28] sm:$0xf]
        %v1071 = vld [vmem:[%s1059 + $0x2c] sm:$0xf]
        %v1072 = vld [vmem:[%s1059 + $0x30] sm:$0xf]
        %v1073 = vld [vmem:[%s1059 + $0x34] sm:$0xf]
        %v1074 = vld [vmem:[%s1059 + $0x38] sm:$0xf]
        %v1075 = vld [vmem:[%s1059 + $0x3c] sm:$0xf]
        %v1092 = vunpack.c.l.b16 %v1043
        %v1093 = vunpack.c.l.b16 %v1044
        %v1094 = vunpack.c.l.b16 %v1045
        %v1095 = vunpack.c.l.b16 %v1046
        %v1096 = vunpack.c.l.b16 %v1047
        %v1097 = vunpack.c.l.b16 %v1048
        %v1098 = vunpack.c.l.b16 %v1049
        %v1099 = vunpack.c.l.b16 %v1050
        %v1100 = vunpack.c.l.b16 %v1051
        %v1101 = vunpack.c.l.b16 %v1052
        %v1102 = vunpack.c.l.b16 %v1053
        %v1103 = vunpack.c.l.b16 %v1054
        %v1104 = vunpack.c.l.b16 %v1055
        %v1105 = vunpack.c.l.b16 %v1056
        %v1106 = vunpack.c.l.b16 %v1057
        %v1107 = vunpack.c.l.b16 %v1058
        %v1108 = vpack.c.b16 %v1093, %v1092
        %v1109 = vpack.c.b16 %v1095, %v1094
        %v1110 = vpack.c.b16 %v1097, %v1096
        %v1111 = vpack.c.b16 %v1099, %v1098
        %v1112 = vpack.c.b16 %v1101, %v1100
        %v1113 = vpack.c.b16 %v1103, %v1102
        %v1114 = vpack.c.b16 %v1105, %v1104
        %v1115 = vpack.c.b16 %v1107, %v1106
        %1124 = vmatprep.subr.bf16.mxu0 0
        %1125 = vmatpush1.bf16.msra.mxu0 %v1115
        %1126 = vmatprep.subr.bf16.mxu0 0
        %1127 = vmatpush1.bf16.msra.mxu0 %v1114
        %1128 = vmatprep.subr.bf16.mxu0 0
        %1129 = vmatpush1.bf16.msra.mxu0 %v1113
        %1130 = vmatprep.subr.bf16.mxu0 0
        %1131 = vmatpush1.bf16.msra.mxu0 %v1112
        %1132 = vmatprep.subr.bf16.mxu0 0
        %1133 = vmatpush1.bf16.msra.mxu0 %v1111
        %1134 = vmatprep.subr.bf16.mxu0 0
        %1135 = vmatpush1.bf16.msra.mxu0 %v1110
        %1136 = vmatprep.subr.bf16.mxu0 0
        %1137 = vmatpush1.bf16.msra.mxu0 %v1109
        %1138 = vmatprep.subr.bf16.mxu0 0
        %1139 = vmatpush1.bf16.msra.mxu0 %v1108
        %1140 = vmatprep.subr.bf16.mxu0 0
        %1141 = vmatpush2.bf16.msra.mxu0 0
        %1142 = vmatprep.subr.bf16.mxu0 0
        %1143 = vmatpush2.bf16.msra.mxu0 0
        %1144 = vmatprep.subr.bf16.mxu0 0
        %1145 = vmatpush2.bf16.msra.mxu0 0
        %1146 = vmatprep.subr.bf16.mxu0 0
        %1147 = vmatpush2.bf16.msra.mxu0 0
        %1148 = vmatprep.subr.bf16.mxu0 0
        %1149 = vmatpush2.bf16.msra.mxu0 0
        %1150 = vmatprep.subr.bf16.mxu0 0
        %1151 = vmatpush2.bf16.msra.mxu0 0
        %1152 = vmatprep.subr.bf16.mxu0 0
        %1153 = vmatpush2.bf16.msra.mxu0 0
        %1154 = vmatprep.subr.bf16.mxu0 0
        %1155 = vmatpush2.bf16.msra.mxu0 0
        %1156 = vmatprep.mubr.bf16.mxu0 0
        %1157 = vmatmul.mubr.bf16.gmra.mxu0 %v1035
        %v1158 = vpop.f32.mrf.mxu0
        %v1159 = vadd.f32 0.0, %v1158
        %v1160 = vpop.f32.mrf.mxu0
        %v1161 = vpop.f32.mrf.mxu0
        %v1162 = vadd.f32 0.0, %v1161
        %v1163 = vpop.f32.mrf.mxu0
        %1164 = vmatprep.mubr.bf16.mxu0 0
        %1165 = vmatmul.mubr.bf16.gmra.mxu0 %v1036
        %v1166 = vpop.f32.mrf.mxu0
        %v1167 = vadd.f32 0.0, %v1166
        %v1168 = vpop.f32.mrf.mxu0
        %v1169 = vpop.f32.mrf.mxu0
        %v1170 = vadd.f32 0.0, %v1169
        %v1171 = vpop.f32.mrf.mxu0
        %1172 = vmatprep.mubr.bf16.mxu0 0
        %1173 = vmatmul.mubr.bf16.gmra.mxu0 %v1037
        %v1174 = vpop.f32.mrf.mxu0
        %v1175 = vadd.f32 0.0, %v1174
        %v1176 = vpop.f32.mrf.mxu0
        %v1177 = vpop.f32.mrf.mxu0
        %v1178 = vadd.f32 0.0, %v1177
        %v1179 = vpop.f32.mrf.mxu0
        %1180 = vmatprep.mubr.bf16.mxu0 0
        %1181 = vmatmul.mubr.bf16.gmra.mxu0 %v1038
        %v1182 = vpop.f32.mrf.mxu0
        %v1183 = vadd.f32 0.0, %v1182
        %v1184 = vpop.f32.mrf.mxu0
        %v1185 = vpop.f32.mrf.mxu0
        %v1186 = vadd.f32 0.0, %v1185
        %v1187 = vpop.f32.mrf.mxu0
        %1188 = vmatprep.mubr.bf16.mxu0 0
        %1189 = vmatmul.mubr.bf16.gmra.mxu0 %v1039
        %v1190 = vpop.f32.mrf.mxu0
        %v1191 = vadd.f32 0.0, %v1190
        %v1192 = vpop.f32.mrf.mxu0
        %v1193 = vpop.f32.mrf.mxu0
        %v1194 = vadd.f32 0.0, %v1193
        %v1195 = vpop.f32.mrf.mxu0
        %1196 = vmatprep.mubr.bf16.mxu0 0
        %1197 = vmatmul.mubr.bf16.gmra.mxu0 %v1040
        %v1198 = vpop.f32.mrf.mxu0
        %v1199 = vadd.f32 0.0, %v1198
        %v1200 = vpop.f32.mrf.mxu0
        %v1201 = vpop.f32.mrf.mxu0
        %v1202 = vadd.f32 0.0, %v1201
        %v1203 = vpop.f32.mrf.mxu0
        %1204 = vmatprep.mubr.bf16.mxu0 0
        %1205 = vmatmul.mubr.bf16.gmra.mxu0 %v1041
        %v1206 = vpop.f32.mrf.mxu0
        %v1207 = vadd.f32 0.0, %v1206
        %v1208 = vpop.f32.mrf.mxu0
        %v1209 = vpop.f32.mrf.mxu0
        %v1210 = vadd.f32 0.0, %v1209
        %v1211 = vpop.f32.mrf.mxu0
        %1212 = vmatprep.mubr.bf16.mxu0 0
        %1213 = vmatmul.mubr.bf16.gmra.mxu0 %v1042
        %v1214 = vpop.f32.mrf.mxu0
        %v1215 = vadd.f32 0.0, %v1214
        %v1216 = vpop.f32.mrf.mxu0
        %v1217 = vpop.f32.mrf.mxu0
        %v1218 = vadd.f32 0.0, %v1217
        %v1219 = vpop.f32.mrf.mxu0
        %1220 = vdwg.mxu0
        %v1221 = vpack.c.bf16 %v985, %v985
        %v1222 = vpack.c.bf16 %v992, %v992
        %v1223 = vpack.c.bf16 %v999, %v999
        %v1224 = vpack.c.bf16 %v1006, %v1006
        %v1225 = vpack.c.bf16 %v1013, %v1013
        %v1226 = vpack.c.bf16 %v1020, %v1020
        %v1227 = vpack.c.bf16 %v1027, %v1027
        %v1228 = vpack.c.bf16 %v1034, %v1034
        %v1237 = vunpack.c.l.b16 %v1221
        %v1238 = vunpack.c.l.b16 %v1222
        %v1239 = vunpack.c.l.b16 %v1223
        %v1240 = vunpack.c.l.b16 %v1224
        %v1241 = vunpack.c.l.b16 %v1225
        %v1242 = vunpack.c.l.b16 %v1226
        %v1243 = vunpack.c.l.b16 %v1227
        %v1244 = vunpack.c.l.b16 %v1228
        %vm1245 = vcmask 1041409
        %v1246 = vsel %vm1245, %v1238, %v1237
        %vm1247 = vcmask 1042434
        %v1248 = vsel %vm1247, %v1239, %v1246
        %vm1249 = vcmask 1043459
        %v1250 = vsel %vm1249, %v1240, %v1248
        %vm1251 = vcmask 1044484
        %v1252 = vsel %vm1251, %v1241, %v1250
        %vm1253 = vcmask 1045509
        %v1254 = vsel %vm1253, %v1242, %v1252
        %vm1255 = vcmask 1046534
        %v1256 = vsel %vm1255, %v1243, %v1254
        %vm1257 = vcmask 1047559
        %v1258 = vsel %vm1257, %v1244, %v1256
        %v1259 = vpack.c.b16 %v1258, %v1258
        %v1277 = vunpack.c.l.b16 %v1060
        %v1278 = vunpack.c.l.b16 %v1061
        %v1279 = vunpack.c.l.b16 %v1062
        %v1280 = vunpack.c.l.b16 %v1063
        %v1281 = vunpack.c.l.b16 %v1064
        %v1282 = vunpack.c.l.b16 %v1065
        %v1283 = vunpack.c.l.b16 %v1066
        %v1284 = vunpack.c.l.b16 %v1067
        %v1285 = vunpack.c.l.b16 %v1068
        %v1286 = vunpack.c.l.b16 %v1069
        %v1287 = vunpack.c.l.b16 %v1070
        %v1288 = vunpack.c.l.b16 %v1071
        %v1289 = vunpack.c.l.b16 %v1072
        %v1290 = vunpack.c.l.b16 %v1073
        %v1291 = vunpack.c.l.b16 %v1074
        %v1292 = vunpack.c.l.b16 %v1075
        %v1293 = vpack.c.b16 %v1278, %v1277
        %v1294 = vpack.c.b16 %v1280, %v1279
        %v1295 = vpack.c.b16 %v1282, %v1281
        %v1296 = vpack.c.b16 %v1284, %v1283
        %v1297 = vpack.c.b16 %v1286, %v1285
        %v1298 = vpack.c.b16 %v1288, %v1287
        %v1299 = vpack.c.b16 %v1290, %v1289
        %v1300 = vpack.c.b16 %v1292, %v1291
        %1309 = vmatprep.subr.bf16.mxu0 0
        %1310 = vmatpush1.bf16.msra.mxu0 %v1300
        %1311 = vmatprep.subr.bf16.mxu0 0
        %1312 = vmatpush1.bf16.msra.mxu0 %v1299
        %1313 = vmatprep.subr.bf16.mxu0 0
        %1314 = vmatpush1.bf16.msra.mxu0 %v1298
        %1315 = vmatprep.subr.bf16.mxu0 0
        %1316 = vmatpush1.bf16.msra.mxu0 %v1297
        %1317 = vmatprep.subr.bf16.mxu0 0
        %1318 = vmatpush1.bf16.msra.mxu0 %v1296
        %1319 = vmatprep.subr.bf16.mxu0 0
        %1320 = vmatpush1.bf16.msra.mxu0 %v1295
        %1321 = vmatprep.subr.bf16.mxu0 0
        %1322 = vmatpush1.bf16.msra.mxu0 %v1294
        %1323 = vmatprep.subr.bf16.mxu0 0
        %1324 = vmatpush1.bf16.msra.mxu0 %v1293
        %1325 = vmatprep.subr.bf16.mxu0 0
        %1326 = vmatpush2.bf16.msra.mxu0 0
        %1327 = vmatprep.subr.bf16.mxu0 0
        %1328 = vmatpush2.bf16.msra.mxu0 0
        %1329 = vmatprep.subr.bf16.mxu0 0
        %1330 = vmatpush2.bf16.msra.mxu0 0
        %1331 = vmatprep.subr.bf16.mxu0 0
        %1332 = vmatpush2.bf16.msra.mxu0 0
        %1333 = vmatprep.subr.bf16.mxu0 0
        %1334 = vmatpush2.bf16.msra.mxu0 0
        %1335 = vmatprep.subr.bf16.mxu0 0
        %1336 = vmatpush2.bf16.msra.mxu0 0
        %1337 = vmatprep.subr.bf16.mxu0 0
        %1338 = vmatpush2.bf16.msra.mxu0 0
        %1339 = vmatprep.subr.bf16.mxu0 0
        %1340 = vmatpush2.bf16.msra.mxu0 0
        %1341 = vmatprep.mubr.bf16.mxu0 0
        %1342 = vmatmul.mubr.bf16.gmra.mxu0 %v1259
        %v1343 = vpop.f32.mrf.mxu0
        %v1344 = vadd.f32 0.0, %v1343
        %v1345 = vpop.f32.mrf.mxu0
        %v1346 = vpop.f32.mrf.mxu0
        %v1347 = vpop.f32.mrf.mxu0
        %1348 = vdwg.mxu0
        %v1350 = vcombine.high %v1344, %v1344
        %v1352 = vunpack.c.l.s4 1966171168
        %v1353 = vunpack.c.0.s8 %v1352
        %v1354 = vlaneseq
        %v1355 = vshrl.u32 %v1354, 7
        %v1356 = vsub.s32 %v1353, %v1355
        %v1357 = vrot.slane %v1344, %v1356
        %v1359 = vunpack.c.l.s4 1966171168
        %v1360 = vunpack.c.0.s8 %v1359
        %v1361 = vlaneseq
        %v1362 = vshrl.u32 %v1361, 7
        %v1363 = vsub.s32 %v1360, %v1362
        %v1364 = vrot.slane %v1350, %v1363
        %v1365 = vcombine.high %v1357, %v1357
        %v1366 = vcombine.high %v1364, %v1364
        %v1368 = vunpack.c.l.s4 1966171168
        %v1369 = vunpack.c.0.s8 %v1368
        %v1370 = vlaneseq
        %v1371 = vshrl.u32 %v1370, 7
        %v1372 = vsub.s32 %v1369, %v1371
        %v1373 = vrot.slane %v1357, %v1372
        %v1375 = vunpack.c.l.s4 1966171168
        %v1376 = vunpack.c.0.s8 %v1375
        %v1377 = vlaneseq
        %v1378 = vshrl.u32 %v1377, 7
        %v1379 = vsub.s32 %v1376, %v1378
        %v1380 = vrot.slane %v1364, %v1379
        %v1382 = vunpack.c.l.s4 1966171168
        %v1383 = vunpack.c.0.s8 %v1382
        %v1384 = vlaneseq
        %v1385 = vshrl.u32 %v1384, 7
        %v1386 = vsub.s32 %v1383, %v1385
        %v1387 = vrot.slane %v1365, %v1386
        %v1389 = vunpack.c.l.s4 1966171168
        %v1390 = vunpack.c.0.s8 %v1389
        %v1391 = vlaneseq
        %v1392 = vshrl.u32 %v1391, 7
        %v1393 = vsub.s32 %v1390, %v1392
        %v1394 = vrot.slane %v1366, %v1393
        %v1395 = vcombine.high %v1373, %v1373
        %v1396 = vcombine.high %v1380, %v1380
        %v1397 = vcombine.high %v1387, %v1387
        %v1398 = vcombine.high %v1394, %v1394
        %v1399 = vlaneseq
        %v1400 = vshrl.u32 %v1399, 7
        %v1401 = vsub.s32 0, %v1400
        %v1402 = vrot.slane %v1373, %v1401
        %v1403 = vlaneseq
        %v1404 = vshrl.u32 %v1403, 7
        %v1405 = vsub.s32 0, %v1404
        %v1406 = vrot.slane %v1387, %v1405
        %v1407 = vlaneseq
        %v1408 = vshrl.u32 %v1407, 7
        %v1409 = vsub.s32 0, %v1408
        %v1410 = vrot.slane %v1395, %v1409
        %v1411 = vlaneseq
        %v1412 = vshrl.u32 %v1411, 7
        %v1413 = vsub.s32 0, %v1412
        %v1414 = vrot.slane %v1397, %v1413
        %v1415 = vlaneseq
        %v1416 = vshrl.u32 %v1415, 7
        %v1417 = vsub.s32 0, %v1416
        %v1418 = vrot.slane %v1380, %v1417
        %v1419 = vlaneseq
        %v1420 = vshrl.u32 %v1419, 7
        %v1421 = vsub.s32 0, %v1420
        %v1422 = vrot.slane %v1394, %v1421
        %v1423 = vlaneseq
        %v1424 = vshrl.u32 %v1423, 7
        %v1425 = vsub.s32 0, %v1424
        %v1426 = vrot.slane %v1396, %v1425
        %v1427 = vlaneseq
        %v1428 = vshrl.u32 %v1427, 7
        %v1429 = vsub.s32 0, %v1428
        %v1430 = vrot.slane %v1398, %v1429
        %v1439 = vadd.f32 %v1159, %v1402
        %v1440 = vadd.f32 %v1162, %v1402
        %v1441 = vadd.f32 %v1167, %v1406
        %v1442 = vadd.f32 %v1170, %v1406
        %v1443 = vadd.f32 %v1175, %v1410
        %v1444 = vadd.f32 %v1178, %v1410
        %v1445 = vadd.f32 %v1183, %v1414
        %v1446 = vadd.f32 %v1186, %v1414
        %v1447 = vadd.f32 %v1191, %v1418
        %v1448 = vadd.f32 %v1194, %v1418
        %v1449 = vadd.f32 %v1199, %v1422
        %v1450 = vadd.f32 %v1202, %v1422
        %v1451 = vadd.f32 %v1207, %v1426
        %v1452 = vadd.f32 %v1210, %v1426
        %v1453 = vadd.f32 %v1215, %v1430
        %v1454 = vadd.f32 %v1218, %v1430
        %s1455 = scalar_lea.vmem %s4, 3
        %v1456 = vld [vmem:[%s1455] sm:$0x1]
        %s1457 = scalar_lea.vmem %s4, 4
        %v1458 = vld [vmem:[%s1457] sm:$0x1]
        %s1459 = scalar_lea.vmem %s4, 5
        %v1460 = vld [vmem:[%s1459] sm:$0x1]
        %v1462 = vlaneseq
        %v1463 = vshrl.u32 %v1462, 7
        %v1464 = vsub.s32 0, %v1463
        %v1465 = vrot.slane %v1456, %v1464
        %v1467 = vadd.f32 %v1439, %v1465
        %v1468 = vadd.f32 %v1440, %v1465
        %v1469 = vadd.f32 %v1441, %v1465
        %v1470 = vadd.f32 %v1442, %v1465
        %v1471 = vadd.f32 %v1443, %v1465
        %v1472 = vadd.f32 %v1444, %v1465
        %v1473 = vadd.f32 %v1445, %v1465
        %v1474 = vadd.f32 %v1446, %v1465
        %v1475 = vadd.f32 %v1447, %v1465
        %v1476 = vadd.f32 %v1448, %v1465
        %v1477 = vadd.f32 %v1449, %v1465
        %v1478 = vadd.f32 %v1450, %v1465
        %v1479 = vadd.f32 %v1451, %v1465
        %v1480 = vadd.f32 %v1452, %v1465
        %v1481 = vadd.f32 %v1453, %v1465
        %v1482 = vadd.f32 %v1454, %v1465
        %1483 = vadd.xlane.f32.xlu0 %v1467
        %v1484 = vpop.xlane.xlu0 %1483
        %1485 = vadd.xlane.f32.xlu0 %v1468
        %v1486 = vpop.xlane.xlu0 %1485
        %1487 = vadd.xlane.f32.xlu0 %v1469
        %v1488 = vpop.xlane.xlu0 %1487
        %1489 = vadd.xlane.f32.xlu0 %v1470
        %v1490 = vpop.xlane.xlu0 %1489
        %1491 = vadd.xlane.f32.xlu0 %v1471
        %v1492 = vpop.xlane.xlu0 %1491
        %1493 = vadd.xlane.f32.xlu0 %v1472
        %v1494 = vpop.xlane.xlu0 %1493
        %1495 = vadd.xlane.f32.xlu0 %v1473
        %v1496 = vpop.xlane.xlu0 %1495
        %1497 = vadd.xlane.f32.xlu0 %v1474
        %v1498 = vpop.xlane.xlu0 %1497
        %1499 = vadd.xlane.f32.xlu0 %v1475
        %v1500 = vpop.xlane.xlu0 %1499
        %1501 = vadd.xlane.f32.xlu0 %v1476
        %v1502 = vpop.xlane.xlu0 %1501
        %1503 = vadd.xlane.f32.xlu0 %v1477
        %v1504 = vpop.xlane.xlu0 %1503
        %1505 = vadd.xlane.f32.xlu0 %v1478
        %v1506 = vpop.xlane.xlu0 %1505
        %1507 = vadd.xlane.f32.xlu0 %v1479
        %v1508 = vpop.xlane.xlu0 %1507
        %1509 = vadd.xlane.f32.xlu0 %v1480
        %v1510 = vpop.xlane.xlu0 %1509
        %1511 = vadd.xlane.f32.xlu0 %v1481
        %v1512 = vpop.xlane.xlu0 %1511
        %1513 = vadd.xlane.f32.xlu0 %v1482
        %v1514 = vpop.xlane.xlu0 %1513
        %v1515 = vmul.f32 %v1484, 0.015625
        %v1516 = vmul.f32 %v1486, 0.015625
        %v1517 = vmul.f32 %v1488, 0.015625
        %v1518 = vmul.f32 %v1490, 0.015625
        %v1519 = vmul.f32 %v1492, 0.015625
        %v1520 = vmul.f32 %v1494, 0.015625
        %v1521 = vmul.f32 %v1496, 0.015625
        %v1522 = vmul.f32 %v1498, 0.015625
        %v1523 = vmul.f32 %v1500, 0.015625
        %v1524 = vmul.f32 %v1502, 0.015625
        %v1525 = vmul.f32 %v1504, 0.015625
        %v1526 = vmul.f32 %v1506, 0.015625
        %v1527 = vmul.f32 %v1508, 0.015625
        %v1528 = vmul.f32 %v1510, 0.015625
        %v1529 = vmul.f32 %v1512, 0.015625
        %v1530 = vmul.f32 %v1514, 0.015625
        %v1531 = vmul.f32 %v1467, %v1467
        %v1532 = vmul.f32 %v1468, %v1468
        %v1533 = vmul.f32 %v1469, %v1469
        %v1534 = vmul.f32 %v1470, %v1470
        %v1535 = vmul.f32 %v1471, %v1471
        %v1536 = vmul.f32 %v1472, %v1472
        %v1537 = vmul.f32 %v1473, %v1473
        %v1538 = vmul.f32 %v1474, %v1474
        %v1539 = vmul.f32 %v1475, %v1475
        %v1540 = vmul.f32 %v1476, %v1476
        %v1541 = vmul.f32 %v1477, %v1477
        %v1542 = vmul.f32 %v1478, %v1478
        %v1543 = vmul.f32 %v1479, %v1479
        %v1544 = vmul.f32 %v1480, %v1480
        %v1545 = vmul.f32 %v1481, %v1481
        %v1546 = vmul.f32 %v1482, %v1482
        %1547 = vadd.xlane.f32.xlu0 %v1531
        %v1548 = vpop.xlane.xlu0 %1547
        %1549 = vadd.xlane.f32.xlu0 %v1532
        %v1550 = vpop.xlane.xlu0 %1549
        %1551 = vadd.xlane.f32.xlu0 %v1533
        %v1552 = vpop.xlane.xlu0 %1551
        %1553 = vadd.xlane.f32.xlu0 %v1534
        %v1554 = vpop.xlane.xlu0 %1553
        %1555 = vadd.xlane.f32.xlu0 %v1535
        %v1556 = vpop.xlane.xlu0 %1555
        %1557 = vadd.xlane.f32.xlu0 %v1536
        %v1558 = vpop.xlane.xlu0 %1557
        %1559 = vadd.xlane.f32.xlu0 %v1537
        %v1560 = vpop.xlane.xlu0 %1559
        %1561 = vadd.xlane.f32.xlu0 %v1538
        %v1562 = vpop.xlane.xlu0 %1561
        %1563 = vadd.xlane.f32.xlu0 %v1539
        %v1564 = vpop.xlane.xlu0 %1563
        %1565 = vadd.xlane.f32.xlu0 %v1540
        %v1566 = vpop.xlane.xlu0 %1565
        %1567 = vadd.xlane.f32.xlu0 %v1541
        %v1568 = vpop.xlane.xlu0 %1567
        %1569 = vadd.xlane.f32.xlu0 %v1542
        %v1570 = vpop.xlane.xlu0 %1569
        %1571 = vadd.xlane.f32.xlu0 %v1543
        %v1572 = vpop.xlane.xlu0 %1571
        %1573 = vadd.xlane.f32.xlu0 %v1544
        %v1574 = vpop.xlane.xlu0 %1573
        %1575 = vadd.xlane.f32.xlu0 %v1545
        %v1576 = vpop.xlane.xlu0 %1575
        %1577 = vadd.xlane.f32.xlu0 %v1546
        %v1578 = vpop.xlane.xlu0 %1577
        %v1579 = vmul.f32 %v1548, 0.015625
        %v1580 = vmul.f32 %v1550, 0.015625
        %v1581 = vmul.f32 %v1552, 0.015625
        %v1582 = vmul.f32 %v1554, 0.015625
        %v1583 = vmul.f32 %v1556, 0.015625
        %v1584 = vmul.f32 %v1558, 0.015625
        %v1585 = vmul.f32 %v1560, 0.015625
        %v1586 = vmul.f32 %v1562, 0.015625
        %v1587 = vmul.f32 %v1564, 0.015625
        %v1588 = vmul.f32 %v1566, 0.015625
        %v1589 = vmul.f32 %v1568, 0.015625
        %v1590 = vmul.f32 %v1570, 0.015625
        %v1591 = vmul.f32 %v1572, 0.015625
        %v1592 = vmul.f32 %v1574, 0.015625
        %v1593 = vmul.f32 %v1576, 0.015625
        %v1594 = vmul.f32 %v1578, 0.015625
        %v1595 = vmul.f32 %v1515, %v1515
        %v1596 = vmul.f32 %v1516, %v1516
        %v1597 = vmul.f32 %v1517, %v1517
        %v1598 = vmul.f32 %v1518, %v1518
        %v1599 = vmul.f32 %v1519, %v1519
        %v1600 = vmul.f32 %v1520, %v1520
        %v1601 = vmul.f32 %v1521, %v1521
        %v1602 = vmul.f32 %v1522, %v1522
        %v1603 = vmul.f32 %v1523, %v1523
        %v1604 = vmul.f32 %v1524, %v1524
        %v1605 = vmul.f32 %v1525, %v1525
        %v1606 = vmul.f32 %v1526, %v1526
        %v1607 = vmul.f32 %v1527, %v1527
        %v1608 = vmul.f32 %v1528, %v1528
        %v1609 = vmul.f32 %v1529, %v1529
        %v1610 = vmul.f32 %v1530, %v1530
        %v1611 = vsub.f32 %v1579, %v1595
        %v1612 = vsub.f32 %v1580, %v1596
        %v1613 = vsub.f32 %v1581, %v1597
        %v1614 = vsub.f32 %v1582, %v1598
        %v1615 = vsub.f32 %v1583, %v1599
        %v1616 = vsub.f32 %v1584, %v1600
        %v1617 = vsub.f32 %v1585, %v1601
        %v1618 = vsub.f32 %v1586, %v1602
        %v1619 = vsub.f32 %v1587, %v1603
        %v1620 = vsub.f32 %v1588, %v1604
        %v1621 = vsub.f32 %v1589, %v1605
        %v1622 = vsub.f32 %v1590, %v1606
        %v1623 = vsub.f32 %v1591, %v1607
        %v1624 = vsub.f32 %v1592, %v1608
        %v1625 = vsub.f32 %v1593, %v1609
        %v1626 = vsub.f32 %v1594, %v1610
        %v1627 = vsub.f32 %v1467, %v1515
        %v1628 = vsub.f32 %v1468, %v1516
        %v1629 = vsub.f32 %v1469, %v1517
        %v1630 = vsub.f32 %v1470, %v1518
        %v1631 = vsub.f32 %v1471, %v1519
        %v1632 = vsub.f32 %v1472, %v1520
        %v1633 = vsub.f32 %v1473, %v1521
        %v1634 = vsub.f32 %v1474, %v1522
        %v1635 = vsub.f32 %v1475, %v1523
        %v1636 = vsub.f32 %v1476, %v1524
        %v1637 = vsub.f32 %v1477, %v1525
        %v1638 = vsub.f32 %v1478, %v1526
        %v1639 = vsub.f32 %v1479, %v1527
        %v1640 = vsub.f32 %v1480, %v1528
        %v1641 = vsub.f32 %v1481, %v1529
        %v1642 = vsub.f32 %v1482, %v1530
        %v1643 = vadd.f32 %v1611, 1e-05
        %v1644 = vadd.f32 %v1612, 1e-05
        %v1645 = vadd.f32 %v1613, 1e-05
        %v1646 = vadd.f32 %v1614, 1e-05
        %v1647 = vadd.f32 %v1615, 1e-05
        %v1648 = vadd.f32 %v1616, 1e-05
        %v1649 = vadd.f32 %v1617, 1e-05
        %v1650 = vadd.f32 %v1618, 1e-05
        %v1651 = vadd.f32 %v1619, 1e-05
        %v1652 = vadd.f32 %v1620, 1e-05
        %v1653 = vadd.f32 %v1621, 1e-05
        %v1654 = vadd.f32 %v1622, 1e-05
        %v1655 = vadd.f32 %v1623, 1e-05
        %v1656 = vadd.f32 %v1624, 1e-05
        %v1657 = vadd.f32 %v1625, 1e-05
        %v1658 = vadd.f32 %v1626, 1e-05
        %v1659 = vrsqrt.pop %v1643
        %v1660 = vrsqrt.pop %v1644
        %v1661 = vrsqrt.pop %v1645
        %v1662 = vrsqrt.pop %v1646
        %v1663 = vrsqrt.pop %v1647
        %v1664 = vrsqrt.pop %v1648
        %v1665 = vrsqrt.pop %v1649
        %v1666 = vrsqrt.pop %v1650
        %v1667 = vrsqrt.pop %v1651
        %v1668 = vrsqrt.pop %v1652
        %v1669 = vrsqrt.pop %v1653
        %v1670 = vrsqrt.pop %v1654
        %v1671 = vrsqrt.pop %v1655
        %v1672 = vrsqrt.pop %v1656
        %v1673 = vrsqrt.pop %v1657
        %v1674 = vrsqrt.pop %v1658
        %v1675 = vmul.f32 %v1627, %v1659
        %v1676 = vmul.f32 %v1628, %v1660
        %v1677 = vmul.f32 %v1629, %v1661
        %v1678 = vmul.f32 %v1630, %v1662
        %v1679 = vmul.f32 %v1631, %v1663
        %v1680 = vmul.f32 %v1632, %v1664
        %v1681 = vmul.f32 %v1633, %v1665
        %v1682 = vmul.f32 %v1634, %v1666
        %v1683 = vmul.f32 %v1635, %v1667
        %v1684 = vmul.f32 %v1636, %v1668
        %v1685 = vmul.f32 %v1637, %v1669
        %v1686 = vmul.f32 %v1638, %v1670
        %v1687 = vmul.f32 %v1639, %v1671
        %v1688 = vmul.f32 %v1640, %v1672
        %v1689 = vmul.f32 %v1641, %v1673
        %v1690 = vmul.f32 %v1642, %v1674
        %v1692 = vlaneseq
        %v1693 = vshrl.u32 %v1692, 7
        %v1694 = vsub.s32 0, %v1693
        %v1695 = vrot.slane %v1458, %v1694
        %v1697 = vmul.f32 %v1675, %v1695
        %v1698 = vmul.f32 %v1676, %v1695
        %v1699 = vmul.f32 %v1677, %v1695
        %v1700 = vmul.f32 %v1678, %v1695
        %v1701 = vmul.f32 %v1679, %v1695
        %v1702 = vmul.f32 %v1680, %v1695
        %v1703 = vmul.f32 %v1681, %v1695
        %v1704 = vmul.f32 %v1682, %v1695
        %v1705 = vmul.f32 %v1683, %v1695
        %v1706 = vmul.f32 %v1684, %v1695
        %v1707 = vmul.f32 %v1685, %v1695
        %v1708 = vmul.f32 %v1686, %v1695
        %v1709 = vmul.f32 %v1687, %v1695
        %v1710 = vmul.f32 %v1688, %v1695
        %v1711 = vmul.f32 %v1689, %v1695
        %v1712 = vmul.f32 %v1690, %v1695
        %v1714 = vlaneseq
        %v1715 = vshrl.u32 %v1714, 7
        %v1716 = vsub.s32 0, %v1715
        %v1717 = vrot.slane %v1460, %v1716
        %v1719 = vadd.f32 %v1697, %v1717
        %v1720 = vadd.f32 %v1698, %v1717
        %v1721 = vadd.f32 %v1699, %v1717
        %v1722 = vadd.f32 %v1700, %v1717
        %v1723 = vadd.f32 %v1701, %v1717
        %v1724 = vadd.f32 %v1702, %v1717
        %v1725 = vadd.f32 %v1703, %v1717
        %v1726 = vadd.f32 %v1704, %v1717
        %v1727 = vadd.f32 %v1705, %v1717
        %v1728 = vadd.f32 %v1706, %v1717
        %v1729 = vadd.f32 %v1707, %v1717
        %v1730 = vadd.f32 %v1708, %v1717
        %v1731 = vadd.f32 %v1709, %v1717
        %v1732 = vadd.f32 %v1710, %v1717
        %v1733 = vadd.f32 %v1711, %v1717
        %v1734 = vadd.f32 %v1712, %v1717
        %v1735 = vmax.f32 %v1719, 0.0
        %v1736 = vmax.f32 %v1720, 0.0
        %v1737 = vmax.f32 %v1721, 0.0
        %v1738 = vmax.f32 %v1722, 0.0
        %v1739 = vmax.f32 %v1723, 0.0
        %v1740 = vmax.f32 %v1724, 0.0
        %v1741 = vmax.f32 %v1725, 0.0
        %v1742 = vmax.f32 %v1726, 0.0
        %v1743 = vmax.f32 %v1727, 0.0
        %v1744 = vmax.f32 %v1728, 0.0
        %v1745 = vmax.f32 %v1729, 0.0
        %v1746 = vmax.f32 %v1730, 0.0
        %v1747 = vmax.f32 %v1731, 0.0
        %v1748 = vmax.f32 %v1732, 0.0
        %v1749 = vmax.f32 %v1733, 0.0
        %v1750 = vmax.f32 %v1734, 0.0
        %v1751 = vadd.f32 %v1735, %v886
        %v1752 = vadd.f32 %v1736, %v891
        %v1753 = vadd.f32 %v1737, %v896
        %v1754 = vadd.f32 %v1738, %v901
        %v1755 = vadd.f32 %v1739, %v906
        %v1756 = vadd.f32 %v1740, %v911
        %v1757 = vadd.f32 %v1741, %v916
        %v1758 = vadd.f32 %v1742, %v921
        %v1759 = vadd.f32 %v1743, %v926
        %v1760 = vadd.f32 %v1744, %v931
        %v1761 = vadd.f32 %v1745, %v936
        %v1762 = vadd.f32 %v1746, %v941
        %v1763 = vadd.f32 %v1747, %v946
        %v1764 = vadd.f32 %v1748, %v951
        %v1765 = vadd.f32 %v1749, %v956
        %v1766 = vadd.f32 %v1750, %v961
        %v1767 = vmax.f32 %v1751, %v1752
        %v1768 = vrot.slane %v1767, 4
        %v1769 = vmax.f32 %v1767, %v1768
        %v1770 = vrot.slane %v1769, 2
        %v1771 = vmax.f32 %v1769, %v1770
        %v1772 = vrot.slane %v1771, 1
        %v1773 = vmax.f32 %v1771, %v1772
        %v1774 = vmax.f32 %v1753, %v1754
        %v1775 = vrot.slane %v1774, 4
        %v1776 = vmax.f32 %v1774, %v1775
        %v1777 = vrot.slane %v1776, 2
        %v1778 = vmax.f32 %v1776, %v1777
        %v1779 = vrot.slane %v1778, 1
        %v1780 = vmax.f32 %v1778, %v1779
        %v1781 = vmax.f32 %v1755, %v1756
        %v1782 = vrot.slane %v1781, 4
        %v1783 = vmax.f32 %v1781, %v1782
        %v1784 = vrot.slane %v1783, 2
        %v1785 = vmax.f32 %v1783, %v1784
        %v1786 = vrot.slane %v1785, 1
        %v1787 = vmax.f32 %v1785, %v1786
        %v1788 = vmax.f32 %v1757, %v1758
        %v1789 = vrot.slane %v1788, 4
        %v1790 = vmax.f32 %v1788, %v1789
        %v1791 = vrot.slane %v1790, 2
        %v1792 = vmax.f32 %v1790, %v1791
        %v1793 = vrot.slane %v1792, 1
        %v1794 = vmax.f32 %v1792, %v1793
        %v1795 = vmax.f32 %v1759, %v1760
        %v1796 = vrot.slane %v1795, 4
        %v1797 = vmax.f32 %v1795, %v1796
        %v1798 = vrot.slane %v1797, 2
        %v1799 = vmax.f32 %v1797, %v1798
        %v1800 = vrot.slane %v1799, 1
        %v1801 = vmax.f32 %v1799, %v1800
        %v1802 = vmax.f32 %v1761, %v1762
        %v1803 = vrot.slane %v1802, 4
        %v1804 = vmax.f32 %v1802, %v1803
        %v1805 = vrot.slane %v1804, 2
        %v1806 = vmax.f32 %v1804, %v1805
        %v1807 = vrot.slane %v1806, 1
        %v1808 = vmax.f32 %v1806, %v1807
        %v1809 = vmax.f32 %v1763, %v1764
        %v1810 = vrot.slane %v1809, 4
        %v1811 = vmax.f32 %v1809, %v1810
        %v1812 = vrot.slane %v1811, 2
        %v1813 = vmax.f32 %v1811, %v1812
        %v1814 = vrot.slane %v1813, 1
        %v1815 = vmax.f32 %v1813, %v1814
        %v1816 = vmax.f32 %v1765, %v1766
        %v1817 = vrot.slane %v1816, 4
        %v1818 = vmax.f32 %v1816, %v1817
        %v1819 = vrot.slane %v1818, 2
        %v1820 = vmax.f32 %v1818, %v1819
        %v1821 = vrot.slane %v1820, 1
        %v1822 = vmax.f32 %v1820, %v1821
        %v1823 = vpack.c.bf16 %v1736, %v1735
        %v1824 = vpack.c.bf16 %v1738, %v1737
        %v1825 = vpack.c.bf16 %v1740, %v1739
        %v1826 = vpack.c.bf16 %v1742, %v1741
        %v1827 = vpack.c.bf16 %v1744, %v1743
        %v1828 = vpack.c.bf16 %v1746, %v1745
        %v1829 = vpack.c.bf16 %v1748, %v1747
        %v1830 = vpack.c.bf16 %v1750, %v1749
        %s1831 = scalar_lea.vmem [#allocation2], 128
        %v1832 = vld [vmem:[%s1831] sm:$0xf]
        %v1833 = vld [vmem:[%s1831 + $0x4] sm:$0xf]
        %v1834 = vld [vmem:[%s1831 + $0x8] sm:$0xf]
        %v1835 = vld [vmem:[%s1831 + $0xc] sm:$0xf]
        %v1836 = vld [vmem:[%s1831 + $0x10] sm:$0xf]
        %v1837 = vld [vmem:[%s1831 + $0x14] sm:$0xf]
        %v1838 = vld [vmem:[%s1831 + $0x18] sm:$0xf]
        %v1839 = vld [vmem:[%s1831 + $0x1c] sm:$0xf]
        %v1840 = vld [vmem:[%s1831 + $0x20] sm:$0xf]
        %v1841 = vld [vmem:[%s1831 + $0x24] sm:$0xf]
        %v1842 = vld [vmem:[%s1831 + $0x28] sm:$0xf]
        %v1843 = vld [vmem:[%s1831 + $0x2c] sm:$0xf]
        %v1844 = vld [vmem:[%s1831 + $0x30] sm:$0xf]
        %v1845 = vld [vmem:[%s1831 + $0x34] sm:$0xf]
        %v1846 = vld [vmem:[%s1831 + $0x38] sm:$0xf]
        %v1847 = vld [vmem:[%s1831 + $0x3c] sm:$0xf]
        %s1848 = scalar_lea.vmem [#allocation2], 192
        %v1849 = vld [vmem:[%s1848] sm:$0xf]
        %v1850 = vld [vmem:[%s1848 + $0x4] sm:$0xf]
        %v1851 = vld [vmem:[%s1848 + $0x8] sm:$0xf]
        %v1852 = vld [vmem:[%s1848 + $0xc] sm:$0xf]
        %v1853 = vld [vmem:[%s1848 + $0x10] sm:$0xf]
        %v1854 = vld [vmem:[%s1848 + $0x14] sm:$0xf]
        %v1855 = vld [vmem:[%s1848 + $0x18] sm:$0xf]
        %v1856 = vld [vmem:[%s1848 + $0x1c] sm:$0xf]
        %v1857 = vld [vmem:[%s1848 + $0x20] sm:$0xf]
        %v1858 = vld [vmem:[%s1848 + $0x24] sm:$0xf]
        %v1859 = vld [vmem:[%s1848 + $0x28] sm:$0xf]
        %v1860 = vld [vmem:[%s1848 + $0x2c] sm:$0xf]
        %v1861 = vld [vmem:[%s1848 + $0x30] sm:$0xf]
        %v1862 = vld [vmem:[%s1848 + $0x34] sm:$0xf]
        %v1863 = vld [vmem:[%s1848 + $0x38] sm:$0xf]
        %v1864 = vld [vmem:[%s1848 + $0x3c] sm:$0xf]
        %v1881 = vunpack.c.l.b16 %v1832
        %v1882 = vunpack.c.l.b16 %v1833
        %v1883 = vunpack.c.l.b16 %v1834
        %v1884 = vunpack.c.l.b16 %v1835
        %v1885 = vunpack.c.l.b16 %v1836
        %v1886 = vunpack.c.l.b16 %v1837
        %v1887 = vunpack.c.l.b16 %v1838
        %v1888 = vunpack.c.l.b16 %v1839
        %v1889 = vunpack.c.l.b16 %v1840
        %v1890 = vunpack.c.l.b16 %v1841
        %v1891 = vunpack.c.l.b16 %v1842
        %v1892 = vunpack.c.l.b16 %v1843
        %v1893 = vunpack.c.l.b16 %v1844
        %v1894 = vunpack.c.l.b16 %v1845
        %v1895 = vunpack.c.l.b16 %v1846
        %v1896 = vunpack.c.l.b16 %v1847
        %v1897 = vpack.c.b16 %v1882, %v1881
        %v1898 = vpack.c.b16 %v1884, %v1883
        %v1899 = vpack.c.b16 %v1886, %v1885
        %v1900 = vpack.c.b16 %v1888, %v1887
        %v1901 = vpack.c.b16 %v1890, %v1889
        %v1902 = vpack.c.b16 %v1892, %v1891
        %v1903 = vpack.c.b16 %v1894, %v1893
        %v1904 = vpack.c.b16 %v1896, %v1895
        %1913 = vmatprep.subr.bf16.mxu0 0
        %1914 = vmatpush1.bf16.msra.mxu0 %v1904
        %1915 = vmatprep.subr.bf16.mxu0 0
        %1916 = vmatpush1.bf16.msra.mxu0 %v1903
        %1917 = vmatprep.subr.bf16.mxu0 0
        %1918 = vmatpush1.bf16.msra.mxu0 %v1902
        %1919 = vmatprep.subr.bf16.mxu0 0
        %1920 = vmatpush1.bf16.msra.mxu0 %v1901
        %1921 = vmatprep.subr.bf16.mxu0 0
        %1922 = vmatpush1.bf16.msra.mxu0 %v1900
        %1923 = vmatprep.subr.bf16.mxu0 0
        %1924 = vmatpush1.bf16.msra.mxu0 %v1899
        %1925 = vmatprep.subr.bf16.mxu0 0
        %1926 = vmatpush1.bf16.msra.mxu0 %v1898
        %1927 = vmatprep.subr.bf16.mxu0 0
        %1928 = vmatpush1.bf16.msra.mxu0 %v1897
        %1929 = vmatprep.subr.bf16.mxu0 0
        %1930 = vmatpush2.bf16.msra.mxu0 0
        %1931 = vmatprep.subr.bf16.mxu0 0
        %1932 = vmatpush2.bf16.msra.mxu0 0
        %1933 = vmatprep.subr.bf16.mxu0 0
        %1934 = vmatpush2.bf16.msra.mxu0 0
        %1935 = vmatprep.subr.bf16.mxu0 0
        %1936 = vmatpush2.bf16.msra.mxu0 0
        %1937 = vmatprep.subr.bf16.mxu0 0
        %1938 = vmatpush2.bf16.msra.mxu0 0
        %1939 = vmatprep.subr.bf16.mxu0 0
        %1940 = vmatpush2.bf16.msra.mxu0 0
        %1941 = vmatprep.subr.bf16.mxu0 0
        %1942 = vmatpush2.bf16.msra.mxu0 0
        %1943 = vmatprep.subr.bf16.mxu0 0
        %1944 = vmatpush2.bf16.msra.mxu0 0
        %1945 = vmatprep.mubr.bf16.mxu0 0
        %1946 = vmatmul.mubr.bf16.gmra.mxu0 %v1823
        %v1947 = vpop.f32.mrf.mxu0
        %v1948 = vadd.f32 0.0, %v1947
        %v1949 = vpop.f32.mrf.mxu0
        %v1950 = vpop.f32.mrf.mxu0
        %v1951 = vadd.f32 0.0, %v1950
        %v1952 = vpop.f32.mrf.mxu0
        %1953 = vmatprep.mubr.bf16.mxu0 0
        %1954 = vmatmul.mubr.bf16.gmra.mxu0 %v1824
        %v1955 = vpop.f32.mrf.mxu0
        %v1956 = vadd.f32 0.0, %v1955
        %v1957 = vpop.f32.mrf.mxu0
        %v1958 = vpop.f32.mrf.mxu0
        %v1959 = vadd.f32 0.0, %v1958
        %v1960 = vpop.f32.mrf.mxu0
        %1961 = vmatprep.mubr.bf16.mxu0 0
        %1962 = vmatmul.mubr.bf16.gmra.mxu0 %v1825
        %v1963 = vpop.f32.mrf.mxu0
        %v1964 = vadd.f32 0.0, %v1963
        %v1965 = vpop.f32.mrf.mxu0
        %v1966 = vpop.f32.mrf.mxu0
        %v1967 = vadd.f32 0.0, %v1966
        %v1968 = vpop.f32.mrf.mxu0
        %1969 = vmatprep.mubr.bf16.mxu0 0
        %1970 = vmatmul.mubr.bf16.gmra.mxu0 %v1826
        %v1971 = vpop.f32.mrf.mxu0
        %v1972 = vadd.f32 0.0, %v1971
        %v1973 = vpop.f32.mrf.mxu0
        %v1974 = vpop.f32.mrf.mxu0
        %v1975 = vadd.f32 0.0, %v1974
        %v1976 = vpop.f32.mrf.mxu0
        %1977 = vmatprep.mubr.bf16.mxu0 0
        %1978 = vmatmul.mubr.bf16.gmra.mxu0 %v1827
        %v1979 = vpop.f32.mrf.mxu0
        %v1980 = vadd.f32 0.0, %v1979
        %v1981 = vpop.f32.mrf.mxu0
        %v1982 = vpop.f32.mrf.mxu0
        %v1983 = vadd.f32 0.0, %v1982
        %v1984 = vpop.f32.mrf.mxu0
        %1985 = vmatprep.mubr.bf16.mxu0 0
        %1986 = vmatmul.mubr.bf16.gmra.mxu0 %v1828
        %v1987 = vpop.f32.mrf.mxu0
        %v1988 = vadd.f32 0.0, %v1987
        %v1989 = vpop.f32.mrf.mxu0
        %v1990 = vpop.f32.mrf.mxu0
        %v1991 = vadd.f32 0.0, %v1990
        %v1992 = vpop.f32.mrf.mxu0
        %1993 = vmatprep.mubr.bf16.mxu0 0
        %1994 = vmatmul.mubr.bf16.gmra.mxu0 %v1829
        %v1995 = vpop.f32.mrf.mxu0
        %v1996 = vadd.f32 0.0, %v1995
        %v1997 = vpop.f32.mrf.mxu0
        %v1998 = vpop.f32.mrf.mxu0
        %v1999 = vadd.f32 0.0, %v1998
        %v2000 = vpop.f32.mrf.mxu0
        %2001 = vmatprep.mubr.bf16.mxu0 0
        %2002 = vmatmul.mubr.bf16.gmra.mxu0 %v1830
        %v2003 = vpop.f32.mrf.mxu0
        %v2004 = vadd.f32 0.0, %v2003
        %v2005 = vpop.f32.mrf.mxu0
        %v2006 = vpop.f32.mrf.mxu0
        %v2007 = vadd.f32 0.0, %v2006
        %v2008 = vpop.f32.mrf.mxu0
        %2009 = vdwg.mxu0
        %v2010 = vpack.c.bf16 %v1773, %v1773
        %v2011 = vpack.c.bf16 %v1780, %v1780
        %v2012 = vpack.c.bf16 %v1787, %v1787
        %v2013 = vpack.c.bf16 %v1794, %v1794
        %v2014 = vpack.c.bf16 %v1801, %v1801
        %v2015 = vpack.c.bf16 %v1808, %v1808
        %v2016 = vpack.c.bf16 %v1815, %v1815
        %v2017 = vpack.c.bf16 %v1822, %v1822
        %v2026 = vunpack.c.l.b16 %v2010
        %v2027 = vunpack.c.l.b16 %v2011
        %v2028 = vunpack.c.l.b16 %v2012
        %v2029 = vunpack.c.l.b16 %v2013
        %v2030 = vunpack.c.l.b16 %v2014
        %v2031 = vunpack.c.l.b16 %v2015
        %v2032 = vunpack.c.l.b16 %v2016
        %v2033 = vunpack.c.l.b16 %v2017
        %v2034 = vsel %vm1245, %v2027, %v2026
        %v2035 = vsel %vm1247, %v2028, %v2034
        %v2036 = vsel %vm1249, %v2029, %v2035
        %v2037 = vsel %vm1251, %v2030, %v2036
        %v2038 = vsel %vm1253, %v2031, %v2037
        %v2039 = vsel %vm1255, %v2032, %v2038
        %v2040 = vsel %vm1257, %v2033, %v2039
        %v2041 = vpack.c.b16 %v2040, %v2040
        %v2059 = vunpack.c.l.b16 %v1849
        %v2060 = vunpack.c.l.b16 %v1850
        %v2061 = vunpack.c.l.b16 %v1851
        %v2062 = vunpack.c.l.b16 %v1852
        %v2063 = vunpack.c.l.b16 %v1853
        %v2064 = vunpack.c.l.b16 %v1854
        %v2065 = vunpack.c.l.b16 %v1855
        %v2066 = vunpack.c.l.b16 %v1856
        %v2067 = vunpack.c.l.b16 %v1857
        %v2068 = vunpack.c.l.b16 %v1858
        %v2069 = vunpack.c.l.b16 %v1859
        %v2070 = vunpack.c.l.b16 %v1860
        %v2071 = vunpack.c.l.b16 %v1861
        %v2072 = vunpack.c.l.b16 %v1862
        %v2073 = vunpack.c.l.b16 %v1863
        %v2074 = vunpack.c.l.b16 %v1864
        %v2075 = vpack.c.b16 %v2060, %v2059
        %v2076 = vpack.c.b16 %v2062, %v2061
        %v2077 = vpack.c.b16 %v2064, %v2063
        %v2078 = vpack.c.b16 %v2066, %v2065
        %v2079 = vpack.c.b16 %v2068, %v2067
        %v2080 = vpack.c.b16 %v2070, %v2069
        %v2081 = vpack.c.b16 %v2072, %v2071
        %v2082 = vpack.c.b16 %v2074, %v2073
        %2091 = vmatprep.subr.bf16.mxu0 0
        %2092 = vmatpush1.bf16.msra.mxu0 %v2082
        %2093 = vmatprep.subr.bf16.mxu0 0
        %2094 = vmatpush1.bf16.msra.mxu0 %v2081
        %2095 = vmatprep.subr.bf16.mxu0 0
        %2096 = vmatpush1.bf16.msra.mxu0 %v2080
        %2097 = vmatprep.subr.bf16.mxu0 0
        %2098 = vmatpush1.bf16.msra.mxu0 %v2079
        %2099 = vmatprep.subr.bf16.mxu0 0
        %2100 = vmatpush1.bf16.msra.mxu0 %v2078
        %2101 = vmatprep.subr.bf16.mxu0 0
        %2102 = vmatpush1.bf16.msra.mxu0 %v2077
        %2103 = vmatprep.subr.bf16.mxu0 0
        %2104 = vmatpush1.bf16.msra.mxu0 %v2076
        %2105 = vmatprep.subr.bf16.mxu0 0
        %2106 = vmatpush1.bf16.msra.mxu0 %v2075
        %2107 = vmatprep.subr.bf16.mxu0 0
        %2108 = vmatpush2.bf16.msra.mxu0 0
        %2109 = vmatprep.subr.bf16.mxu0 0
        %2110 = vmatpush2.bf16.msra.mxu0 0
        %2111 = vmatprep.subr.bf16.mxu0 0
        %2112 = vmatpush2.bf16.msra.mxu0 0
        %2113 = vmatprep.subr.bf16.mxu0 0
        %2114 = vmatpush2.bf16.msra.mxu0 0
        %2115 = vmatprep.subr.bf16.mxu0 0
        %2116 = vmatpush2.bf16.msra.mxu0 0
        %2117 = vmatprep.subr.bf16.mxu0 0
        %2118 = vmatpush2.bf16.msra.mxu0 0
        %2119 = vmatprep.subr.bf16.mxu0 0
        %2120 = vmatpush2.bf16.msra.mxu0 0
        %2121 = vmatprep.subr.bf16.mxu0 0
        %2122 = vmatpush2.bf16.msra.mxu0 0
        %2123 = vmatprep.mubr.bf16.mxu0 0
        %2124 = vmatmul.mubr.bf16.gmra.mxu0 %v2041
        %v2125 = vpop.f32.mrf.mxu0
        %v2126 = vadd.f32 0.0, %v2125
        %v2127 = vpop.f32.mrf.mxu0
        %v2128 = vpop.f32.mrf.mxu0
        %v2129 = vpop.f32.mrf.mxu0
        %2130 = vdwg.mxu0
        %v2132 = vcombine.high %v2126, %v2126
        %v2134 = vunpack.c.l.s4 1966171168
        %v2135 = vunpack.c.0.s8 %v2134
        %v2136 = vlaneseq
        %v2137 = vshrl.u32 %v2136, 7
        %v2138 = vsub.s32 %v2135, %v2137
        %v2139 = vrot.slane %v2126, %v2138
        %v2141 = vunpack.c.l.s4 1966171168
        %v2142 = vunpack.c.0.s8 %v2141
        %v2143 = vlaneseq
        %v2144 = vshrl.u32 %v2143, 7
        %v2145 = vsub.s32 %v2142, %v2144
        %v2146 = vrot.slane %v2132, %v2145
        %v2147 = vcombine.high %v2139, %v2139
        %v2148 = vcombine.high %v2146, %v2146
        %v2150 = vunpack.c.l.s4 1966171168
        %v2151 = vunpack.c.0.s8 %v2150
        %v2152 = vlaneseq
        %v2153 = vshrl.u32 %v2152, 7
        %v2154 = vsub.s32 %v2151, %v2153
        %v2155 = vrot.slane %v2139, %v2154
        %v2157 = vunpack.c.l.s4 1966171168
        %v2158 = vunpack.c.0.s8 %v2157
        %v2159 = vlaneseq
        %v2160 = vshrl.u32 %v2159, 7
        %v2161 = vsub.s32 %v2158, %v2160
        %v2162 = vrot.slane %v2146, %v2161
        %v2164 = vunpack.c.l.s4 1966171168
        %v2165 = vunpack.c.0.s8 %v2164
        %v2166 = vlaneseq
        %v2167 = vshrl.u32 %v2166, 7
        %v2168 = vsub.s32 %v2165, %v2167
        %v2169 = vrot.slane %v2147, %v2168
        %v2171 = vunpack.c.l.s4 1966171168
        %v2172 = vunpack.c.0.s8 %v2171
        %v2173 = vlaneseq
        %v2174 = vshrl.u32 %v2173, 7
        %v2175 = vsub.s32 %v2172, %v2174
        %v2176 = vrot.slane %v2148, %v2175
        %v2177 = vcombine.high %v2155, %v2155
        %v2178 = vcombine.high %v2162, %v2162
        %v2179 = vcombine.high %v2169, %v2169
        %v2180 = vcombine.high %v2176, %v2176
        %v2181 = vlaneseq
        %v2182 = vshrl.u32 %v2181, 7
        %v2183 = vsub.s32 0, %v2182
        %v2184 = vrot.slane %v2155, %v2183
        %v2185 = vlaneseq
        %v2186 = vshrl.u32 %v2185, 7
        %v2187 = vsub.s32 0, %v2186
        %v2188 = vrot.slane %v2169, %v2187
        %v2189 = vlaneseq
        %v2190 = vshrl.u32 %v2189, 7
        %v2191 = vsub.s32 0, %v2190
        %v2192 = vrot.slane %v2177, %v2191
        %v2193 = vlaneseq
        %v2194 = vshrl.u32 %v2193, 7
        %v2195 = vsub.s32 0, %v2194
        %v2196 = vrot.slane %v2179, %v2195
        %v2197 = vlaneseq
        %v2198 = vshrl.u32 %v2197, 7
        %v2199 = vsub.s32 0, %v2198
        %v2200 = vrot.slane %v2162, %v2199
        %v2201 = vlaneseq
        %v2202 = vshrl.u32 %v2201, 7
        %v2203 = vsub.s32 0, %v2202
        %v2204 = vrot.slane %v2176, %v2203
        %v2205 = vlaneseq
        %v2206 = vshrl.u32 %v2205, 7
        %v2207 = vsub.s32 0, %v2206
        %v2208 = vrot.slane %v2178, %v2207
        %v2209 = vlaneseq
        %v2210 = vshrl.u32 %v2209, 7
        %v2211 = vsub.s32 0, %v2210
        %v2212 = vrot.slane %v2180, %v2211
        %v2221 = vadd.f32 %v1948, %v2184
        %v2222 = vadd.f32 %v1951, %v2184
        %v2223 = vadd.f32 %v1956, %v2188
        %v2224 = vadd.f32 %v1959, %v2188
        %v2225 = vadd.f32 %v1964, %v2192
        %v2226 = vadd.f32 %v1967, %v2192
        %v2227 = vadd.f32 %v1972, %v2196
        %v2228 = vadd.f32 %v1975, %v2196
        %v2229 = vadd.f32 %v1980, %v2200
        %v2230 = vadd.f32 %v1983, %v2200
        %v2231 = vadd.f32 %v1988, %v2204
        %v2232 = vadd.f32 %v1991, %v2204
        %v2233 = vadd.f32 %v1996, %v2208
        %v2234 = vadd.f32 %v1999, %v2208
        %v2235 = vadd.f32 %v2004, %v2212
        %v2236 = vadd.f32 %v2007, %v2212
        %s2237 = scalar_lea.vmem %s4, 6
        %v2238 = vld [vmem:[%s2237] sm:$0x1]
        %s2239 = scalar_lea.vmem %s4, 7
        %v2240 = vld [vmem:[%s2239] sm:$0x1]
        %s2241 = scalar_lea.vmem %s4, 8
        %v2242 = vld [vmem:[%s2241] sm:$0x1]
        %v2244 = vlaneseq
        %v2245 = vshrl.u32 %v2244, 7
        %v2246 = vsub.s32 0, %v2245
        %v2247 = vrot.slane %v2238, %v2246
        %v2249 = vadd.f32 %v2221, %v2247
        %v2250 = vadd.f32 %v2222, %v2247
        %v2251 = vadd.f32 %v2223, %v2247
        %v2252 = vadd.f32 %v2224, %v2247
        %v2253 = vadd.f32 %v2225, %v2247
        %v2254 = vadd.f32 %v2226, %v2247
        %v2255 = vadd.f32 %v2227, %v2247
        %v2256 = vadd.f32 %v2228, %v2247
        %v2257 = vadd.f32 %v2229, %v2247
        %v2258 = vadd.f32 %v2230, %v2247
        %v2259 = vadd.f32 %v2231, %v2247
        %v2260 = vadd.f32 %v2232, %v2247
        %v2261 = vadd.f32 %v2233, %v2247
        %v2262 = vadd.f32 %v2234, %v2247
        %v2263 = vadd.f32 %v2235, %v2247
        %v2264 = vadd.f32 %v2236, %v2247
        %2265 = vadd.xlane.f32.xlu0 %v2249
        %v2266 = vpop.xlane.xlu0 %2265
        %2267 = vadd.xlane.f32.xlu0 %v2250
        %v2268 = vpop.xlane.xlu0 %2267
        %2269 = vadd.xlane.f32.xlu0 %v2251
        %v2270 = vpop.xlane.xlu0 %2269
        %2271 = vadd.xlane.f32.xlu0 %v2252
        %v2272 = vpop.xlane.xlu0 %2271
        %2273 = vadd.xlane.f32.xlu0 %v2253
        %v2274 = vpop.xlane.xlu0 %2273
        %2275 = vadd.xlane.f32.xlu0 %v2254
        %v2276 = vpop.xlane.xlu0 %2275
        %2277 = vadd.xlane.f32.xlu0 %v2255
        %v2278 = vpop.xlane.xlu0 %2277
        %2279 = vadd.xlane.f32.xlu0 %v2256
        %v2280 = vpop.xlane.xlu0 %2279
        %2281 = vadd.xlane.f32.xlu0 %v2257
        %v2282 = vpop.xlane.xlu0 %2281
        %2283 = vadd.xlane.f32.xlu0 %v2258
        %v2284 = vpop.xlane.xlu0 %2283
        %2285 = vadd.xlane.f32.xlu0 %v2259
        %v2286 = vpop.xlane.xlu0 %2285
        %2287 = vadd.xlane.f32.xlu0 %v2260
        %v2288 = vpop.xlane.xlu0 %2287
        %2289 = vadd.xlane.f32.xlu0 %v2261
        %v2290 = vpop.xlane.xlu0 %2289
        %2291 = vadd.xlane.f32.xlu0 %v2262
        %v2292 = vpop.xlane.xlu0 %2291
        %2293 = vadd.xlane.f32.xlu0 %v2263
        %v2294 = vpop.xlane.xlu0 %2293
        %2295 = vadd.xlane.f32.xlu0 %v2264
        %v2296 = vpop.xlane.xlu0 %2295
        %v2297 = vmul.f32 %v2266, 0.015625
        %v2298 = vmul.f32 %v2268, 0.015625
        %v2299 = vmul.f32 %v2270, 0.015625
        %v2300 = vmul.f32 %v2272, 0.015625
        %v2301 = vmul.f32 %v2274, 0.015625
        %v2302 = vmul.f32 %v2276, 0.015625
        %v2303 = vmul.f32 %v2278, 0.015625
        %v2304 = vmul.f32 %v2280, 0.015625
        %v2305 = vmul.f32 %v2282, 0.015625
        %v2306 = vmul.f32 %v2284, 0.015625
        %v2307 = vmul.f32 %v2286, 0.015625
        %v2308 = vmul.f32 %v2288, 0.015625
        %v2309 = vmul.f32 %v2290, 0.015625
        %v2310 = vmul.f32 %v2292, 0.015625
        %v2311 = vmul.f32 %v2294, 0.015625
        %v2312 = vmul.f32 %v2296, 0.015625
        %v2313 = vmul.f32 %v2249, %v2249
        %v2314 = vmul.f32 %v2250, %v2250
        %v2315 = vmul.f32 %v2251, %v2251
        %v2316 = vmul.f32 %v2252, %v2252
        %v2317 = vmul.f32 %v2253, %v2253
        %v2318 = vmul.f32 %v2254, %v2254
        %v2319 = vmul.f32 %v2255, %v2255
        %v2320 = vmul.f32 %v2256, %v2256
        %v2321 = vmul.f32 %v2257, %v2257
        %v2322 = vmul.f32 %v2258, %v2258
        %v2323 = vmul.f32 %v2259, %v2259
        %v2324 = vmul.f32 %v2260, %v2260
        %v2325 = vmul.f32 %v2261, %v2261
        %v2326 = vmul.f32 %v2262, %v2262
        %v2327 = vmul.f32 %v2263, %v2263
        %v2328 = vmul.f32 %v2264, %v2264
        %2329 = vadd.xlane.f32.xlu0 %v2313
        %v2330 = vpop.xlane.xlu0 %2329
        %2331 = vadd.xlane.f32.xlu0 %v2314
        %v2332 = vpop.xlane.xlu0 %2331
        %2333 = vadd.xlane.f32.xlu0 %v2315
        %v2334 = vpop.xlane.xlu0 %2333
        %2335 = vadd.xlane.f32.xlu0 %v2316
        %v2336 = vpop.xlane.xlu0 %2335
        %2337 = vadd.xlane.f32.xlu0 %v2317
        %v2338 = vpop.xlane.xlu0 %2337
        %2339 = vadd.xlane.f32.xlu0 %v2318
        %v2340 = vpop.xlane.xlu0 %2339
        %2341 = vadd.xlane.f32.xlu0 %v2319
        %v2342 = vpop.xlane.xlu0 %2341
        %2343 = vadd.xlane.f32.xlu0 %v2320
        %v2344 = vpop.xlane.xlu0 %2343
        %2345 = vadd.xlane.f32.xlu0 %v2321
        %v2346 = vpop.xlane.xlu0 %2345
        %2347 = vadd.xlane.f32.xlu0 %v2322
        %v2348 = vpop.xlane.xlu0 %2347
        %2349 = vadd.xlane.f32.xlu0 %v2323
        %v2350 = vpop.xlane.xlu0 %2349
        %2351 = vadd.xlane.f32.xlu0 %v2324
        %v2352 = vpop.xlane.xlu0 %2351
        %2353 = vadd.xlane.f32.xlu0 %v2325
        %v2354 = vpop.xlane.xlu0 %2353
        %2355 = vadd.xlane.f32.xlu0 %v2326
        %v2356 = vpop.xlane.xlu0 %2355
        %2357 = vadd.xlane.f32.xlu0 %v2327
        %v2358 = vpop.xlane.xlu0 %2357
        %2359 = vadd.xlane.f32.xlu0 %v2328
        %v2360 = vpop.xlane.xlu0 %2359
        %v2361 = vmul.f32 %v2330, 0.015625
        %v2362 = vmul.f32 %v2332, 0.015625
        %v2363 = vmul.f32 %v2334, 0.015625
        %v2364 = vmul.f32 %v2336, 0.015625
        %v2365 = vmul.f32 %v2338, 0.015625
        %v2366 = vmul.f32 %v2340, 0.015625
        %v2367 = vmul.f32 %v2342, 0.015625
        %v2368 = vmul.f32 %v2344, 0.015625
        %v2369 = vmul.f32 %v2346, 0.015625
        %v2370 = vmul.f32 %v2348, 0.015625
        %v2371 = vmul.f32 %v2350, 0.015625
        %v2372 = vmul.f32 %v2352, 0.015625
        %v2373 = vmul.f32 %v2354, 0.015625
        %v2374 = vmul.f32 %v2356, 0.015625
        %v2375 = vmul.f32 %v2358, 0.015625
        %v2376 = vmul.f32 %v2360, 0.015625
        %v2377 = vmul.f32 %v2297, %v2297
        %v2378 = vmul.f32 %v2298, %v2298
        %v2379 = vmul.f32 %v2299, %v2299
        %v2380 = vmul.f32 %v2300, %v2300
        %v2381 = vmul.f32 %v2301, %v2301
        %v2382 = vmul.f32 %v2302, %v2302
        %v2383 = vmul.f32 %v2303, %v2303
        %v2384 = vmul.f32 %v2304, %v2304
        %v2385 = vmul.f32 %v2305, %v2305
        %v2386 = vmul.f32 %v2306, %v2306
        %v2387 = vmul.f32 %v2307, %v2307
        %v2388 = vmul.f32 %v2308, %v2308
        %v2389 = vmul.f32 %v2309, %v2309
        %v2390 = vmul.f32 %v2310, %v2310
        %v2391 = vmul.f32 %v2311, %v2311
        %v2392 = vmul.f32 %v2312, %v2312
        %v2393 = vsub.f32 %v2361, %v2377
        %v2394 = vsub.f32 %v2362, %v2378
        %v2395 = vsub.f32 %v2363, %v2379
        %v2396 = vsub.f32 %v2364, %v2380
        %v2397 = vsub.f32 %v2365, %v2381
        %v2398 = vsub.f32 %v2366, %v2382
        %v2399 = vsub.f32 %v2367, %v2383
        %v2400 = vsub.f32 %v2368, %v2384
        %v2401 = vsub.f32 %v2369, %v2385
        %v2402 = vsub.f32 %v2370, %v2386
        %v2403 = vsub.f32 %v2371, %v2387
        %v2404 = vsub.f32 %v2372, %v2388
        %v2405 = vsub.f32 %v2373, %v2389
        %v2406 = vsub.f32 %v2374, %v2390
        %v2407 = vsub.f32 %v2375, %v2391
        %v2408 = vsub.f32 %v2376, %v2392
        %v2409 = vsub.f32 %v2249, %v2297
        %v2410 = vsub.f32 %v2250, %v2298
        %v2411 = vsub.f32 %v2251, %v2299
        %v2412 = vsub.f32 %v2252, %v2300
        %v2413 = vsub.f32 %v2253, %v2301
        %v2414 = vsub.f32 %v2254, %v2302
        %v2415 = vsub.f32 %v2255, %v2303
        %v2416 = vsub.f32 %v2256, %v2304
        %v2417 = vsub.f32 %v2257, %v2305
        %v2418 = vsub.f32 %v2258, %v2306
        %v2419 = vsub.f32 %v2259, %v2307
        %v2420 = vsub.f32 %v2260, %v2308
        %v2421 = vsub.f32 %v2261, %v2309
        %v2422 = vsub.f32 %v2262, %v2310
        %v2423 = vsub.f32 %v2263, %v2311
        %v2424 = vsub.f32 %v2264, %v2312
        %v2425 = vadd.f32 %v2393, 1e-05
        %v2426 = vadd.f32 %v2394, 1e-05
        %v2427 = vadd.f32 %v2395, 1e-05
        %v2428 = vadd.f32 %v2396, 1e-05
        %v2429 = vadd.f32 %v2397, 1e-05
        %v2430 = vadd.f32 %v2398, 1e-05
        %v2431 = vadd.f32 %v2399, 1e-05
        %v2432 = vadd.f32 %v2400, 1e-05
        %v2433 = vadd.f32 %v2401, 1e-05
        %v2434 = vadd.f32 %v2402, 1e-05
        %v2435 = vadd.f32 %v2403, 1e-05
        %v2436 = vadd.f32 %v2404, 1e-05
        %v2437 = vadd.f32 %v2405, 1e-05
        %v2438 = vadd.f32 %v2406, 1e-05
        %v2439 = vadd.f32 %v2407, 1e-05
        %v2440 = vadd.f32 %v2408, 1e-05
        %v2441 = vrsqrt.pop %v2425
        %v2442 = vrsqrt.pop %v2426
        %v2443 = vrsqrt.pop %v2427
        %v2444 = vrsqrt.pop %v2428
        %v2445 = vrsqrt.pop %v2429
        %v2446 = vrsqrt.pop %v2430
        %v2447 = vrsqrt.pop %v2431
        %v2448 = vrsqrt.pop %v2432
        %v2449 = vrsqrt.pop %v2433
        %v2450 = vrsqrt.pop %v2434
        %v2451 = vrsqrt.pop %v2435
        %v2452 = vrsqrt.pop %v2436
        %v2453 = vrsqrt.pop %v2437
        %v2454 = vrsqrt.pop %v2438
        %v2455 = vrsqrt.pop %v2439
        %v2456 = vrsqrt.pop %v2440
        %v2457 = vmul.f32 %v2409, %v2441
        %v2458 = vmul.f32 %v2410, %v2442
        %v2459 = vmul.f32 %v2411, %v2443
        %v2460 = vmul.f32 %v2412, %v2444
        %v2461 = vmul.f32 %v2413, %v2445
        %v2462 = vmul.f32 %v2414, %v2446
        %v2463 = vmul.f32 %v2415, %v2447
        %v2464 = vmul.f32 %v2416, %v2448
        %v2465 = vmul.f32 %v2417, %v2449
        %v2466 = vmul.f32 %v2418, %v2450
        %v2467 = vmul.f32 %v2419, %v2451
        %v2468 = vmul.f32 %v2420, %v2452
        %v2469 = vmul.f32 %v2421, %v2453
        %v2470 = vmul.f32 %v2422, %v2454
        %v2471 = vmul.f32 %v2423, %v2455
        %v2472 = vmul.f32 %v2424, %v2456
        %v2474 = vlaneseq
        %v2475 = vshrl.u32 %v2474, 7
        %v2476 = vsub.s32 0, %v2475
        %v2477 = vrot.slane %v2240, %v2476
        %v2479 = vmul.f32 %v2457, %v2477
        %v2480 = vmul.f32 %v2458, %v2477
        %v2481 = vmul.f32 %v2459, %v2477
        %v2482 = vmul.f32 %v2460, %v2477
        %v2483 = vmul.f32 %v2461, %v2477
        %v2484 = vmul.f32 %v2462, %v2477
        %v2485 = vmul.f32 %v2463, %v2477
        %v2486 = vmul.f32 %v2464, %v2477
        %v2487 = vmul.f32 %v2465, %v2477
        %v2488 = vmul.f32 %v2466, %v2477
        %v2489 = vmul.f32 %v2467, %v2477
        %v2490 = vmul.f32 %v2468, %v2477
        %v2491 = vmul.f32 %v2469, %v2477
        %v2492 = vmul.f32 %v2470, %v2477
        %v2493 = vmul.f32 %v2471, %v2477
        %v2494 = vmul.f32 %v2472, %v2477
        %v2496 = vlaneseq
        %v2497 = vshrl.u32 %v2496, 7
        %v2498 = vsub.s32 0, %v2497
        %v2499 = vrot.slane %v2242, %v2498
        %v2501 = vadd.f32 %v2479, %v2499
        %v2502 = vadd.f32 %v2480, %v2499
        %v2503 = vadd.f32 %v2481, %v2499
        %v2504 = vadd.f32 %v2482, %v2499
        %v2505 = vadd.f32 %v2483, %v2499
        %v2506 = vadd.f32 %v2484, %v2499
        %v2507 = vadd.f32 %v2485, %v2499
        %v2508 = vadd.f32 %v2486, %v2499
        %v2509 = vadd.f32 %v2487, %v2499
        %v2510 = vadd.f32 %v2488, %v2499
        %v2511 = vadd.f32 %v2489, %v2499
        %v2512 = vadd.f32 %v2490, %v2499
        %v2513 = vadd.f32 %v2491, %v2499
        %v2514 = vadd.f32 %v2492, %v2499
        %v2515 = vadd.f32 %v2493, %v2499
        %v2516 = vadd.f32 %v2494, %v2499
        %v2517 = vmax.f32 %v2501, 0.0
        %v2518 = vmax.f32 %v2502, 0.0
        %v2519 = vmax.f32 %v2503, 0.0
        %v2520 = vmax.f32 %v2504, 0.0
        %v2521 = vmax.f32 %v2505, 0.0
        %v2522 = vmax.f32 %v2506, 0.0
        %v2523 = vmax.f32 %v2507, 0.0
        %v2524 = vmax.f32 %v2508, 0.0
        %v2525 = vmax.f32 %v2509, 0.0
        %v2526 = vmax.f32 %v2510, 0.0
        %v2527 = vmax.f32 %v2511, 0.0
        %v2528 = vmax.f32 %v2512, 0.0
        %v2529 = vmax.f32 %v2513, 0.0
        %v2530 = vmax.f32 %v2514, 0.0
        %v2531 = vmax.f32 %v2515, 0.0
        %v2532 = vmax.f32 %v2516, 0.0
        %v2533 = vadd.f32 %v2517, %v886
        %v2534 = vadd.f32 %v2518, %v891
        %v2535 = vadd.f32 %v2519, %v896
        %v2536 = vadd.f32 %v2520, %v901
        %v2537 = vadd.f32 %v2521, %v906
        %v2538 = vadd.f32 %v2522, %v911
        %v2539 = vadd.f32 %v2523, %v916
        %v2540 = vadd.f32 %v2524, %v921
        %v2541 = vadd.f32 %v2525, %v926
        %v2542 = vadd.f32 %v2526, %v931
        %v2543 = vadd.f32 %v2527, %v936
        %v2544 = vadd.f32 %v2528, %v941
        %v2545 = vadd.f32 %v2529, %v946
        %v2546 = vadd.f32 %v2530, %v951
        %v2547 = vadd.f32 %v2531, %v956
        %v2548 = vadd.f32 %v2532, %v961
        %v2549 = vmax.f32 %v2533, %v2534
        %v2550 = vrot.slane %v2549, 4
        %v2551 = vmax.f32 %v2549, %v2550
        %v2552 = vrot.slane %v2551, 2
        %v2553 = vmax.f32 %v2551, %v2552
        %v2554 = vrot.slane %v2553, 1
        %v2555 = vmax.f32 %v2553, %v2554
        %v2556 = vmax.f32 %v2535, %v2536
        %v2557 = vrot.slane %v2556, 4
        %v2558 = vmax.f32 %v2556, %v2557
        %v2559 = vrot.slane %v2558, 2
        %v2560 = vmax.f32 %v2558, %v2559
        %v2561 = vrot.slane %v2560, 1
        %v2562 = vmax.f32 %v2560, %v2561
        %v2563 = vmax.f32 %v2537, %v2538
        %v2564 = vrot.slane %v2563, 4
        %v2565 = vmax.f32 %v2563, %v2564
        %v2566 = vrot.slane %v2565, 2
        %v2567 = vmax.f32 %v2565, %v2566
        %v2568 = vrot.slane %v2567, 1
        %v2569 = vmax.f32 %v2567, %v2568
        %v2570 = vmax.f32 %v2539, %v2540
        %v2571 = vrot.slane %v2570, 4
        %v2572 = vmax.f32 %v2570, %v2571
        %v2573 = vrot.slane %v2572, 2
        %v2574 = vmax.f32 %v2572, %v2573
        %v2575 = vrot.slane %v2574, 1
        %v2576 = vmax.f32 %v2574, %v2575
        %v2577 = vmax.f32 %v2541, %v2542
        %v2578 = vrot.slane %v2577, 4
        %v2579 = vmax.f32 %v2577, %v2578
        %v2580 = vrot.slane %v2579, 2
        %v2581 = vmax.f32 %v2579, %v2580
        %v2582 = vrot.slane %v2581, 1
        %v2583 = vmax.f32 %v2581, %v2582
        %v2584 = vmax.f32 %v2543, %v2544
        %v2585 = vrot.slane %v2584, 4
        %v2586 = vmax.f32 %v2584, %v2585
        %v2587 = vrot.slane %v2586, 2
        %v2588 = vmax.f32 %v2586, %v2587
        %v2589 = vrot.slane %v2588, 1
        %v2590 = vmax.f32 %v2588, %v2589
        %v2591 = vmax.f32 %v2545, %v2546
        %v2592 = vrot.slane %v2591, 4
        %v2593 = vmax.f32 %v2591, %v2592
        %v2594 = vrot.slane %v2593, 2
        %v2595 = vmax.f32 %v2593, %v2594
        %v2596 = vrot.slane %v2595, 1
        %v2597 = vmax.f32 %v2595, %v2596
        %v2598 = vmax.f32 %v2547, %v2548
        %v2599 = vrot.slane %v2598, 4
        %v2600 = vmax.f32 %v2598, %v2599
        %v2601 = vrot.slane %v2600, 2
        %v2602 = vmax.f32 %v2600, %v2601
        %v2603 = vrot.slane %v2602, 1
        %v2604 = vmax.f32 %v2602, %v2603
        %v2605 = vpack.c.bf16 %v2518, %v2517
        %v2606 = vpack.c.bf16 %v2520, %v2519
        %v2607 = vpack.c.bf16 %v2522, %v2521
        %v2608 = vpack.c.bf16 %v2524, %v2523
        %v2609 = vpack.c.bf16 %v2526, %v2525
        %v2610 = vpack.c.bf16 %v2528, %v2527
        %v2611 = vpack.c.bf16 %v2530, %v2529
        %v2612 = vpack.c.bf16 %v2532, %v2531
        %s2613 = scalar_lea.vmem [#allocation2], 256
        %v2614 = vld [vmem:[%s2613] sm:$0xf]
        %v2615 = vld [vmem:[%s2613 + $0x4] sm:$0xf]
        %v2616 = vld [vmem:[%s2613 + $0x8] sm:$0xf]
        %v2617 = vld [vmem:[%s2613 + $0xc] sm:$0xf]
        %v2618 = vld [vmem:[%s2613 + $0x10] sm:$0xf]
        %v2619 = vld [vmem:[%s2613 + $0x14] sm:$0xf]
        %v2620 = vld [vmem:[%s2613 + $0x18] sm:$0xf]
        %v2621 = vld [vmem:[%s2613 + $0x1c] sm:$0xf]
        %v2622 = vld [vmem:[%s2613 + $0x20] sm:$0xf]
        %v2623 = vld [vmem:[%s2613 + $0x24] sm:$0xf]
        %v2624 = vld [vmem:[%s2613 + $0x28] sm:$0xf]
        %v2625 = vld [vmem:[%s2613 + $0x2c] sm:$0xf]
        %v2626 = vld [vmem:[%s2613 + $0x30] sm:$0xf]
        %v2627 = vld [vmem:[%s2613 + $0x34] sm:$0xf]
        %v2628 = vld [vmem:[%s2613 + $0x38] sm:$0xf]
        %v2629 = vld [vmem:[%s2613 + $0x3c] sm:$0xf]
        %v2646 = vunpack.c.l.b16 %v2614
        %v2647 = vunpack.c.l.b16 %v2615
        %v2648 = vunpack.c.l.b16 %v2616
        %v2649 = vunpack.c.l.b16 %v2617
        %v2650 = vunpack.c.l.b16 %v2618
        %v2651 = vunpack.c.l.b16 %v2619
        %v2652 = vunpack.c.l.b16 %v2620
        %v2653 = vunpack.c.l.b16 %v2621
        %v2654 = vunpack.c.l.b16 %v2622
        %v2655 = vunpack.c.l.b16 %v2623
        %v2656 = vunpack.c.l.b16 %v2624
        %v2657 = vunpack.c.l.b16 %v2625
        %v2658 = vunpack.c.l.b16 %v2626
        %v2659 = vunpack.c.l.b16 %v2627
        %v2660 = vunpack.c.l.b16 %v2628
        %v2661 = vunpack.c.l.b16 %v2629
        %v2662 = vpack.c.b16 %v2647, %v2646
        %v2663 = vpack.c.b16 %v2649, %v2648
        %v2664 = vpack.c.b16 %v2651, %v2650
        %v2665 = vpack.c.b16 %v2653, %v2652
        %v2666 = vpack.c.b16 %v2655, %v2654
        %v2667 = vpack.c.b16 %v2657, %v2656
        %v2668 = vpack.c.b16 %v2659, %v2658
        %v2669 = vpack.c.b16 %v2661, %v2660
        %2678 = vmatprep.subr.bf16.mxu0 0
        %2679 = vmatpush1.bf16.msra.mxu0 %v2669
        %2680 = vmatprep.subr.bf16.mxu0 0
        %2681 = vmatpush1.bf16.msra.mxu0 %v2668
        %2682 = vmatprep.subr.bf16.mxu0 0
        %2683 = vmatpush1.bf16.msra.mxu0 %v2667
        %2684 = vmatprep.subr.bf16.mxu0 0
        %2685 = vmatpush1.bf16.msra.mxu0 %v2666
        %2686 = vmatprep.subr.bf16.mxu0 0
        %2687 = vmatpush1.bf16.msra.mxu0 %v2665
        %2688 = vmatprep.subr.bf16.mxu0 0
        %2689 = vmatpush1.bf16.msra.mxu0 %v2664
        %2690 = vmatprep.subr.bf16.mxu0 0
        %2691 = vmatpush1.bf16.msra.mxu0 %v2663
        %2692 = vmatprep.subr.bf16.mxu0 0
        %2693 = vmatpush1.bf16.msra.mxu0 %v2662
        %2694 = vmatprep.subr.bf16.mxu0 0
        %2695 = vmatpush2.bf16.msra.mxu0 0
        %2696 = vmatprep.subr.bf16.mxu0 0
        %2697 = vmatpush2.bf16.msra.mxu0 0
        %2698 = vmatprep.subr.bf16.mxu0 0
        %2699 = vmatpush2.bf16.msra.mxu0 0
        %2700 = vmatprep.subr.bf16.mxu0 0
        %2701 = vmatpush2.bf16.msra.mxu0 0
        %2702 = vmatprep.subr.bf16.mxu0 0
        %2703 = vmatpush2.bf16.msra.mxu0 0
        %2704 = vmatprep.subr.bf16.mxu0 0
        %2705 = vmatpush2.bf16.msra.mxu0 0
        %2706 = vmatprep.subr.bf16.mxu0 0
        %2707 = vmatpush2.bf16.msra.mxu0 0
        %2708 = vmatprep.subr.bf16.mxu0 0
        %2709 = vmatpush2.bf16.msra.mxu0 0
        %2710 = vmatprep.mubr.bf16.mxu0 0
        %2711 = vmatmul.mubr.bf16.gmra.mxu0 %v2605
        %v2712 = vpop.f32.mrf.mxu0
        %v2713 = vadd.f32 0.0, %v2712
        %v2714 = vpop.f32.mrf.mxu0
        %v2715 = vpop.f32.mrf.mxu0
        %v2716 = vadd.f32 0.0, %v2715
        %v2717 = vpop.f32.mrf.mxu0
        %2718 = vmatprep.mubr.bf16.mxu0 0
        %2719 = vmatmul.mubr.bf16.gmra.mxu0 %v2606
        %v2720 = vpop.f32.mrf.mxu0
        %v2721 = vadd.f32 0.0, %v2720
        %v2722 = vpop.f32.mrf.mxu0
        %v2723 = vpop.f32.mrf.mxu0
        %v2724 = vadd.f32 0.0, %v2723
        %v2725 = vpop.f32.mrf.mxu0
        %2726 = vmatprep.mubr.bf16.mxu0 0
        %2727 = vmatmul.mubr.bf16.gmra.mxu0 %v2607
        %v2728 = vpop.f32.mrf.mxu0
        %v2729 = vadd.f32 0.0, %v2728
        %v2730 = vpop.f32.mrf.mxu0
        %v2731 = vpop.f32.mrf.mxu0
        %v2732 = vadd.f32 0.0, %v2731
        %v2733 = vpop.f32.mrf.mxu0
        %2734 = vmatprep.mubr.bf16.mxu0 0
        %2735 = vmatmul.mubr.bf16.gmra.mxu0 %v2608
        %v2736 = vpop.f32.mrf.mxu0
        %v2737 = vadd.f32 0.0, %v2736
        %v2738 = vpop.f32.mrf.mxu0
        %v2739 = vpop.f32.mrf.mxu0
        %v2740 = vadd.f32 0.0, %v2739
        %v2741 = vpop.f32.mrf.mxu0
        %2742 = vmatprep.mubr.bf16.mxu0 0
        %2743 = vmatmul.mubr.bf16.gmra.mxu0 %v2609
        %v2744 = vpop.f32.mrf.mxu0
        %v2745 = vadd.f32 0.0, %v2744
        %v2746 = vpop.f32.mrf.mxu0
        %v2747 = vpop.f32.mrf.mxu0
        %v2748 = vadd.f32 0.0, %v2747
        %v2749 = vpop.f32.mrf.mxu0
        %2750 = vmatprep.mubr.bf16.mxu0 0
        %2751 = vmatmul.mubr.bf16.gmra.mxu0 %v2610
        %v2752 = vpop.f32.mrf.mxu0
        %v2753 = vadd.f32 0.0, %v2752
        %v2754 = vpop.f32.mrf.mxu0
        %v2755 = vpop.f32.mrf.mxu0
        %v2756 = vadd.f32 0.0, %v2755
        %v2757 = vpop.f32.mrf.mxu0
        %2758 = vmatprep.mubr.bf16.mxu0 0
        %2759 = vmatmul.mubr.bf16.gmra.mxu0 %v2611
        %v2760 = vpop.f32.mrf.mxu0
        %v2761 = vadd.f32 0.0, %v2760
        %v2762 = vpop.f32.mrf.mxu0
        %v2763 = vpop.f32.mrf.mxu0
        %v2764 = vadd.f32 0.0, %v2763
        %v2765 = vpop.f32.mrf.mxu0
        %2766 = vmatprep.mubr.bf16.mxu0 0
        %2767 = vmatmul.mubr.bf16.gmra.mxu0 %v2612
        %v2768 = vpop.f32.mrf.mxu0
        %v2769 = vadd.f32 0.0, %v2768
        %v2770 = vpop.f32.mrf.mxu0
        %v2771 = vpop.f32.mrf.mxu0
        %v2772 = vadd.f32 0.0, %v2771
        %v2773 = vpop.f32.mrf.mxu0
        %2774 = vdwg.mxu0
        %v2775 = vpack.c.bf16 %v2555, %v2555
        %v2776 = vpack.c.bf16 %v2562, %v2562
        %v2777 = vpack.c.bf16 %v2569, %v2569
        %v2778 = vpack.c.bf16 %v2576, %v2576
        %v2779 = vpack.c.bf16 %v2583, %v2583
        %v2780 = vpack.c.bf16 %v2590, %v2590
        %v2781 = vpack.c.bf16 %v2597, %v2597
        %v2782 = vpack.c.bf16 %v2604, %v2604
        %s2783 = scalar_lea.vmem [#allocation2], 320
        %v2784 = vld [vmem:[%s2783] sm:$0xf]
        %v2785 = vld [vmem:[%s2783 + $0x4] sm:$0xf]
        %v2786 = vld [vmem:[%s2783 + $0x8] sm:$0xf]
        %v2787 = vld [vmem:[%s2783 + $0xc] sm:$0xf]
        %v2788 = vld [vmem:[%s2783 + $0x10] sm:$0xf]
        %v2789 = vld [vmem:[%s2783 + $0x14] sm:$0xf]
        %v2790 = vld [vmem:[%s2783 + $0x18] sm:$0xf]
        %v2791 = vld [vmem:[%s2783 + $0x1c] sm:$0xf]
        %v2792 = vld [vmem:[%s2783 + $0x20] sm:$0xf]
        %v2793 = vld [vmem:[%s2783 + $0x24] sm:$0xf]
        %v2794 = vld [vmem:[%s2783 + $0x28] sm:$0xf]
        %v2795 = vld [vmem:[%s2783 + $0x2c] sm:$0xf]
        %v2796 = vld [vmem:[%s2783 + $0x30] sm:$0xf]
        %v2797 = vld [vmem:[%s2783 + $0x34] sm:$0xf]
        %v2798 = vld [vmem:[%s2783 + $0x38] sm:$0xf]
        %v2799 = vld [vmem:[%s2783 + $0x3c] sm:$0xf]
        %v2808 = vunpack.c.l.b16 %v2775
        %v2809 = vunpack.c.l.b16 %v2776
        %v2810 = vunpack.c.l.b16 %v2777
        %v2811 = vunpack.c.l.b16 %v2778
        %v2812 = vunpack.c.l.b16 %v2779
        %v2813 = vunpack.c.l.b16 %v2780
        %v2814 = vunpack.c.l.b16 %v2781
        %v2815 = vunpack.c.l.b16 %v2782
        %v2816 = vsel %vm1245, %v2809, %v2808
        %v2817 = vsel %vm1247, %v2810, %v2816
        %v2818 = vsel %vm1249, %v2811, %v2817
        %v2819 = vsel %vm1251, %v2812, %v2818
        %v2820 = vsel %vm1253, %v2813, %v2819
        %v2821 = vsel %vm1255, %v2814, %v2820
        %v2822 = vsel %vm1257, %v2815, %v2821
        %v2823 = vpack.c.b16 %v2822, %v2822
        %v2841 = vunpack.c.l.b16 %v2784
        %v2842 = vunpack.c.l.b16 %v2785
        %v2843 = vunpack.c.l.b16 %v2786
        %v2844 = vunpack.c.l.b16 %v2787
        %v2845 = vunpack.c.l.b16 %v2788
        %v2846 = vunpack.c.l.b16 %v2789
        %v2847 = vunpack.c.l.b16 %v2790
        %v2848 = vunpack.c.l.b16 %v2791
        %v2849 = vunpack.c.l.b16 %v2792
        %v2850 = vunpack.c.l.b16 %v2793
        %v2851 = vunpack.c.l.b16 %v2794
        %v2852 = vunpack.c.l.b16 %v2795
        %v2853 = vunpack.c.l.b16 %v2796
        %v2854 = vunpack.c.l.b16 %v2797
        %v2855 = vunpack.c.l.b16 %v2798
        %v2856 = vunpack.c.l.b16 %v2799
        %v2857 = vpack.c.b16 %v2842, %v2841
        %v2858 = vpack.c.b16 %v2844, %v2843
        %v2859 = vpack.c.b16 %v2846, %v2845
        %v2860 = vpack.c.b16 %v2848, %v2847
        %v2861 = vpack.c.b16 %v2850, %v2849
        %v2862 = vpack.c.b16 %v2852, %v2851
        %v2863 = vpack.c.b16 %v2854, %v2853
        %v2864 = vpack.c.b16 %v2856, %v2855
        %2873 = vmatprep.subr.bf16.mxu0 0
        %2874 = vmatpush1.bf16.msra.mxu0 %v2864
        %2875 = vmatprep.subr.bf16.mxu0 0
        %2876 = vmatpush1.bf16.msra.mxu0 %v2863
        %2877 = vmatprep.subr.bf16.mxu0 0
        %2878 = vmatpush1.bf16.msra.mxu0 %v2862
        %2879 = vmatprep.subr.bf16.mxu0 0
        %2880 = vmatpush1.bf16.msra.mxu0 %v2861
        %2881 = vmatprep.subr.bf16.mxu0 0
        %2882 = vmatpush1.bf16.msra.mxu0 %v2860
        %2883 = vmatprep.subr.bf16.mxu0 0
        %2884 = vmatpush1.bf16.msra.mxu0 %v2859
        %2885 = vmatprep.subr.bf16.mxu0 0
        %2886 = vmatpush1.bf16.msra.mxu0 %v2858
        %2887 = vmatprep.subr.bf16.mxu0 0
        %2888 = vmatpush1.bf16.msra.mxu0 %v2857
        %2889 = vmatprep.subr.bf16.mxu0 0
        %2890 = vmatpush2.bf16.msra.mxu0 0
        %2891 = vmatprep.subr.bf16.mxu0 0
        %2892 = vmatpush2.bf16.msra.mxu0 0
        %2893 = vmatprep.subr.bf16.mxu0 0
        %2894 = vmatpush2.bf16.msra.mxu0 0
        %2895 = vmatprep.subr.bf16.mxu0 0
        %2896 = vmatpush2.bf16.msra.mxu0 0
        %2897 = vmatprep.subr.bf16.mxu0 0
        %2898 = vmatpush2.bf16.msra.mxu0 0
        %2899 = vmatprep.subr.bf16.mxu0 0
        %2900 = vmatpush2.bf16.msra.mxu0 0
        %2901 = vmatprep.subr.bf16.mxu0 0
        %2902 = vmatpush2.bf16.msra.mxu0 0
        %2903 = vmatprep.subr.bf16.mxu0 0
        %2904 = vmatpush2.bf16.msra.mxu0 0
        %2905 = vmatprep.mubr.bf16.mxu0 0
        %2906 = vmatmul.mubr.bf16.gmra.mxu0 %v2823
        %v2907 = vpop.f32.mrf.mxu0
        %v2908 = vadd.f32 0.0, %v2907
        %v2909 = vpop.f32.mrf.mxu0
        %v2910 = vpop.f32.mrf.mxu0
        %v2911 = vpop.f32.mrf.mxu0
        %2912 = vdwg.mxu0
        %v2914 = vcombine.high %v2908, %v2908
        %v2916 = vunpack.c.l.s4 1966171168
        %v2917 = vunpack.c.0.s8 %v2916
        %v2918 = vlaneseq
        %v2919 = vshrl.u32 %v2918, 7
        %v2920 = vsub.s32 %v2917, %v2919
        %v2921 = vrot.slane %v2908, %v2920
        %v2923 = vunpack.c.l.s4 1966171168
        %v2924 = vunpack.c.0.s8 %v2923
        %v2925 = vlaneseq
        %v2926 = vshrl.u32 %v2925, 7
        %v2927 = vsub.s32 %v2924, %v2926
        %v2928 = vrot.slane %v2914, %v2927
        %v2929 = vcombine.high %v2921, %v2921
        %v2930 = vcombine.high %v2928, %v2928
        %v2932 = vunpack.c.l.s4 1966171168
        %v2933 = vunpack.c.0.s8 %v2932
        %v2934 = vlaneseq
        %v2935 = vshrl.u32 %v2934, 7
        %v2936 = vsub.s32 %v2933, %v2935
        %v2937 = vrot.slane %v2921, %v2936
        %v2939 = vunpack.c.l.s4 1966171168
        %v2940 = vunpack.c.0.s8 %v2939
        %v2941 = vlaneseq
        %v2942 = vshrl.u32 %v2941, 7
        %v2943 = vsub.s32 %v2940, %v2942
        %v2944 = vrot.slane %v2928, %v2943
        %v2946 = vunpack.c.l.s4 1966171168
        %v2947 = vunpack.c.0.s8 %v2946
        %v2948 = vlaneseq
        %v2949 = vshrl.u32 %v2948, 7
        %v2950 = vsub.s32 %v2947, %v2949
        %v2951 = vrot.slane %v2929, %v2950
        %v2953 = vunpack.c.l.s4 1966171168
        %v2954 = vunpack.c.0.s8 %v2953
        %v2955 = vlaneseq
        %v2956 = vshrl.u32 %v2955, 7
        %v2957 = vsub.s32 %v2954, %v2956
        %v2958 = vrot.slane %v2930, %v2957
        %v2959 = vcombine.high %v2937, %v2937
        %v2960 = vcombine.high %v2944, %v2944
        %v2961 = vcombine.high %v2951, %v2951
        %v2962 = vcombine.high %v2958, %v2958
        %v2963 = vlaneseq
        %v2964 = vshrl.u32 %v2963, 7
        %v2965 = vsub.s32 0, %v2964
        %v2966 = vrot.slane %v2937, %v2965
        %v2967 = vlaneseq
        %v2968 = vshrl.u32 %v2967, 7
        %v2969 = vsub.s32 0, %v2968
        %v2970 = vrot.slane %v2951, %v2969
        %v2971 = vlaneseq
        %v2972 = vshrl.u32 %v2971, 7
        %v2973 = vsub.s32 0, %v2972
        %v2974 = vrot.slane %v2959, %v2973
        %v2975 = vlaneseq
        %v2976 = vshrl.u32 %v2975, 7
        %v2977 = vsub.s32 0, %v2976
        %v2978 = vrot.slane %v2961, %v2977
        %v2979 = vlaneseq
        %v2980 = vshrl.u32 %v2979, 7
        %v2981 = vsub.s32 0, %v2980
        %v2982 = vrot.slane %v2944, %v2981
        %v2983 = vlaneseq
        %v2984 = vshrl.u32 %v2983, 7
        %v2985 = vsub.s32 0, %v2984
        %v2986 = vrot.slane %v2958, %v2985
        %v2987 = vlaneseq
        %v2988 = vshrl.u32 %v2987, 7
        %v2989 = vsub.s32 0, %v2988
        %v2990 = vrot.slane %v2960, %v2989
        %v2991 = vlaneseq
        %v2992 = vshrl.u32 %v2991, 7
        %v2993 = vsub.s32 0, %v2992
        %v2994 = vrot.slane %v2962, %v2993
        %v3003 = vadd.f32 %v2713, %v2966
        %v3004 = vadd.f32 %v2716, %v2966
        %v3005 = vadd.f32 %v2721, %v2970
        %v3006 = vadd.f32 %v2724, %v2970
        %v3007 = vadd.f32 %v2729, %v2974
        %v3008 = vadd.f32 %v2732, %v2974
        %v3009 = vadd.f32 %v2737, %v2978
        %v3010 = vadd.f32 %v2740, %v2978
        %v3011 = vadd.f32 %v2745, %v2982
        %v3012 = vadd.f32 %v2748, %v2982
        %v3013 = vadd.f32 %v2753, %v2986
        %v3014 = vadd.f32 %v2756, %v2986
        %v3015 = vadd.f32 %v2761, %v2990
        %v3016 = vadd.f32 %v2764, %v2990
        %v3017 = vadd.f32 %v2769, %v2994
        %v3018 = vadd.f32 %v2772, %v2994
        %v3019 = vld [vmem:[%s5] sm:$0x1]
        %v3021 = vlaneseq
        %v3022 = vshrl.u32 %v3021, 7
        %v3023 = vsub.s32 0, %v3022
        %v3024 = vrot.slane %v3019, %v3023
        %v3026 = vadd.f32 %v3003, %v3024
        %v3027 = vadd.f32 %v3004, %v3024
        %v3028 = vadd.f32 %v3005, %v3024
        %v3029 = vadd.f32 %v3006, %v3024
        %v3030 = vadd.f32 %v3007, %v3024
        %v3031 = vadd.f32 %v3008, %v3024
        %v3032 = vadd.f32 %v3009, %v3024
        %v3033 = vadd.f32 %v3010, %v3024
        %v3034 = vadd.f32 %v3011, %v3024
        %v3035 = vadd.f32 %v3012, %v3024
        %v3036 = vadd.f32 %v3013, %v3024
        %v3037 = vadd.f32 %v3014, %v3024
        %v3038 = vadd.f32 %v3015, %v3024
        %v3039 = vadd.f32 %v3016, %v3024
        %v3040 = vadd.f32 %v3017, %v3024
        %v3041 = vadd.f32 %v3018, %v3024
        %v3042 = vadd.f32 %v3026, %v886
        %v3043 = vadd.f32 %v3027, %v891
        %v3044 = vadd.f32 %v3028, %v896
        %v3045 = vadd.f32 %v3029, %v901
        %v3046 = vadd.f32 %v3030, %v906
        %v3047 = vadd.f32 %v3031, %v911
        %v3048 = vadd.f32 %v3032, %v916
        %v3049 = vadd.f32 %v3033, %v921
        %v3050 = vadd.f32 %v3034, %v926
        %v3051 = vadd.f32 %v3035, %v931
        %v3052 = vadd.f32 %v3036, %v936
        %v3053 = vadd.f32 %v3037, %v941
        %v3054 = vadd.f32 %v3038, %v946
        %v3055 = vadd.f32 %v3039, %v951
        %v3056 = vadd.f32 %v3040, %v956
        %v3057 = vadd.f32 %v3041, %v961
        %v3058 = vmax.f32 %v3042, %v3043
        %v3059 = vrot.slane %v3058, 4
        %v3060 = vmax.f32 %v3058, %v3059
        %v3061 = vrot.slane %v3060, 2
        %v3062 = vmax.f32 %v3060, %v3061
        %v3063 = vrot.slane %v3062, 1
        %v3064 = vmax.f32 %v3062, %v3063
        %v3065 = vmax.f32 %v3044, %v3045
        %v3066 = vrot.slane %v3065, 4
        %v3067 = vmax.f32 %v3065, %v3066
        %v3068 = vrot.slane %v3067, 2
        %v3069 = vmax.f32 %v3067, %v3068
        %v3070 = vrot.slane %v3069, 1
        %v3071 = vmax.f32 %v3069, %v3070
        %v3072 = vmax.f32 %v3046, %v3047
        %v3073 = vrot.slane %v3072, 4
        %v3074 = vmax.f32 %v3072, %v3073
        %v3075 = vrot.slane %v3074, 2
        %v3076 = vmax.f32 %v3074, %v3075
        %v3077 = vrot.slane %v3076, 1
        %v3078 = vmax.f32 %v3076, %v3077
        %v3079 = vmax.f32 %v3048, %v3049
        %v3080 = vrot.slane %v3079, 4
        %v3081 = vmax.f32 %v3079, %v3080
        %v3082 = vrot.slane %v3081, 2
        %v3083 = vmax.f32 %v3081, %v3082
        %v3084 = vrot.slane %v3083, 1
        %v3085 = vmax.f32 %v3083, %v3084
        %v3086 = vmax.f32 %v3050, %v3051
        %v3087 = vrot.slane %v3086, 4
        %v3088 = vmax.f32 %v3086, %v3087
        %v3089 = vrot.slane %v3088, 2
        %v3090 = vmax.f32 %v3088, %v3089
        %v3091 = vrot.slane %v3090, 1
        %v3092 = vmax.f32 %v3090, %v3091
        %v3093 = vmax.f32 %v3052, %v3053
        %v3094 = vrot.slane %v3093, 4
        %v3095 = vmax.f32 %v3093, %v3094
        %v3096 = vrot.slane %v3095, 2
        %v3097 = vmax.f32 %v3095, %v3096
        %v3098 = vrot.slane %v3097, 1
        %v3099 = vmax.f32 %v3097, %v3098
        %v3100 = vmax.f32 %v3054, %v3055
        %v3101 = vrot.slane %v3100, 4
        %v3102 = vmax.f32 %v3100, %v3101
        %v3103 = vrot.slane %v3102, 2
        %v3104 = vmax.f32 %v3102, %v3103
        %v3105 = vrot.slane %v3104, 1
        %v3106 = vmax.f32 %v3104, %v3105
        %v3107 = vmax.f32 %v3056, %v3057
        %v3108 = vrot.slane %v3107, 4
        %v3109 = vmax.f32 %v3107, %v3108
        %v3110 = vrot.slane %v3109, 2
        %v3111 = vmax.f32 %v3109, %v3110
        %v3112 = vrot.slane %v3111, 1
        %v3113 = vmax.f32 %v3111, %v3112
        %v3114 = vmul.f32 %v3064, %v3064
        %v3115 = vmul.f32 %v3071, %v3071
        %v3116 = vmul.f32 %v3078, %v3078
        %v3117 = vmul.f32 %v3085, %v3085
        %v3118 = vmul.f32 %v3092, %v3092
        %v3119 = vmul.f32 %v3099, %v3099
        %v3120 = vmul.f32 %v3106, %v3106
        %v3121 = vmul.f32 %v3113, %v3113
        %v3130 = vsel %vm1245, %v3115, %v3114
        %v3131 = vsel %vm1247, %v3116, %v3130
        %v3132 = vsel %vm1249, %v3117, %v3131
        %v3133 = vsel %vm1251, %v3118, %v3132
        %v3134 = vsel %vm1253, %v3119, %v3133
        %v3135 = vsel %vm1255, %v3120, %v3134
        %v3136 = vsel %vm1257, %v3121, %v3135
        %3138 = vadd.xlane.f32.xlu0 %v3136
        %v3139 = vpop.xlane.xlu0 %3138
        %v3140 = vmax.f32 %v3139, 1e-24
        %v3141 = vrsqrt.pop %v3140
        %v3143 = vrot.slane %v3141, 1
        %v3144 = vrot.slane %v3141, 2
        %v3145 = vrot.slane %v3141, 3
        %v3146 = vrot.slane %v3141, 4
        %v3147 = vrot.slane %v3141, 5
        %v3148 = vrot.slane %v3141, 6
        %v3149 = vrot.slane %v3141, 7
        %v3158 = vmul.f32 %v3064, %v3141
        %v3159 = vmul.f32 %v3071, %v3143
        %v3160 = vmul.f32 %v3078, %v3144
        %v3161 = vmul.f32 %v3085, %v3145
        %v3162 = vmul.f32 %v3092, %v3146
        %v3163 = vmul.f32 %v3099, %v3147
        %v3164 = vmul.f32 %v3106, %v3148
        %v3165 = vmul.f32 %v3113, %v3149
        %v3174 = vrot.slane %v3159, 7
        %v3175 = vsel %vm1245, %v3174, %v3158
        %v3176 = vrot.slane %v3160, 6
        %v3177 = vsel %vm1247, %v3176, %v3175
        %v3178 = vrot.slane %v3161, 5
        %v3179 = vsel %vm1249, %v3178, %v3177
        %v3180 = vrot.slane %v3162, 4
        %v3181 = vsel %vm1251, %v3180, %v3179
        %v3182 = vrot.slane %v3163, 3
        %v3183 = vsel %vm1253, %v3182, %v3181
        %v3184 = vrot.slane %v3164, 2
        %v3185 = vsel %vm1255, %v3184, %v3183
        %v3186 = vrot.slane %v3165, 1
        %v3187 = vsel %vm1257, %v3186, %v3185
        %3189 = vst [vmem:[%s275] sm:$0xff] %v3187
        %s3190 = sand.u32 %s165, 1
        %s3191 = scalar_lea.sflag [#allocation4], %s3190
        %s3192 = sand.u32 %s165, 1
        %s3193 = smul.addr %s3192, 8
        %s3194 = scalar_lea.vmem [#allocation5], %s3193
        // Predicated region
        $region49: #{tpu_custom_call.1} parent=43 // pred_check
          %p3195 = pneg %p175
        $region50: #{tpu_custom_call.1} parent=43 // pred_check_branch
          %3197 = sbr.rel (%p3195) target = $region52
        $region51: #{tpu_custom_call.1} parent=43 // pred_region
          %s3199 = ssub.s32 128, 128
          %3200 = vsyncadd %s3191, %s3199
          %s3201 = smul.addr %s21, 128
          %s3202 = scalar_lea.hbm %s6, %s3201
          %s3204 = sshll.u32 %s3194, 4
          %s3205 = int_to_ptr.vmem [resolvable:$true] %s3204
          %3207 = dma.vmem_to_hbm [thread:$0]  %s3205, 128, %s3202, %s3191
        $region52: #{tpu_custom_call.1} parent=43 // pred_fallthru
          _
      $region44: #{tpu_custom_call.1} parent=5 // pred_fallthru
        _
      %p3208 = scmp.le.s32.totalorder 2, %s16
      // Predicated region
      $region53: #{tpu_custom_call.1} parent=5 // pred_check
        %p3209 = pneg %p3208
      $region54: #{tpu_custom_call.1} parent=5 // pred_check_branch
        %3211 = sbr.rel (%p3209) target = $region56
      $region55: #{tpu_custom_call.1} parent=5 // pred_region
        %s3212 = ssub.s32 %s16, 2
        // Predicated region
        $region57: #{tpu_custom_call.1} parent=55 // pred_check
          %p3213 = pneg %p181
        $region58: #{tpu_custom_call.1} parent=55 // pred_check_branch
          %3215 = sbr.rel (%p3213) target = $region60
        $region59: #{tpu_custom_call.1} parent=55 // pred_region
          %s3216 = sand.u32 %s166, 1
          %s3217 = scalar_lea.sflag [#allocation4], %s3216
          %s3218 = sand.u32 %s166, 1
          %s3219 = smul.addr %s3218, 8
          %s3220 = scalar_lea.vmem [#allocation5], %s3219
          %3221 = dma.done %s3217, 128
        $region60: #{tpu_custom_call.1} parent=55 // pred_fallthru
          _
      $region56: #{tpu_custom_call.1} parent=5 // pred_fallthru
        _
    $region6: #{tpu_custom_call.1} parent=1 // loop_footer
      %s20 = sadd.s32 1, %s16
    $region7: #{tpu_custom_call.1} parent=1 // loop_footer_branch
      %15 = sbr.rel target = $region3
    $region8: #{tpu_custom_call.1} parent=1 // loop_exit
      _
    %3222 = vsyncpa [#allocation3], 1
    %s3223 = scalar_lea.sflag [#allocation3], 1
    %3224 = vsyncpa %s3223, 1
    %3225 = vsyncpa [#allocation4], 1
    %s3226 = scalar_lea.sflag [#allocation4], 1
    %3227 = vsyncpa %s3226, 1

</llo_original>
